<compile_context>
chip_gen: v6e
topology: v6e:2x2x1
jax: 0.10.0
libtpu: 0.0.40
codegen_flags: <defaults>
</compile_context>

<pallas_src>
import functools

import jax
import jax.numpy as jnp
from jax.experimental import pallas as pl
from jax.experimental.pallas import tpu as pltpu


def linformer_kernel(mask_ref, x_ref, wq_ref, wkv_ref, ekvt_ref, wo_ref, bo_ref,
                     out_ref, o_scratch, *, heads, dim_head, kproj, pad_token_id,
                     exp_dtype):
    bt, n, d = x_ref.shape                      # block: (block_b, N, D)
    hd = heads * dim_head

    x = x_ref[...]                              # (bt, N, D) compute dtype (bf16)
    m = mask_ref[...]                           # (bt, N, 1) int32

    # x.masked_fill(mask.unsqueeze(-1), pad_token_id)
    xm = jnp.where(m != 0, jnp.asarray(pad_token_id, dtype=x.dtype), x)
    xm2 = xm.reshape(bt * n, d)                 # (M, D), M = block_b * N

    # Q projection for the whole block in one matmul (scale folded into wq columns).
    q2 = jnp.dot(xm2, wq_ref[...], preferred_element_type=jnp.float32).astype(x.dtype)

    # Static unroll over the (small) per-block batch; every slice below is a static,
    # vreg-aligned slice (N multiple of 8 on sublanes, dim_head multiple of 128 lanes).
    for b in range(bt):
        xb = xm2[b * n:(b + 1) * n, :]          # (N, D)

        # Compress-then-project (exact reorder of the linear k/v path).
        xc = jnp.dot(ekvt_ref[...], xb,
                     preferred_element_type=jnp.float32).astype(x.dtype)    # (2K, D)
        kp = jnp.dot(xc[:kproj], wkv_ref[:, :hd],
                     preferred_element_type=jnp.float32).astype(x.dtype)    # (K, H*Dh)
        vp = jnp.dot(xc[kproj:], wkv_ref[:, hd:],
                     preferred_element_type=jnp.float32).astype(x.dtype)    # (K, H*Dh)

        qb = q2[b * n:(b + 1) * n, :]           # (N, H*Dh)

        for h in range(heads):
            lo, hi = h * dim_head, (h + 1) * dim_head
            qh = qb[:, lo:hi]                   # (N, Dh)  lane slice (no copies)
            kh = kp[:, lo:hi]                   # (K, Dh)
            vh = vp[:, lo:hi]                   # (K, Dh)

            # dots = q k'^T : contract Dh directly, no explicit transpose.
            dots = jax.lax.dot_general(qh, kh, (((1,), (1,)), ((), ())),
                                       preferred_element_type=jnp.float32)  # (N, K)
            dots = dots - jnp.max(dots, axis=-1, keepdims=True)
            e = jnp.exp(dots.astype(exp_dtype))                             # bf16 on v6e/v7x
            s = jnp.sum(e, axis=-1, keepdims=True, dtype=jnp.float32)       # (N, 1) f32
            inv = pl.reciprocal(s, approx=True)                             # EUP slot

            o = jnp.dot(e.astype(x.dtype), vh,
                        preferred_element_type=jnp.float32)                 # (N, Dh) f32
            o = o * inv                          # normalize after PV: N*Dh muls, not N*K
            o_scratch[b * n:(b + 1) * n, lo:hi] = o.astype(o_scratch.dtype)

    # Single output projection over the assembled (M, H*Dh) buffer + bias.
    out = jnp.dot(o_scratch[...], wo_ref[...], preferred_element_type=jnp.float32)
    out = out + bo_ref[...]                                                  # (M, D) + (1, D)
    out_ref[...] = out.reshape(bt, n, d).astype(out_ref.dtype)


def _device_kind():
    try:
        return jax.devices()[0].device_kind.lower()
    except Exception:
        return ""


def linformer_self_attention(x, mask, params, *, heads, dim_head, pad_token_id,
                             block_b=None, compute_dtype=jnp.bfloat16):
    B, N, D = x.shape
    hd = heads * dim_head
    ek, ev = params["proj_k"], params["proj_v"]
    assert N <= ek.shape[0], "sequence length exceeds Linformer seq_len"
    kproj = ek.shape[1]

    kind = _device_kind()
    is_v7 = "v7" in kind
    has_bf16_eup = ("v6" in kind) or ("v7" in kind)   # v5e has no bf16 EUP -> f32 exp

    # Fold the 1/sqrt(dim_head) scale into wq; fuse wk|wv; stack E_k^T | E_v^T.
    scale = jnp.asarray(dim_head, jnp.float32) ** -0.5
    wq = (params["wq"].astype(jnp.float32) * scale).astype(compute_dtype)      # (D, H*Dh)
    wkv = jnp.concatenate([params["wk"].astype(jnp.float32),
                           params["wv"].astype(jnp.float32)],
                          axis=1).astype(compute_dtype)                         # (D, 2*H*Dh)
    ekvt = jnp.concatenate([jnp.transpose(ek[:N]).astype(jnp.float32),
                            jnp.transpose(ev[:N]).astype(jnp.float32)],
                           axis=0).astype(compute_dtype)                        # (2K, N)
    wo = params["wo"].astype(compute_dtype)                                     # (H*Dh, D)
    bo = params["bo"].reshape(1, D).astype(jnp.float32)                         # (1, D)

    xin = x.astype(compute_dtype)
    mask_i = mask.astype(jnp.int32).reshape(B, N, 1)

    if block_b is None:
        # Keep >= 8 grid steps (or B if smaller) so the BlockSpec pipeline can overlap
        # x/out DMA with compute; cap the block at 2 sequences on v7x (64 MiB VMEM/TC)
        # and 4 on v5e/v6e (128 MiB).
        max_bb = 2 if is_v7 else 4
        block_b = 1
        for cand in range(min(max_bb, B), 0, -1):
            if B % cand == 0 and (B // cand) >= min(8, B):
                block_b = cand
                break
    assert B % block_b == 0
    grid = (B // block_b,)

    exp_dtype = compute_dtype if has_bf16_eup else jnp.float32
    vmem_limit = (48 if is_v7 else 64) * 1024 * 1024

    kern = functools.partial(linformer_kernel, heads=heads, dim_head=dim_head,
                             kproj=kproj, pad_token_id=pad_token_id,
                             exp_dtype=exp_dtype)

    def const(arr):
        nd = arr.ndim
        return pl.BlockSpec(arr.shape, lambda b, _nd=nd: (0,) * _nd)

    return pl.pallas_call(
        kern,
        out_shape=jax.ShapeDtypeStruct((B, N, D), x.dtype),
        grid=grid,
        in_specs=[
            pl.BlockSpec((block_b, N, 1), lambda b: (b, 0, 0)),   # mask
            pl.BlockSpec((block_b, N, D), lambda b: (b, 0, 0)),   # x
            const(wq), const(wkv), const(ekvt), const(wo), const(bo),
        ],
        out_specs=pl.BlockSpec((block_b, N, D), lambda b: (b, 0, 0)),
        scratch_shapes=[pltpu.VMEM((block_b * N, hd), compute_dtype)],
        compiler_params=pltpu.CompilerParams(
            dimension_semantics=("parallel",),
            vmem_limit_bytes=vmem_limit),
    )(mask_i, xin, wq, wkv, ekvt, wo, bo)


if __name__ == "__main__":
    key = jax.random.PRNGKey(0)

    B, N, D = 4, 128, 256         # batch, sequence length, embedding dim
    HEADS = 2                     # module hard-codes heads=2
    DIM_HEAD = D // HEADS         # LinformerSelfAttention default dim_head (=128, lane aligned)
    K_PROJ = 128                  # Linformer projection dim (lane-dense small stand-in for 256)
    SEQ_LEN_MAX = 870             # module constructs Linformer with seq_len=870; proj sliced to N
    PAD_TOKEN_ID = 0

    ks = jax.random.split(key, 9)
    s = 0.05
    params = dict(
        wq=jax.random.normal(ks[0], (D, HEADS * DIM_HEAD), jnp.float32) * s,
        wk=jax.random.normal(ks[1], (D, HEADS * DIM_HEAD), jnp.float32) * s,
        wv=jax.random.normal(ks[2], (D, HEADS * DIM_HEAD), jnp.float32) * s,
        proj_k=jax.random.normal(ks[3], (SEQ_LEN_MAX, K_PROJ), jnp.float32) * s,
        proj_v=jax.random.normal(ks[4], (SEQ_LEN_MAX, K_PROJ), jnp.float32) * s,
        wo=jax.random.normal(ks[5], (HEADS * DIM_HEAD, D), jnp.float32) * s,
        bo=jax.random.normal(ks[6], (D,), jnp.float32) * s,
    )

    x = jax.random.normal(ks[7], (B, N, D), jnp.float32)
    mask = jax.random.bernoulli(ks[8], 0.2, (B, N))   # True => padding token

    out = linformer_self_attention(x, mask, params, heads=HEADS,
                                   dim_head=DIM_HEAD, pad_token_id=PAD_TOKEN_ID)
    out = jax.block_until_ready(out)

    # pure-JAX f32 reference (mirrors the PyTorch forward exactly)
    def ref(x, mask):
        xm = jnp.where(mask[..., None], jnp.float32(PAD_TOKEN_ID), x)
        q = xm @ params["wq"]
        k = xm @ params["wk"]
        v = xm @ params["wv"]
        ekr = params["proj_k"][:N]
        evr = params["proj_v"][:N]
        kp = jnp.einsum("bnd,nk->bkd", k, ekr)
        vp = jnp.einsum("bnd,nk->bkd", v, evr)
        qh = q.reshape(B, N, HEADS, DIM_HEAD).transpose(0, 2, 1, 3)
        kh = kp.reshape(B, K_PROJ, HEADS, DIM_HEAD).transpose(0, 2, 1, 3)
        vh = vp.reshape(B, K_PROJ, HEADS, DIM_HEAD).transpose(0, 2, 1, 3)
        dots = jnp.einsum("bhnd,bhkd->bhnk", qh, kh) * (DIM_HEAD ** -0.5)
        attn = jax.nn.softmax(dots, axis=-1)
        o = jnp.einsum("bhnk,bhkd->bhnd", attn, vh)
        o = o.transpose(0, 2, 1, 3).reshape(B, N, HEADS * DIM_HEAD)
        return o @ params["wo"] + params["bo"]

    r = jax.block_until_ready(ref(x, mask))
    err = float(jnp.max(jnp.abs(out - r)))
    # kernel runs bf16 matmuls (f32 accumulation) + bf16 exp (v6e/v7x) vs. an f32 reference
    assert jnp.allclose(out, r, atol=1e-2, rtol=5e-2), f"mismatch vs reference, max abs err {err}"
    print("KERNEL_OK")
</pallas_src>

<mosaic_0001>
module attributes {stable_mosaic.version = 11 : i64} {
  func.func @linformer_kernel(%arg0: i32, %arg1: memref<1x128x1xi32, #tpu.memory_space<vmem>>, %arg2: memref<1x128x256xbf16, #tpu.memory_space<vmem>>, %arg3: memref<256x256xbf16, #tpu.memory_space<vmem>>, %arg4: memref<256x512xbf16, #tpu.memory_space<vmem>>, %arg5: memref<256x128xbf16, #tpu.memory_space<vmem>>, %arg6: memref<256x256xbf16, #tpu.memory_space<vmem>>, %arg7: memref<1x256xf32, #tpu.memory_space<vmem>>, %arg8: memref<1x128x256xf32, #tpu.memory_space<vmem>>, %arg9: memref<128x256xbf16, #tpu.memory_space<vmem>>) attributes {dimension_semantics = [#tpu.dimension_semantics<parallel>], iteration_bounds = array<i64: 4>, scalar_prefetch = 0 : i64, scratch_operands = 1 : i64, tpu.core_type = #tpu.core_type<tc>, window_params = [{transform_indices = @transform_0, window_bounds = array<i64: 1, 128, 1>}, {transform_indices = @transform_1, window_bounds = array<i64: 1, 128, 256>}, {pipeline_mode = #tpu.pipeline_mode<synchronous>, transform_indices = @transform_2, window_bounds = array<i64: 256, 256>}, {pipeline_mode = #tpu.pipeline_mode<synchronous>, transform_indices = @transform_3, window_bounds = array<i64: 256, 512>}, {pipeline_mode = #tpu.pipeline_mode<synchronous>, transform_indices = @transform_4, window_bounds = array<i64: 256, 128>}, {pipeline_mode = #tpu.pipeline_mode<synchronous>, transform_indices = @transform_5, window_bounds = array<i64: 256, 256>}, {pipeline_mode = #tpu.pipeline_mode<synchronous>, transform_indices = @transform_6, window_bounds = array<i64: 1, 256>}, {transform_indices = @transform_7, window_bounds = array<i64: 1, 128, 256>}]} {
    %c0 = arith.constant 0 : index
    %c0_0 = arith.constant 0 : index
    %c0_1 = arith.constant 0 : index
    %0 = vector.load %arg2[%c0, %c0_0, %c0_1] : memref<1x128x256xbf16, #tpu.memory_space<vmem>>, vector<1x128x256xbf16>
    %c0_2 = arith.constant 0 : index
    %c0_3 = arith.constant 0 : index
    %c0_4 = arith.constant 0 : index
    %1 = vector.load %arg1[%c0_2, %c0_3, %c0_4] : memref<1x128x1xi32, #tpu.memory_space<vmem>>, vector<1x128x1xi32>
    %c0_i32 = arith.constant 0 : i32
    %2 = vector.broadcast %c0_i32 : i32 to vector<1x128x1xi32>
    %3 = arith.cmpi ne, %1, %2 : vector<1x128x1xi32>
    %cst = arith.constant 0.000000e+00 : bf16
    %4 = vector.shape_cast %3 : vector<1x128x1xi1> to vector<1x128x1xi1>
    %5 = vector.broadcast %4 : vector<1x128x1xi1> to vector<1x128x256xi1>
    %6 = vector.broadcast %cst : bf16 to vector<1x128x256xbf16>
    %7 = arith.select %5, %6, %0 : vector<1x128x256xi1>, vector<1x128x256xbf16>
    %8 = vector.shape_cast %7 : vector<1x128x256xbf16> to vector<128x256xbf16>
    %c0_5 = arith.constant 0 : index
    %c0_6 = arith.constant 0 : index
    %9 = vector.load %arg3[%c0_5, %c0_6] : memref<256x256xbf16, #tpu.memory_space<vmem>>, vector<256x256xbf16>
    %cst_7 = arith.constant dense<0.000000e+00> : vector<128x256xf32>
    %10 = tpu.matmul %8, %9, %cst_7 {dimension_numbers = #tpu.dot_dimension_numbers<[1], [0], [0], [1], [0, 0, 1, 1], [], []>} : vector<128x256xbf16>, vector<256x256xbf16>, vector<128x256xf32> -> vector<128x256xf32>
    %11 = arith.truncf %10 : vector<128x256xf32> to vector<128x256xbf16>
    %c0_8 = arith.constant 0 : index
    %c0_9 = arith.constant 0 : index
    %12 = vector.load %arg5[%c0_8, %c0_9] : memref<256x128xbf16, #tpu.memory_space<vmem>>, vector<256x128xbf16>
    %cst_10 = arith.constant dense<0.000000e+00> : vector<256x256xf32>
    %13 = tpu.matmul %12, %8, %cst_10 {dimension_numbers = #tpu.dot_dimension_numbers<[1], [0], [0], [1], [0, 0, 1, 1], [], []>} : vector<256x128xbf16>, vector<128x256xbf16>, vector<256x256xf32> -> vector<256x256xf32>
    %14 = arith.truncf %13 : vector<256x256xf32> to vector<256x256xbf16>
    %15 = vector.extract_strided_slice %14 {offsets = [0, 0], sizes = [128, 256], strides = [1, 1]} : vector<256x256xbf16> to vector<128x256xbf16>
    %c0_11 = arith.constant 0 : index
    %c0_12 = arith.constant 0 : index
    %16 = vector.load %arg4[%c0_11, %c0_12] : memref<256x512xbf16, #tpu.memory_space<vmem>>, vector<256x256xbf16>
    %cst_13 = arith.constant dense<0.000000e+00> : vector<128x256xf32>
    %17 = tpu.matmul %15, %16, %cst_13 {dimension_numbers = #tpu.dot_dimension_numbers<[1], [0], [0], [1], [0, 0, 1, 1], [], []>} : vector<128x256xbf16>, vector<256x256xbf16>, vector<128x256xf32> -> vector<128x256xf32>
    %18 = arith.truncf %17 : vector<128x256xf32> to vector<128x256xbf16>
    %19 = vector.extract_strided_slice %14 {offsets = [128, 0], sizes = [128, 256], strides = [1, 1]} : vector<256x256xbf16> to vector<128x256xbf16>
    %c0_14 = arith.constant 0 : index
    %c256 = arith.constant 256 : index
    %20 = vector.load %arg4[%c0_14, %c256] : memref<256x512xbf16, #tpu.memory_space<vmem>>, vector<256x256xbf16>
    %cst_15 = arith.constant dense<0.000000e+00> : vector<128x256xf32>
    %21 = tpu.matmul %19, %20, %cst_15 {dimension_numbers = #tpu.dot_dimension_numbers<[1], [0], [0], [1], [0, 0, 1, 1], [], []>} : vector<128x256xbf16>, vector<256x256xbf16>, vector<128x256xf32> -> vector<128x256xf32>
    %22 = arith.truncf %21 : vector<128x256xf32> to vector<128x256xbf16>
    %23 = vector.extract_strided_slice %11 {offsets = [0, 0], sizes = [128, 128], strides = [1, 1]} : vector<128x256xbf16> to vector<128x128xbf16>
    %24 = vector.extract_strided_slice %18 {offsets = [0, 0], sizes = [128, 128], strides = [1, 1]} : vector<128x256xbf16> to vector<128x128xbf16>
    %25 = vector.extract_strided_slice %22 {offsets = [0, 0], sizes = [128, 128], strides = [1, 1]} : vector<128x256xbf16> to vector<128x128xbf16>
    %cst_16 = arith.constant dense<0.000000e+00> : vector<128x128xf32>
    %26 = tpu.matmul %23, %24, %cst_16 {dimension_numbers = #tpu.dot_dimension_numbers<[1], [1], [0], [0], [0, 0, 1, 0], [], []>} : vector<128x128xbf16>, vector<128x128xbf16>, vector<128x128xf32> -> vector<128x128xf32>
    %cst_17 = arith.constant dense<0xFF800000> : vector<128xf32>
    %27 = vector.multi_reduction <maximumf>, %26, %cst_17 [1] : vector<128x128xf32> to vector<128xf32>
    %28 = vector.shape_cast %27 : vector<128xf32> to vector<128x1xf32>
    %29 = vector.broadcast %28 : vector<128x1xf32> to vector<128x128xf32>
    %30 = arith.subf %26, %29 : vector<128x128xf32>
    %31 = math.exp %30 : vector<128x128xf32>
    %cst_18 = arith.constant dense<0.000000e+00> : vector<128xf32>
    %32 = vector.multi_reduction <add>, %31, %cst_18 [1] : vector<128x128xf32> to vector<128xf32>
    %33 = vector.shape_cast %32 : vector<128xf32> to vector<128x1xf32>
    %34 = tpu.reciprocal %33 {approx = true} : vector<128x1xf32> -> vector<128x1xf32>
    %35 = arith.truncf %31 : vector<128x128xf32> to vector<128x128xbf16>
    %cst_19 = arith.constant dense<0.000000e+00> : vector<128x128xf32>
    %36 = tpu.matmul %35, %25, %cst_19 {dimension_numbers = #tpu.dot_dimension_numbers<[1], [0], [0], [1], [0, 0, 1, 1], [], []>} : vector<128x128xbf16>, vector<128x128xbf16>, vector<128x128xf32> -> vector<128x128xf32>
    %37 = vector.broadcast %34 : vector<128x1xf32> to vector<128x128xf32>
    %38 = arith.mulf %36, %37 : vector<128x128xf32>
    %39 = arith.truncf %38 : vector<128x128xf32> to vector<128x128xbf16>
    %c0_20 = arith.constant 0 : index
    %c0_21 = arith.constant 0 : index
    %40 = vector.load %arg9[%c0_20, %c0_21] : memref<128x256xbf16, #tpu.memory_space<vmem>>, vector<128x128xbf16>
    tpu.vector_store %arg9[%c0_20, %c0_21], %39 {strides = array<i32>} : memref<128x256xbf16, #tpu.memory_space<vmem>>, vector<128x128xbf16>,
    %41 = vector.extract_strided_slice %11 {offsets = [0, 128], sizes = [128, 128], strides = [1, 1]} : vector<128x256xbf16> to vector<128x128xbf16>
    %42 = vector.extract_strided_slice %18 {offsets = [0, 128], sizes = [128, 128], strides = [1, 1]} : vector<128x256xbf16> to vector<128x128xbf16>
    %43 = vector.extract_strided_slice %22 {offsets = [0, 128], sizes = [128, 128], strides = [1, 1]} : vector<128x256xbf16> to vector<128x128xbf16>
    %cst_22 = arith.constant dense<0.000000e+00> : vector<128x128xf32>
    %44 = tpu.matmul %41, %42, %cst_22 {dimension_numbers = #tpu.dot_dimension_numbers<[1], [1], [0], [0], [0, 0, 1, 0], [], []>} : vector<128x128xbf16>, vector<128x128xbf16>, vector<128x128xf32> -> vector<128x128xf32>
    %cst_23 = arith.constant dense<0xFF800000> : vector<128xf32>
    %45 = vector.multi_reduction <maximumf>, %44, %cst_23 [1] : vector<128x128xf32> to vector<128xf32>
    %46 = vector.shape_cast %45 : vector<128xf32> to vector<128x1xf32>
    %47 = vector.broadcast %46 : vector<128x1xf32> to vector<128x128xf32>
    %48 = arith.subf %44, %47 : vector<128x128xf32>
    %49 = math.exp %48 : vector<128x128xf32>
    %cst_24 = arith.constant dense<0.000000e+00> : vector<128xf32>
    %50 = vector.multi_reduction <add>, %49, %cst_24 [1] : vector<128x128xf32> to vector<128xf32>
    %51 = vector.shape_cast %50 : vector<128xf32> to vector<128x1xf32>
    %52 = tpu.reciprocal %51 {approx = true} : vector<128x1xf32> -> vector<128x1xf32>
    %53 = arith.truncf %49 : vector<128x128xf32> to vector<128x128xbf16>
    %cst_25 = arith.constant dense<0.000000e+00> : vector<128x128xf32>
    %54 = tpu.matmul %53, %43, %cst_25 {dimension_numbers = #tpu.dot_dimension_numbers<[1], [0], [0], [1], [0, 0, 1, 1], [], []>} : vector<128x128xbf16>, vector<128x128xbf16>, vector<128x128xf32> -> vector<128x128xf32>
    %55 = vector.broadcast %52 : vector<128x1xf32> to vector<128x128xf32>
    %56 = arith.mulf %54, %55 : vector<128x128xf32>
    %57 = arith.truncf %56 : vector<128x128xf32> to vector<128x128xbf16>
    %c0_26 = arith.constant 0 : index
    %c128 = arith.constant 128 : index
    %58 = vector.load %arg9[%c0_26, %c128] : memref<128x256xbf16, #tpu.memory_space<vmem>>, vector<128x128xbf16>
    tpu.vector_store %arg9[%c0_26, %c128], %57 {strides = array<i32>} : memref<128x256xbf16, #tpu.memory_space<vmem>>, vector<128x128xbf16>,
    %c0_27 = arith.constant 0 : index
    %c0_28 = arith.constant 0 : index
    %59 = vector.load %arg9[%c0_27, %c0_28] : memref<128x256xbf16, #tpu.memory_space<vmem>>, vector<128x256xbf16>
    %c0_29 = arith.constant 0 : index
    %c0_30 = arith.constant 0 : index
    %60 = vector.load %arg6[%c0_29, %c0_30] : memref<256x256xbf16, #tpu.memory_space<vmem>>, vector<256x256xbf16>
    %cst_31 = arith.constant dense<0.000000e+00> : vector<128x256xf32>
    %61 = tpu.matmul %59, %60, %cst_31 {dimension_numbers = #tpu.dot_dimension_numbers<[1], [0], [0], [1], [0, 0, 1, 1], [], []>} : vector<128x256xbf16>, vector<256x256xbf16>, vector<128x256xf32> -> vector<128x256xf32>
    %c0_32 = arith.constant 0 : index
    %c0_33 = arith.constant 0 : index
    %62 = vector.load %arg7[%c0_32, %c0_33] : memref<1x256xf32, #tpu.memory_space<vmem>>, vector<1x256xf32>
    %63 = vector.broadcast %62 : vector<1x256xf32> to vector<128x256xf32>
    %64 = arith.addf %61, %63 : vector<128x256xf32>
    %65 = vector.shape_cast %64 : vector<128x256xf32> to vector<1x128x256xf32>
    %c0_34 = arith.constant 0 : index
    %c0_35 = arith.constant 0 : index
    %c0_36 = arith.constant 0 : index
    %66 = vector.load %arg8[%c0_34, %c0_35, %c0_36] : memref<1x128x256xf32, #tpu.memory_space<vmem>>, vector<1x128x256xf32>
    tpu.vector_store %arg8[%c0_34, %c0_35, %c0_36], %65 {strides = array<i32>} : memref<1x128x256xf32, #tpu.memory_space<vmem>>, vector<1x128x256xf32>,
    return
  }
  func.func @transform_0(%arg0: i32) -> (i32, i32, i32) {
    %c0_i32 = arith.constant 0 : i32
    %c0_i32_0 = arith.constant 0 : i32
    %c0_i32_1 = arith.constant 0 : i32
    return %arg0, %c0_i32, %c0_i32_0 : i32, i32, i32
  }
  func.func @transform_1(%arg0: i32) -> (i32, i32, i32) {
    %c0_i32 = arith.constant 0 : i32
    %c0_i32_0 = arith.constant 0 : i32
    %c0_i32_1 = arith.constant 0 : i32
    return %arg0, %c0_i32, %c0_i32_0 : i32, i32, i32
  }
  func.func @transform_2(%arg0: i32) -> (i32, i32) {
    %c0_i32 = arith.constant 0 : i32
    %c0_i32_0 = arith.constant 0 : i32
    %c0_i32_1 = arith.constant 0 : i32
    return %c0_i32, %c0_i32_0 : i32, i32
  }
  func.func @transform_3(%arg0: i32) -> (i32, i32) {
    %c0_i32 = arith.constant 0 : i32
    %c0_i32_0 = arith.constant 0 : i32
    %c0_i32_1 = arith.constant 0 : i32
    return %c0_i32, %c0_i32_0 : i32, i32
  }
  func.func @transform_4(%arg0: i32) -> (i32, i32) {
    %c0_i32 = arith.constant 0 : i32
    %c0_i32_0 = arith.constant 0 : i32
    %c0_i32_1 = arith.constant 0 : i32
    return %c0_i32, %c0_i32_0 : i32, i32
  }
  func.func @transform_5(%arg0: i32) -> (i32, i32) {
    %c0_i32 = arith.constant 0 : i32
    %c0_i32_0 = arith.constant 0 : i32
    %c0_i32_1 = arith.constant 0 : i32
    return %c0_i32, %c0_i32_0 : i32, i32
  }
  func.func @transform_6(%arg0: i32) -> (i32, i32) {
    %c0_i32 = arith.constant 0 : i32
    %c0_i32_0 = arith.constant 0 : i32
    %c0_i32_1 = arith.constant 0 : i32
    return %c0_i32, %c0_i32_0 : i32, i32
  }
  func.func @transform_7(%arg0: i32) -> (i32, i32, i32) {
    %c0_i32 = arith.constant 0 : i32
    %c0_i32_0 = arith.constant 0 : i32
    %c0_i32_1 = arith.constant 0 : i32
    return %arg0, %c0_i32, %c0_i32_0 : i32, i32, i32
  }
}

</mosaic_0001>

<llo_original>
// kernel: tpu_custom_call.1
$region0: #{tpu_custom_call.1}
  #allocation0 [shape = 'u32[]', space=smem, size = 0x4, offset = 0x4, fixed_abs, tag = 'smem constant byte address 0x4 - core index']
  #allocation1 [shape = 'u32[144,128]{1,0:T(1,128)}', space=vmem, size = 0x12000, scoped, tag = 'internal scratch']
  #allocation2 [shape = 'bf16[128,256]{1,0:T(8,128)(2,1)}', space=vmem, size = 0x10000, scoped, tag = 'scratch operand']
  %s0 = inlined_call_operand.vmem [shape: s32[4,128,1], index: 0, kind: input, shape index: {}]
  %s1 = inlined_call_operand.vmem [shape: bf16[4,128,256], index: 1, kind: input, shape index: {}]
  %s2 = inlined_call_operand.hbm [shape: bf16[256,256], index: 2, kind: input, shape index: {}]
  %s3 = inlined_call_operand.hbm [shape: bf16[256,512], index: 3, kind: input, shape index: {}]
  %s4 = inlined_call_operand.hbm [shape: bf16[256,128], index: 4, kind: input, shape index: {}]
  %s5 = inlined_call_operand.hbm [shape: bf16[256,256], index: 5, kind: input, shape index: {}]
  %s6 = inlined_call_operand.vmem [shape: f32[1,256], index: 6, kind: input, shape index: {}]
  %s7 = inlined_call_operand.hbm [shape: f32[4,128,256], index: 7, kind: output, shape index: {}]
  %s8 = sld [smem:[#allocation0]]
  $region77: #{tpu_custom_call.1} parent=0
    _
  %s10 = ssub.s32 1, %s8
  %s11 = scalar_select 0, %s10, %s8
  $region1: #{tpu_custom_call.1} parent=0
    #allocation3 [shape = 'u8[131072]{0}', space=vmem, size = 0x20000, scoped, tag = 'input window, operand 2, single buffered']
    #allocation4 [shape = 's32[2]{0}', space=sflag, size = 0x8, scoped, tag = 'scoped memory for tpu_custom_call.1']
    #allocation5 [shape = 's32[2]{0}', space=sflag, size = 0x8, scoped, tag = 'scoped memory for tpu_custom_call.1']
    #allocation6 [shape = 'u8[262144]{0}', space=vmem, size = 0x40000, scoped, tag = 'input window, operand 3, single buffered']
    #allocation7 [shape = 's32[1]{0}', space=sflag, size = 0x4, scoped, tag = 'scoped memory for tpu_custom_call.1']
    #allocation8 [shape = 'u8[65536]{0}', space=vmem, size = 0x10000, scoped, tag = 'input window, operand 4, single buffered']
    #allocation9 [shape = 'u8[131072]{0}', space=vmem, size = 0x20000, scoped, tag = 'input window, operand 5, single buffered']
    #allocation10 [shape = 's32[1]{0}', space=sflag, size = 0x4, scoped, tag = 'scoped memory for tpu_custom_call.1']
    #allocation11 [shape = 'u8[262144]{0}', space=vmem, size = 0x40000, scoped, tag = 'output window, operand 0']
    %12 = vsyncpa [#allocation4], 0
    %13 = vsyncpa [#allocation7], 0
    %14 = vsyncpa [#allocation10], 0
    %15 = vsyncpa [#allocation5], 0
    %s16 = scalar_lea.sflag [#allocation5], 1
    %17 = vsyncpa %s16, 0
    loop: start=0, step=1, limit=6
    $region2: #{tpu_custom_call.1} parent=1 // loop_pre_header
      _
    $region3: #{tpu_custom_call.1} parent=1 // loop_header
      %s19 = sphi 0, %s23
      %p20 = scmp.ge.s32.totalorder %s19, 6
      %s29 = sphi 0, %s31
      %s32 = sphi 0, %s29
      %s33 = sphi 0, %s32
      %s49 = sphi 0, %s33
      %s55 = sphi 0, %s57
      %s58 = sphi 0, %s55
      %s59 = sphi 0, %s58
      %s75 = sphi 0, %s59
      %s79 = sphi 0, %s79
      %s81 = sphi 0, %s79
      %s82 = sphi 0, %s81
      %s96 = sphi 0, %s82
      %s100 = sphi 0, %s100
      %s102 = sphi 0, %s100
      %s103 = sphi 0, %s102
      %s117 = sphi 0, %s103
      %s121 = sphi 0, %s121
      %s123 = sphi 0, %s121
      %s124 = sphi 0, %s123
      %s138 = sphi 0, %s124
      %s142 = sphi 0, %s142
      %s144 = sphi 0, %s142
      %s145 = sphi 0, %s144
      %s159 = sphi 0, %s145
      %s163 = sphi 0, %s163
      %s165 = sphi 0, %s163
      %s166 = sphi 0, %s165
      %s180 = sphi 0, %s166
      %s186 = sphi 0, %s188
      %s189 = sphi 0, %s186
      %s190 = sphi 0, %s189
      %s206 = sphi 0, %s190
    $region4: #{tpu_custom_call.1} parent=1 // loop_header_branch
      %22 = sbr.rel (%p20) target = $region8
    $region5: #{tpu_custom_call.1} parent=1 // loop_body
      %s24 = ssub.s32 %s19, 1
      %s25 = ssub.s32 %s19, 2
      %s26 = sadd.s32 %s19, 1
      %s27 = ssub.s32 %s19, %s26
      %p28 = scmp.eq.s32.totalorder %s27, 0
      %s30 = sadd.s32 %s29, 1
      %s31 = scalar_select %p28, %s29, %s30
      %p34 = pneg %p28
      %p35 = scmp.eq.s32.totalorder %s19, 3
      %p36 = por %p34, %p35
      %p37 = scmp.ne.s32.totalorder %s29, %s32
      %p38 = scmp.eq.s32.totalorder %s19, 0
      %p39 = por %p37, %p38
      %p40 = scmp.ne.s32.totalorder %s29, %s32
      %p41 = scmp.eq.s32.totalorder %s24, 3
      %p42 = por %p40, %p41
      %p43 = scmp.ne.s32.totalorder %s32, %s33
      %p44 = scmp.eq.s32.totalorder %s24, 0
      %p45 = por %p43, %p44
      %p46 = scmp.ne.s32.totalorder %s32, %s33
      %p47 = scmp.eq.s32.totalorder %s25, 3
      %p48 = por %p46, %p47
      %p50 = scmp.ne.s32.totalorder %s33, %s49
      %p51 = scmp.eq.s32.totalorder %s25, 0
      %p52 = por %p50, %p51
      %s53 = ssub.s32 %s19, %s26
      %p54 = scmp.eq.s32.totalorder %s53, 0
      %s56 = sadd.s32 %s55, 1
      %s57 = scalar_select %p54, %s55, %s56
      %p60 = pneg %p54
      %p61 = scmp.eq.s32.totalorder %s19, 3
      %p62 = por %p60, %p61
      %p63 = scmp.ne.s32.totalorder %s55, %s58
      %p64 = scmp.eq.s32.totalorder %s19, 0
      %p65 = por %p63, %p64
      %p66 = scmp.ne.s32.totalorder %s55, %s58
      %p67 = scmp.eq.s32.totalorder %s24, 3
      %p68 = por %p66, %p67
      %p69 = scmp.ne.s32.totalorder %s58, %s59
      %p70 = scmp.eq.s32.totalorder %s24, 0
      %p71 = por %p69, %p70
      %p72 = scmp.ne.s32.totalorder %s58, %s59
      %p73 = scmp.eq.s32.totalorder %s25, 3
      %p74 = por %p72, %p73
      %p76 = scmp.ne.s32.totalorder %s59, %s75
      %p77 = scmp.eq.s32.totalorder %s25, 0
      %p78 = por %p76, %p77
      %s80 = sadd.s32 %s79, 1
      %p83 = scmp.eq.s32.totalorder %s19, 3
      %p84 = scmp.ne.s32.totalorder %s79, %s81
      %p85 = scmp.eq.s32.totalorder %s19, 0
      %p86 = por %p84, %p85
      %p87 = scmp.ne.s32.totalorder %s79, %s81
      %p88 = scmp.eq.s32.totalorder %s24, 3
      %p89 = por %p87, %p88
      %p90 = scmp.ne.s32.totalorder %s81, %s82
      %p91 = scmp.eq.s32.totalorder %s24, 0
      %p92 = por %p90, %p91
      %p93 = scmp.ne.s32.totalorder %s81, %s82
      %p94 = scmp.eq.s32.totalorder %s25, 3
      %p95 = por %p93, %p94
      %p97 = scmp.ne.s32.totalorder %s82, %s96
      %p98 = scmp.eq.s32.totalorder %s25, 0
      %p99 = por %p97, %p98
      %s101 = sadd.s32 %s100, 1
      %p104 = scmp.eq.s32.totalorder %s19, 3
      %p105 = scmp.ne.s32.totalorder %s100, %s102
      %p106 = scmp.eq.s32.totalorder %s19, 0
      %p107 = por %p105, %p106
      %p108 = scmp.ne.s32.totalorder %s100, %s102
      %p109 = scmp.eq.s32.totalorder %s24, 3
      %p110 = por %p108, %p109
      %p111 = scmp.ne.s32.totalorder %s102, %s103
      %p112 = scmp.eq.s32.totalorder %s24, 0
      %p113 = por %p111, %p112
      %p114 = scmp.ne.s32.totalorder %s102, %s103
      %p115 = scmp.eq.s32.totalorder %s25, 3
      %p116 = por %p114, %p115
      %p118 = scmp.ne.s32.totalorder %s103, %s117
      %p119 = scmp.eq.s32.totalorder %s25, 0
      %p120 = por %p118, %p119
      %s122 = sadd.s32 %s121, 1
      %p125 = scmp.eq.s32.totalorder %s19, 3
      %p126 = scmp.ne.s32.totalorder %s121, %s123
      %p127 = scmp.eq.s32.totalorder %s19, 0
      %p128 = por %p126, %p127
      %p129 = scmp.ne.s32.totalorder %s121, %s123
      %p130 = scmp.eq.s32.totalorder %s24, 3
      %p131 = por %p129, %p130
      %p132 = scmp.ne.s32.totalorder %s123, %s124
      %p133 = scmp.eq.s32.totalorder %s24, 0
      %p134 = por %p132, %p133
      %p135 = scmp.ne.s32.totalorder %s123, %s124
      %p136 = scmp.eq.s32.totalorder %s25, 3
      %p137 = por %p135, %p136
      %p139 = scmp.ne.s32.totalorder %s124, %s138
      %p140 = scmp.eq.s32.totalorder %s25, 0
      %p141 = por %p139, %p140
      %s143 = sadd.s32 %s142, 1
      %p146 = scmp.eq.s32.totalorder %s19, 3
      %p147 = scmp.ne.s32.totalorder %s142, %s144
      %p148 = scmp.eq.s32.totalorder %s19, 0
      %p149 = por %p147, %p148
      %p150 = scmp.ne.s32.totalorder %s142, %s144
      %p151 = scmp.eq.s32.totalorder %s24, 3
      %p152 = por %p150, %p151
      %p153 = scmp.ne.s32.totalorder %s144, %s145
      %p154 = scmp.eq.s32.totalorder %s24, 0
      %p155 = por %p153, %p154
      %p156 = scmp.ne.s32.totalorder %s144, %s145
      %p157 = scmp.eq.s32.totalorder %s25, 3
      %p158 = por %p156, %p157
      %p160 = scmp.ne.s32.totalorder %s145, %s159
      %p161 = scmp.eq.s32.totalorder %s25, 0
      %p162 = por %p160, %p161
      %s164 = sadd.s32 %s163, 1
      %p167 = scmp.eq.s32.totalorder %s19, 3
      %p168 = scmp.ne.s32.totalorder %s163, %s165
      %p169 = scmp.eq.s32.totalorder %s19, 0
      %p170 = por %p168, %p169
      %p171 = scmp.ne.s32.totalorder %s163, %s165
      %p172 = scmp.eq.s32.totalorder %s24, 3
      %p173 = por %p171, %p172
      %p174 = scmp.ne.s32.totalorder %s165, %s166
      %p175 = scmp.eq.s32.totalorder %s24, 0
      %p176 = por %p174, %p175
      %p177 = scmp.ne.s32.totalorder %s165, %s166
      %p178 = scmp.eq.s32.totalorder %s25, 3
      %p179 = por %p177, %p178
      %p181 = scmp.ne.s32.totalorder %s166, %s180
      %p182 = scmp.eq.s32.totalorder %s25, 0
      %p183 = por %p181, %p182
      %s184 = ssub.s32 %s19, %s26
      %p185 = scmp.eq.s32.totalorder %s184, 0
      %s187 = sadd.s32 %s186, 1
      %s188 = scalar_select %p185, %s186, %s187
      %p191 = pneg %p185
      %p192 = scmp.eq.s32.totalorder %s19, 3
      %p193 = por %p191, %p192
      %p194 = scmp.ne.s32.totalorder %s186, %s189
      %p195 = scmp.eq.s32.totalorder %s19, 0
      %p196 = por %p194, %p195
      %p197 = scmp.ne.s32.totalorder %s186, %s189
      %p198 = scmp.eq.s32.totalorder %s24, 3
      %p199 = por %p197, %p198
      %p200 = scmp.ne.s32.totalorder %s189, %s190
      %p201 = scmp.eq.s32.totalorder %s24, 0
      %p202 = por %p200, %p201
      %p203 = scmp.ne.s32.totalorder %s189, %s190
      %p204 = scmp.eq.s32.totalorder %s25, 3
      %p205 = por %p203, %p204
      %p207 = scmp.ne.s32.totalorder %s190, %s206
      %p208 = scmp.eq.s32.totalorder %s25, 0
      %p209 = por %p207, %p208
      %p210 = scmp.le.s32.totalorder 1, %s19
      %p211 = scmp.lt.s32.totalorder %s19, 5
      %p212 = pnand %p210, %p211
      %p213 = pneg %p212
      // Predicated region
      $region9: #{tpu_custom_call.1} parent=5 // pred_check
        _
      $region10: #{tpu_custom_call.1} parent=5 // pred_check_branch
        %215 = sbr.rel (%p212) target = $region12
      $region11: #{tpu_custom_call.1} parent=5 // pred_region
        %s216 = ssub.s32 %s19, 1
        // Predicated region
        $region13: #{tpu_custom_call.1} parent=11 // pred_check
          %p217 = pneg %p92
        $region14: #{tpu_custom_call.1} parent=11 // pred_check_branch
          %219 = sbr.rel (%p217) target = $region16
        $region15: #{tpu_custom_call.1} parent=11 // pred_region
          %s221 = ssub.s32 4096, 4096
          %222 = vsyncadd [#allocation4], %s221
          %s223 = sshll.u32 [#allocation3], 4
          %s224 = int_to_ptr.vmem [resolvable:$true] %s223
          %229 = dma.hbm_to_vmem [thread:$0]  %s2, 4096, %s224, [#allocation4], 128, 128, 8
        $region16: #{tpu_custom_call.1} parent=11 // pred_fallthru
          _
        // Predicated region
        $region17: #{tpu_custom_call.1} parent=11 // pred_check
          %p230 = pneg %p113
        $region18: #{tpu_custom_call.1} parent=11 // pred_check_branch
          %232 = sbr.rel (%p230) target = $region20
        $region19: #{tpu_custom_call.1} parent=11 // pred_region
          %s234 = ssub.s32 8192, 8192
          %235 = vsyncadd [#allocation7], %s234
          %s236 = sshll.u32 [#allocation6], 4
          %s237 = int_to_ptr.vmem [resolvable:$true] %s236
          %242 = dma.hbm_to_vmem [thread:$0]  %s3, 8192, %s237, [#allocation7], 256, 256, 16
        $region20: #{tpu_custom_call.1} parent=11 // pred_fallthru
          _
        // Predicated region
        $region21: #{tpu_custom_call.1} parent=11 // pred_check
          %p243 = pneg %p134
        $region22: #{tpu_custom_call.1} parent=11 // pred_check_branch
          %245 = sbr.rel (%p243) target = $region24
        $region23: #{tpu_custom_call.1} parent=11 // pred_region
          %s247 = ssub.s32 2048, 2048
          %248 = vsyncadd [#allocation7], %s247
          %s249 = sshll.u32 [#allocation8], 4
          %s250 = int_to_ptr.vmem [resolvable:$true] %s249
          %255 = dma.hbm_to_vmem [thread:$0]  %s4, 2048, %s250, [#allocation7], 64, 64, 4
        $region24: #{tpu_custom_call.1} parent=11 // pred_fallthru
          _
        // Predicated region
        $region25: #{tpu_custom_call.1} parent=11 // pred_check
          %p256 = pneg %p155
        $region26: #{tpu_custom_call.1} parent=11 // pred_check_branch
          %258 = sbr.rel (%p256) target = $region28
        $region27: #{tpu_custom_call.1} parent=11 // pred_region
          %s260 = ssub.s32 4096, 4096
          %261 = vsyncadd [#allocation10], %s260
          %s262 = sshll.u32 [#allocation9], 4
          %s263 = int_to_ptr.vmem [resolvable:$true] %s262
          %268 = dma.hbm_to_vmem [thread:$0]  %s5, 4096, %s263, [#allocation10], 128, 128, 8
        $region28: #{tpu_custom_call.1} parent=11 // pred_fallthru
          _
        // Predicated region
        $region29: #{tpu_custom_call.1} parent=11 // pred_check
          %p269 = pneg %p176
        $region30: #{tpu_custom_call.1} parent=11 // pred_check_branch
          %271 = sbr.rel (%p269) target = $region32
        $region31: #{tpu_custom_call.1} parent=11 // pred_region
          _
        $region32: #{tpu_custom_call.1} parent=11 // pred_fallthru
          _
      $region12: #{tpu_custom_call.1} parent=5 // pred_fallthru
        _
      %p272 = scmp.lt.s32.totalorder %s19, 4
      // Predicated region
      $region33: #{tpu_custom_call.1} parent=5 // pred_check
        %p273 = pneg %p272
      $region34: #{tpu_custom_call.1} parent=5 // pred_check_branch
        %275 = sbr.rel (%p273) target = $region36
      $region35: #{tpu_custom_call.1} parent=5 // pred_region
        // Predicated region
        $region37: #{tpu_custom_call.1} parent=35 // pred_check
          %p276 = pneg %p39
        $region38: #{tpu_custom_call.1} parent=35 // pred_check_branch
          %278 = sbr.rel (%p276) target = $region40
        $region39: #{tpu_custom_call.1} parent=35 // pred_region
          %p279 = scmp.lt.s32.totalorder %s19, 3
          %s280 = scalar_select %p279, %s19, 3
          %s281 = smul.addr %s280, 16
          %s282 = smul.addr %s281, 8
          %s283 = scalar_lea.vmem %s0, %s282
        $region40: #{tpu_custom_call.1} parent=35 // pred_fallthru
          _
        // Predicated region
        $region41: #{tpu_custom_call.1} parent=35 // pred_check
          %p284 = pneg %p65
        $region42: #{tpu_custom_call.1} parent=35 // pred_check_branch
          %286 = sbr.rel (%p284) target = $region44
        $region43: #{tpu_custom_call.1} parent=35 // pred_region
          %p287 = scmp.lt.s32.totalorder %s19, 3
          %s288 = scalar_select %p287, %s19, 3
          %s289 = smul.addr %s288, 32
          %s290 = smul.addr %s289, 4
          %s291 = scalar_lea.vmem %s1, %s290
        $region44: #{tpu_custom_call.1} parent=35 // pred_fallthru
          _
      $region36: #{tpu_custom_call.1} parent=5 // pred_fallthru
        _
      %p292 = scmp.le.s32.totalorder 1, %s19
      %p293 = scmp.lt.s32.totalorder %s19, 5
      %p294 = pnand %p292, %p293
      %p295 = pneg %p294
      // Predicated region
      $region45: #{tpu_custom_call.1} parent=5 // pred_check
        _
      $region46: #{tpu_custom_call.1} parent=5 // pred_check_branch
        %297 = sbr.rel (%p294) target = $region48
      $region47: #{tpu_custom_call.1} parent=5 // pred_region
        %s298 = ssub.s32 %s19, 1
        // Predicated region
        $region49: #{tpu_custom_call.1} parent=47 // pred_check
          %p299 = pneg %p92
        $region50: #{tpu_custom_call.1} parent=47 // pred_check_branch
          %301 = sbr.rel (%p299) target = $region52
        $region51: #{tpu_custom_call.1} parent=47 // pred_region
          %302 = dma.done [#allocation4], 4096
        $region52: #{tpu_custom_call.1} parent=47 // pred_fallthru
          _
        // Predicated region
        $region53: #{tpu_custom_call.1} parent=47 // pred_check
          %p303 = pneg %p113
        $region54: #{tpu_custom_call.1} parent=47 // pred_check_branch
          %305 = sbr.rel (%p303) target = $region56
        $region55: #{tpu_custom_call.1} parent=47 // pred_region
          %306 = dma.done [#allocation7], 8192
        $region56: #{tpu_custom_call.1} parent=47 // pred_fallthru
          _
        // Predicated region
        $region57: #{tpu_custom_call.1} parent=47 // pred_check
          %p307 = pneg %p134
        $region58: #{tpu_custom_call.1} parent=47 // pred_check_branch
          %309 = sbr.rel (%p307) target = $region60
        $region59: #{tpu_custom_call.1} parent=47 // pred_region
          %310 = dma.done [#allocation7], 2048
        $region60: #{tpu_custom_call.1} parent=47 // pred_fallthru
          _
        // Predicated region
        $region61: #{tpu_custom_call.1} parent=47 // pred_check
          %p311 = pneg %p155
        $region62: #{tpu_custom_call.1} parent=47 // pred_check_branch
          %313 = sbr.rel (%p311) target = $region64
        $region63: #{tpu_custom_call.1} parent=47 // pred_region
          %314 = dma.done [#allocation10], 4096
        $region64: #{tpu_custom_call.1} parent=47 // pred_fallthru
          _
        %p315 = scmp.lt.s32.totalorder %s24, 3
        %s316 = scalar_select %p315, %s24, 3
        %s317 = smul.addr %s316, 16
        %s318 = smul.addr %s317, 8
        %s319 = scalar_lea.vmem %s0, %s318
        %p320 = pneg %p45
        %p321 = pneg %p42
        %p322 = scmp.lt.s32.totalorder %s24, 3
        %s323 = scalar_select %p322, %s24, 3
        %s324 = smul.addr %s323, 32
        %s325 = smul.addr %s324, 4
        %s326 = scalar_lea.vmem %s1, %s325
        %p327 = pneg %p71
        %p328 = pneg %p68
        %p329 = pneg %p92
        %p330 = pneg %p89
        %p331 = pneg %p113
        %p332 = pneg %p110
        %p333 = pneg %p134
        %p334 = pneg %p131
        %p335 = pneg %p155
        %p336 = pneg %p152
        %p337 = pneg %p176
        %p338 = pneg %p173
        %p339 = pneg %p202
        %p340 = pneg %p199
        %s341 = sand.u32 %s189, 1
        %s342 = scalar_lea.sflag [#allocation5], %s341
        %s343 = sand.u32 %s189, 1
        %s344 = smul.addr %s343, 256
        %s345 = scalar_lea.vmem [#allocation11], %s344
        %p346 = scmp.lt.s32.totalorder %s24, 3
        %s347 = scalar_select %p346, %s24, 3
        %s348 = smul.addr %s347, 16
        %s349 = smul.addr %s348, 8
        %s350 = scalar_lea.vmem %s0, %s349
        %p351 = scmp.lt.s32.totalorder %s24, 3
        %s352 = scalar_select %p351, %s24, 3
        %s353 = smul.addr %s352, 32
        %s354 = smul.addr %s353, 4
        %s355 = scalar_lea.vmem %s1, %s354
        %v357 = vld [vmem:[%s355] sm:$0xff]
        %v358 = vld [vmem:[%s355 + $0x8] sm:$0xff]
        %v359 = vld [vmem:[%s355 + $0x10] sm:$0xff]
        %v360 = vld [vmem:[%s355 + $0x18] sm:$0xff]
        %v361 = vld [vmem:[%s355 + $0x20] sm:$0xff]
        %v362 = vld [vmem:[%s355 + $0x28] sm:$0xff]
        %v363 = vld [vmem:[%s355 + $0x30] sm:$0xff]
        %v364 = vld [vmem:[%s355 + $0x38] sm:$0xff]
        %v365 = vld [vmem:[%s355 + $0x40] sm:$0xff]
        %v366 = vld [vmem:[%s355 + $0x48] sm:$0xff]
        %v367 = vld [vmem:[%s355 + $0x50] sm:$0xff]
        %v368 = vld [vmem:[%s355 + $0x58] sm:$0xff]
        %v369 = vld [vmem:[%s355 + $0x60] sm:$0xff]
        %v370 = vld [vmem:[%s355 + $0x68] sm:$0xff]
        %v371 = vld [vmem:[%s355 + $0x70] sm:$0xff]
        %v372 = vld [vmem:[%s355 + $0x78] sm:$0xff]
        %v373 = vld [vmem:[%s350] sm:$0xff]
        %v374 = vld [vmem:[%s350 + $0x8] sm:$0xff]
        %v375 = vld [vmem:[%s350 + $0x10] sm:$0xff]
        %v376 = vld [vmem:[%s350 + $0x18] sm:$0xff]
        %v377 = vld [vmem:[%s350 + $0x20] sm:$0xff]
        %v378 = vld [vmem:[%s350 + $0x28] sm:$0xff]
        %v379 = vld [vmem:[%s350 + $0x30] sm:$0xff]
        %v380 = vld [vmem:[%s350 + $0x38] sm:$0xff]
        %v381 = vld [vmem:[%s350 + $0x40] sm:$0xff]
        %v382 = vld [vmem:[%s350 + $0x48] sm:$0xff]
        %v383 = vld [vmem:[%s350 + $0x50] sm:$0xff]
        %v384 = vld [vmem:[%s350 + $0x58] sm:$0xff]
        %v385 = vld [vmem:[%s350 + $0x60] sm:$0xff]
        %v386 = vld [vmem:[%s350 + $0x68] sm:$0xff]
        %v387 = vld [vmem:[%s350 + $0x70] sm:$0xff]
        %v388 = vld [vmem:[%s350 + $0x78] sm:$0xff]
        %vm389 = vcmp.ne.s32.totalorder %v373, 0
        %vm390 = vcmp.ne.s32.totalorder %v374, 0
        %vm391 = vcmp.ne.s32.totalorder %v375, 0
        %vm392 = vcmp.ne.s32.totalorder %v376, 0
        %vm393 = vcmp.ne.s32.totalorder %v377, 0
        %vm394 = vcmp.ne.s32.totalorder %v378, 0
        %vm395 = vcmp.ne.s32.totalorder %v379, 0
        %vm396 = vcmp.ne.s32.totalorder %v380, 0
        %vm397 = vcmp.ne.s32.totalorder %v381, 0
        %vm398 = vcmp.ne.s32.totalorder %v382, 0
        %vm399 = vcmp.ne.s32.totalorder %v383, 0
        %vm400 = vcmp.ne.s32.totalorder %v384, 0
        %vm401 = vcmp.ne.s32.totalorder %v385, 0
        %vm402 = vcmp.ne.s32.totalorder %v386, 0
        %vm403 = vcmp.ne.s32.totalorder %v387, 0
        %vm404 = vcmp.ne.s32.totalorder %v388, 0
        %v405 = vsel %vm389, 1, 0
        %v406 = vsel %vm390, 1, 0
        %v407 = vsel %vm391, 1, 0
        %v408 = vsel %vm392, 1, 0
        %v409 = vsel %vm393, 1, 0
        %v410 = vsel %vm394, 1, 0
        %v411 = vsel %vm395, 1, 0
        %v412 = vsel %vm396, 1, 0
        %v413 = vsel %vm397, 1, 0
        %v414 = vsel %vm398, 1, 0
        %v415 = vsel %vm399, 1, 0
        %v416 = vsel %vm400, 1, 0
        %v417 = vsel %vm401, 1, 0
        %v418 = vsel %vm402, 1, 0
        %v419 = vsel %vm403, 1, 0
        %v420 = vsel %vm404, 1, 0
        %421 = vset.pattern.permute.xlu0 0
        %422 = vperm.xlu0 %421, %v405
        %v423 = vpop.permute.xlu0 %422
        %424 = vset.pattern.permute.xlu0 0
        %425 = vperm.xlu0 %424, %v406
        %v426 = vpop.permute.xlu0 %425
        %427 = vset.pattern.permute.xlu0 0
        %428 = vperm.xlu0 %427, %v407
        %v429 = vpop.permute.xlu0 %428
        %430 = vset.pattern.permute.xlu0 0
        %431 = vperm.xlu0 %430, %v408
        %v432 = vpop.permute.xlu0 %431
        %433 = vset.pattern.permute.xlu0 0
        %434 = vperm.xlu0 %433, %v409
        %v435 = vpop.permute.xlu0 %434
        %436 = vset.pattern.permute.xlu0 0
        %437 = vperm.xlu0 %436, %v410
        %v438 = vpop.permute.xlu0 %437
        %439 = vset.pattern.permute.xlu0 0
        %440 = vperm.xlu0 %439, %v411
        %v441 = vpop.permute.xlu0 %440
        %442 = vset.pattern.permute.xlu0 0
        %443 = vperm.xlu0 %442, %v412
        %v444 = vpop.permute.xlu0 %443
        %445 = vset.pattern.permute.xlu0 0
        %446 = vperm.xlu0 %445, %v413
        %v447 = vpop.permute.xlu0 %446
        %448 = vset.pattern.permute.xlu0 0
        %449 = vperm.xlu0 %448, %v414
        %v450 = vpop.permute.xlu0 %449
        %451 = vset.pattern.permute.xlu0 0
        %452 = vperm.xlu0 %451, %v415
        %v453 = vpop.permute.xlu0 %452
        %454 = vset.pattern.permute.xlu0 0
        %455 = vperm.xlu0 %454, %v416
        %v456 = vpop.permute.xlu0 %455
        %457 = vset.pattern.permute.xlu0 0
        %458 = vperm.xlu0 %457, %v417
        %v459 = vpop.permute.xlu0 %458
        %460 = vset.pattern.permute.xlu0 0
        %461 = vperm.xlu0 %460, %v418
        %v462 = vpop.permute.xlu0 %461
        %463 = vset.pattern.permute.xlu0 0
        %464 = vperm.xlu0 %463, %v419
        %v465 = vpop.permute.xlu0 %464
        %466 = vset.pattern.permute.xlu0 0
        %467 = vperm.xlu0 %466, %v420
        %v468 = vpop.permute.xlu0 %467
        %vm469 = vcmp.eq.s32.totalorder %v423, 1
        %vm470 = vcmp.eq.s32.totalorder %v426, 1
        %vm471 = vcmp.eq.s32.totalorder %v429, 1
        %vm472 = vcmp.eq.s32.totalorder %v432, 1
        %vm473 = vcmp.eq.s32.totalorder %v435, 1
        %vm474 = vcmp.eq.s32.totalorder %v438, 1
        %vm475 = vcmp.eq.s32.totalorder %v441, 1
        %vm476 = vcmp.eq.s32.totalorder %v444, 1
        %vm477 = vcmp.eq.s32.totalorder %v447, 1
        %vm478 = vcmp.eq.s32.totalorder %v450, 1
        %vm479 = vcmp.eq.s32.totalorder %v453, 1
        %vm480 = vcmp.eq.s32.totalorder %v456, 1
        %vm481 = vcmp.eq.s32.totalorder %v459, 1
        %vm482 = vcmp.eq.s32.totalorder %v462, 1
        %vm483 = vcmp.eq.s32.totalorder %v465, 1
        %vm484 = vcmp.eq.s32.totalorder %v468, 1
        %vm485 = vmpackc.low %vm469, %vm469
        %vm486 = vmpackc.low %vm470, %vm470
        %vm487 = vmpackc.low %vm471, %vm471
        %vm488 = vmpackc.low %vm472, %vm472
        %vm489 = vmpackc.low %vm473, %vm473
        %vm490 = vmpackc.low %vm474, %vm474
        %vm491 = vmpackc.low %vm475, %vm475
        %vm492 = vmpackc.low %vm476, %vm476
        %vm493 = vmpackc.low %vm477, %vm477
        %vm494 = vmpackc.low %vm478, %vm478
        %vm495 = vmpackc.low %vm479, %vm479
        %vm496 = vmpackc.low %vm480, %vm480
        %vm497 = vmpackc.low %vm481, %vm481
        %vm498 = vmpackc.low %vm482, %vm482
        %vm499 = vmpackc.low %vm483, %vm483
        %vm500 = vmpackc.low %vm484, %vm484
        %v501 = vsel %vm485, 0, %v357
        %v502 = vsel %vm486, 0, %v358
        %v503 = vsel %vm487, 0, %v359
        %v504 = vsel %vm488, 0, %v360
        %v505 = vsel %vm489, 0, %v361
        %v506 = vsel %vm490, 0, %v362
        %v507 = vsel %vm491, 0, %v363
        %v508 = vsel %vm492, 0, %v364
        %v509 = vsel %vm493, 0, %v365
        %v510 = vsel %vm494, 0, %v366
        %v511 = vsel %vm495, 0, %v367
        %v512 = vsel %vm496, 0, %v368
        %v513 = vsel %vm497, 0, %v369
        %v514 = vsel %vm498, 0, %v370
        %v515 = vsel %vm499, 0, %v371
        %v516 = vsel %vm500, 0, %v372
        %v517 = vld [vmem:[#allocation3] sm:$0xff]
        %v518 = vld [vmem:[#allocation3 + $0x8] sm:$0xff]
        %v519 = vld [vmem:[#allocation3 + $0x10] sm:$0xff]
        %v520 = vld [vmem:[#allocation3 + $0x18] sm:$0xff]
        %v521 = vld [vmem:[#allocation3 + $0x20] sm:$0xff]
        %v522 = vld [vmem:[#allocation3 + $0x28] sm:$0xff]
        %v523 = vld [vmem:[#allocation3 + $0x30] sm:$0xff]
        %v524 = vld [vmem:[#allocation3 + $0x38] sm:$0xff]
        %v525 = vld [vmem:[#allocation3 + $0x40] sm:$0xff]
        %v526 = vld [vmem:[#allocation3 + $0x48] sm:$0xff]
        %v527 = vld [vmem:[#allocation3 + $0x50] sm:$0xff]
        %v528 = vld [vmem:[#allocation3 + $0x58] sm:$0xff]
        %v529 = vld [vmem:[#allocation3 + $0x60] sm:$0xff]
        %v530 = vld [vmem:[#allocation3 + $0x68] sm:$0xff]
        %v531 = vld [vmem:[#allocation3 + $0x70] sm:$0xff]
        %v532 = vld [vmem:[#allocation3 + $0x78] sm:$0xff]
        %v533 = vld [vmem:[#allocation3 + $0x80] sm:$0xff]
        %v534 = vld [vmem:[#allocation3 + $0x88] sm:$0xff]
        %v535 = vld [vmem:[#allocation3 + $0x90] sm:$0xff]
        %v536 = vld [vmem:[#allocation3 + $0x98] sm:$0xff]
        %v537 = vld [vmem:[#allocation3 + $0xa0] sm:$0xff]
        %v538 = vld [vmem:[#allocation3 + $0xa8] sm:$0xff]
        %v539 = vld [vmem:[#allocation3 + $0xb0] sm:$0xff]
        %v540 = vld [vmem:[#allocation3 + $0xb8] sm:$0xff]
        %v541 = vld [vmem:[#allocation3 + $0xc0] sm:$0xff]
        %v542 = vld [vmem:[#allocation3 + $0xc8] sm:$0xff]
        %v543 = vld [vmem:[#allocation3 + $0xd0] sm:$0xff]
        %v544 = vld [vmem:[#allocation3 + $0xd8] sm:$0xff]
        %v545 = vld [vmem:[#allocation3 + $0xe0] sm:$0xff]
        %v546 = vld [vmem:[#allocation3 + $0xe8] sm:$0xff]
        %v547 = vld [vmem:[#allocation3 + $0xf0] sm:$0xff]
        %v548 = vld [vmem:[#allocation3 + $0xf8] sm:$0xff]
        %v565 = vunpack.c.l.b16 %v501
        %v566 = vunpack.c.h.b16 %v501
        %v567 = vunpack.c.l.b16 %v502
        %v568 = vunpack.c.h.b16 %v502
        %v569 = vunpack.c.l.b16 %v503
        %v570 = vunpack.c.h.b16 %v503
        %v571 = vunpack.c.l.b16 %v504
        %v572 = vunpack.c.h.b16 %v504
        %v573 = vunpack.c.l.b16 %v505
        %v574 = vunpack.c.h.b16 %v505
        %v575 = vunpack.c.l.b16 %v506
        %v576 = vunpack.c.h.b16 %v506
        %v577 = vunpack.c.l.b16 %v507
        %v578 = vunpack.c.h.b16 %v507
        %v579 = vunpack.c.l.b16 %v508
        %v580 = vunpack.c.h.b16 %v508
        %v581 = vunpack.c.l.b16 %v509
        %v582 = vunpack.c.h.b16 %v509
        %v583 = vunpack.c.l.b16 %v510
        %v584 = vunpack.c.h.b16 %v510
        %v585 = vunpack.c.l.b16 %v511
        %v586 = vunpack.c.h.b16 %v511
        %v587 = vunpack.c.l.b16 %v512
        %v588 = vunpack.c.h.b16 %v512
        %v589 = vunpack.c.l.b16 %v513
        %v590 = vunpack.c.h.b16 %v513
        %v591 = vunpack.c.l.b16 %v514
        %v592 = vunpack.c.h.b16 %v514
        %v593 = vunpack.c.l.b16 %v515
        %v594 = vunpack.c.h.b16 %v515
        %v595 = vunpack.c.l.b16 %v516
        %v596 = vunpack.c.h.b16 %v516
        %v597 = vpack.c.b16 %v567, %v565
        %v598 = vpack.c.b16 %v568, %v566
        %v599 = vpack.c.b16 %v571, %v569
        %v600 = vpack.c.b16 %v572, %v570
        %v601 = vpack.c.b16 %v575, %v573
        %v602 = vpack.c.b16 %v576, %v574
        %v603 = vpack.c.b16 %v579, %v577
        %v604 = vpack.c.b16 %v580, %v578
        %v605 = vpack.c.b16 %v583, %v581
        %v606 = vpack.c.b16 %v584, %v582
        %v607 = vpack.c.b16 %v587, %v585
        %v608 = vpack.c.b16 %v588, %v586
        %v609 = vpack.c.b16 %v591, %v589
        %v610 = vpack.c.b16 %v592, %v590
        %v611 = vpack.c.b16 %v595, %v593
        %v612 = vpack.c.b16 %v596, %v594
        %v661 = vunpack.c.l.b16 %v517
        %v662 = vunpack.c.h.b16 %v517
        %v663 = vunpack.c.l.b16 %v518
        %v664 = vunpack.c.h.b16 %v518
        %v665 = vunpack.c.l.b16 %v519
        %v666 = vunpack.c.h.b16 %v519
        %v667 = vunpack.c.l.b16 %v520
        %v668 = vunpack.c.h.b16 %v520
        %v669 = vunpack.c.l.b16 %v521
        %v670 = vunpack.c.h.b16 %v521
        %v671 = vunpack.c.l.b16 %v522
        %v672 = vunpack.c.h.b16 %v522
        %v673 = vunpack.c.l.b16 %v523
        %v674 = vunpack.c.h.b16 %v523
        %v675 = vunpack.c.l.b16 %v524
        %v676 = vunpack.c.h.b16 %v524
        %v677 = vunpack.c.l.b16 %v525
        %v678 = vunpack.c.h.b16 %v525
        %v679 = vunpack.c.l.b16 %v526
        %v680 = vunpack.c.h.b16 %v526
        %v681 = vunpack.c.l.b16 %v527
        %v682 = vunpack.c.h.b16 %v527
        %v683 = vunpack.c.l.b16 %v528
        %v684 = vunpack.c.h.b16 %v528
        %v685 = vunpack.c.l.b16 %v529
        %v686 = vunpack.c.h.b16 %v529
        %v687 = vunpack.c.l.b16 %v530
        %v688 = vunpack.c.h.b16 %v530
        %v689 = vunpack.c.l.b16 %v531
        %v690 = vunpack.c.h.b16 %v531
        %v691 = vunpack.c.l.b16 %v532
        %v692 = vunpack.c.h.b16 %v532
        %v693 = vunpack.c.l.b16 %v533
        %v694 = vunpack.c.h.b16 %v533
        %v695 = vunpack.c.l.b16 %v534
        %v696 = vunpack.c.h.b16 %v534
        %v697 = vunpack.c.l.b16 %v535
        %v698 = vunpack.c.h.b16 %v535
        %v699 = vunpack.c.l.b16 %v536
        %v700 = vunpack.c.h.b16 %v536
        %v701 = vunpack.c.l.b16 %v537
        %v702 = vunpack.c.h.b16 %v537
        %v703 = vunpack.c.l.b16 %v538
        %v704 = vunpack.c.h.b16 %v538
        %v705 = vunpack.c.l.b16 %v539
        %v706 = vunpack.c.h.b16 %v539
        %v707 = vunpack.c.l.b16 %v540
        %v708 = vunpack.c.h.b16 %v540
        %v709 = vunpack.c.l.b16 %v541
        %v710 = vunpack.c.h.b16 %v541
        %v711 = vunpack.c.l.b16 %v542
        %v712 = vunpack.c.h.b16 %v542
        %v713 = vunpack.c.l.b16 %v543
        %v714 = vunpack.c.h.b16 %v543
        %v715 = vunpack.c.l.b16 %v544
        %v716 = vunpack.c.h.b16 %v544
        %v717 = vunpack.c.l.b16 %v545
        %v718 = vunpack.c.h.b16 %v545
        %v719 = vunpack.c.l.b16 %v546
        %v720 = vunpack.c.h.b16 %v546
        %v721 = vunpack.c.l.b16 %v547
        %v722 = vunpack.c.h.b16 %v547
        %v723 = vunpack.c.l.b16 %v548
        %v724 = vunpack.c.h.b16 %v548
        %v725 = vpack.c.b16 %v663, %v661
        %v726 = vpack.c.b16 %v664, %v662
        %v727 = vpack.c.b16 %v667, %v665
        %v728 = vpack.c.b16 %v668, %v666
        %v729 = vpack.c.b16 %v671, %v669
        %v730 = vpack.c.b16 %v672, %v670
        %v731 = vpack.c.b16 %v675, %v673
        %v732 = vpack.c.b16 %v676, %v674
        %v733 = vpack.c.b16 %v679, %v677
        %v734 = vpack.c.b16 %v680, %v678
        %v735 = vpack.c.b16 %v683, %v681
        %v736 = vpack.c.b16 %v684, %v682
        %v737 = vpack.c.b16 %v687, %v685
        %v738 = vpack.c.b16 %v688, %v686
        %v739 = vpack.c.b16 %v691, %v689
        %v740 = vpack.c.b16 %v692, %v690
        %v741 = vpack.c.b16 %v695, %v693
        %v742 = vpack.c.b16 %v696, %v694
        %v743 = vpack.c.b16 %v699, %v697
        %v744 = vpack.c.b16 %v700, %v698
        %v745 = vpack.c.b16 %v703, %v701
        %v746 = vpack.c.b16 %v704, %v702
        %v747 = vpack.c.b16 %v707, %v705
        %v748 = vpack.c.b16 %v708, %v706
        %v749 = vpack.c.b16 %v711, %v709
        %v750 = vpack.c.b16 %v712, %v710
        %v751 = vpack.c.b16 %v715, %v713
        %v752 = vpack.c.b16 %v716, %v714
        %v753 = vpack.c.b16 %v719, %v717
        %v754 = vpack.c.b16 %v720, %v718
        %v755 = vpack.c.b16 %v723, %v721
        %v756 = vpack.c.b16 %v724, %v722
        %789 = vmatprep.subr.bf16.mxu0 %v740
        %790 = vmatpush1.bf16.msra.mxu0 %v739
        %791 = vmatprep.subr.bf16.mxu0 %v738
        %792 = vmatpush1.bf16.msra.mxu0 %v737
        %793 = vmatprep.subr.bf16.mxu0 %v736
        %794 = vmatpush1.bf16.msra.mxu0 %v735
        %795 = vmatprep.subr.bf16.mxu0 %v734
        %796 = vmatpush1.bf16.msra.mxu0 %v733
        %797 = vmatprep.subr.bf16.mxu0 %v732
        %798 = vmatpush1.bf16.msra.mxu0 %v731
        %799 = vmatprep.subr.bf16.mxu0 %v730
        %800 = vmatpush1.bf16.msra.mxu0 %v729
        %801 = vmatprep.subr.bf16.mxu0 %v728
        %802 = vmatpush1.bf16.msra.mxu0 %v727
        %803 = vmatprep.subr.bf16.mxu0 %v726
        %804 = vmatpush1.bf16.msra.mxu0 %v725
        %805 = vmatprep.subr.bf16.mxu0 %v756
        %806 = vmatpush2.bf16.msra.mxu0 %v755
        %807 = vmatprep.subr.bf16.mxu0 %v754
        %808 = vmatpush2.bf16.msra.mxu0 %v753
        %809 = vmatprep.subr.bf16.mxu0 %v752
        %810 = vmatpush2.bf16.msra.mxu0 %v751
        %811 = vmatprep.subr.bf16.mxu0 %v750
        %812 = vmatpush2.bf16.msra.mxu0 %v749
        %813 = vmatprep.subr.bf16.mxu0 %v748
        %814 = vmatpush2.bf16.msra.mxu0 %v747
        %815 = vmatprep.subr.bf16.mxu0 %v746
        %816 = vmatpush2.bf16.msra.mxu0 %v745
        %817 = vmatprep.subr.bf16.mxu0 %v744
        %818 = vmatpush2.bf16.msra.mxu0 %v743
        %819 = vmatprep.subr.bf16.mxu0 %v742
        %820 = vmatpush2.bf16.msra.mxu0 %v741
        %821 = vmatprep.mubr.bf16.mxu0 %v598
        %822 = vmatmul.mubr.bf16.gmra.mxu0 %v597
        %v823 = vpop.f32.mrf.mxu0
        %v824 = vadd.f32 0.0, %v823
        %v825 = vpop.f32.mrf.mxu0
        %v826 = vadd.f32 0.0, %v825
        %v827 = vpop.f32.mrf.mxu0
        %v828 = vadd.f32 0.0, %v827
        %v829 = vpop.f32.mrf.mxu0
        %v830 = vadd.f32 0.0, %v829
        %831 = vmatprep.mubr.bf16.mxu0 %v600
        %832 = vmatmul.mubr.bf16.gmra.mxu0 %v599
        %v833 = vpop.f32.mrf.mxu0
        %v834 = vadd.f32 0.0, %v833
        %v835 = vpop.f32.mrf.mxu0
        %v836 = vadd.f32 0.0, %v835
        %v837 = vpop.f32.mrf.mxu0
        %v838 = vadd.f32 0.0, %v837
        %v839 = vpop.f32.mrf.mxu0
        %v840 = vadd.f32 0.0, %v839
        %841 = vmatprep.mubr.bf16.mxu0 %v602
        %842 = vmatmul.mubr.bf16.gmra.mxu0 %v601
        %v843 = vpop.f32.mrf.mxu0
        %v844 = vadd.f32 0.0, %v843
        %v845 = vpop.f32.mrf.mxu0
        %v846 = vadd.f32 0.0, %v845
        %v847 = vpop.f32.mrf.mxu0
        %v848 = vadd.f32 0.0, %v847
        %v849 = vpop.f32.mrf.mxu0
        %v850 = vadd.f32 0.0, %v849
        %851 = vmatprep.mubr.bf16.mxu0 %v604
        %852 = vmatmul.mubr.bf16.gmra.mxu0 %v603
        %v853 = vpop.f32.mrf.mxu0
        %v854 = vadd.f32 0.0, %v853
        %v855 = vpop.f32.mrf.mxu0
        %v856 = vadd.f32 0.0, %v855
        %v857 = vpop.f32.mrf.mxu0
        %v858 = vadd.f32 0.0, %v857
        %v859 = vpop.f32.mrf.mxu0
        %v860 = vadd.f32 0.0, %v859
        %861 = vmatprep.mubr.bf16.mxu0 %v606
        %862 = vmatmul.mubr.bf16.gmra.mxu0 %v605
        %v863 = vpop.f32.mrf.mxu0
        %v864 = vadd.f32 0.0, %v863
        %v865 = vpop.f32.mrf.mxu0
        %v866 = vadd.f32 0.0, %v865
        %v867 = vpop.f32.mrf.mxu0
        %v868 = vadd.f32 0.0, %v867
        %v869 = vpop.f32.mrf.mxu0
        %v870 = vadd.f32 0.0, %v869
        %871 = vmatprep.mubr.bf16.mxu0 %v608
        %872 = vmatmul.mubr.bf16.gmra.mxu0 %v607
        %v873 = vpop.f32.mrf.mxu0
        %v874 = vadd.f32 0.0, %v873
        %v875 = vpop.f32.mrf.mxu0
        %v876 = vadd.f32 0.0, %v875
        %v877 = vpop.f32.mrf.mxu0
        %v878 = vadd.f32 0.0, %v877
        %v879 = vpop.f32.mrf.mxu0
        %v880 = vadd.f32 0.0, %v879
        %881 = vmatprep.mubr.bf16.mxu0 %v610
        %882 = vmatmul.mubr.bf16.gmra.mxu0 %v609
        %v883 = vpop.f32.mrf.mxu0
        %v884 = vadd.f32 0.0, %v883
        %v885 = vpop.f32.mrf.mxu0
        %v886 = vadd.f32 0.0, %v885
        %v887 = vpop.f32.mrf.mxu0
        %v888 = vadd.f32 0.0, %v887
        %v889 = vpop.f32.mrf.mxu0
        %v890 = vadd.f32 0.0, %v889
        %891 = vmatprep.mubr.bf16.mxu0 %v612
        %892 = vmatmul.mubr.bf16.gmra.mxu0 %v611
        %v893 = vpop.f32.mrf.mxu0
        %v894 = vadd.f32 0.0, %v893
        %v895 = vpop.f32.mrf.mxu0
        %v896 = vadd.f32 0.0, %v895
        %v897 = vpop.f32.mrf.mxu0
        %v898 = vadd.f32 0.0, %v897
        %v899 = vpop.f32.mrf.mxu0
        %v900 = vadd.f32 0.0, %v899
        %901 = vdwg.mxu0
        %v902 = vpack.c.bf16 %v828, %v824
        %v903 = vpack.c.bf16 %v830, %v826
        %v904 = vpack.c.bf16 %v838, %v834
        %v905 = vpack.c.bf16 %v840, %v836
        %v906 = vpack.c.bf16 %v848, %v844
        %v907 = vpack.c.bf16 %v850, %v846
        %v908 = vpack.c.bf16 %v858, %v854
        %v909 = vpack.c.bf16 %v860, %v856
        %v910 = vpack.c.bf16 %v868, %v864
        %v911 = vpack.c.bf16 %v870, %v866
        %v912 = vpack.c.bf16 %v878, %v874
        %v913 = vpack.c.bf16 %v880, %v876
        %v914 = vpack.c.bf16 %v888, %v884
        %v915 = vpack.c.bf16 %v890, %v886
        %v916 = vpack.c.bf16 %v898, %v894
        %v917 = vpack.c.bf16 %v900, %v896
        %v918 = vld [vmem:[#allocation8] sm:$0xf]
        %v919 = vld [vmem:[#allocation8 + $0x4] sm:$0xf]
        %v920 = vld [vmem:[#allocation8 + $0x8] sm:$0xf]
        %v921 = vld [vmem:[#allocation8 + $0xc] sm:$0xf]
        %v922 = vld [vmem:[#allocation8 + $0x10] sm:$0xf]
        %v923 = vld [vmem:[#allocation8 + $0x14] sm:$0xf]
        %v924 = vld [vmem:[#allocation8 + $0x18] sm:$0xf]
        %v925 = vld [vmem:[#allocation8 + $0x1c] sm:$0xf]
        %v926 = vld [vmem:[#allocation8 + $0x20] sm:$0xf]
        %v927 = vld [vmem:[#allocation8 + $0x24] sm:$0xf]
        %v928 = vld [vmem:[#allocation8 + $0x28] sm:$0xf]
        %v929 = vld [vmem:[#allocation8 + $0x2c] sm:$0xf]
        %v930 = vld [vmem:[#allocation8 + $0x30] sm:$0xf]
        %v931 = vld [vmem:[#allocation8 + $0x34] sm:$0xf]
        %v932 = vld [vmem:[#allocation8 + $0x38] sm:$0xf]
        %v933 = vld [vmem:[#allocation8 + $0x3c] sm:$0xf]
        %v934 = vld [vmem:[#allocation8 + $0x40] sm:$0xf]
        %v935 = vld [vmem:[#allocation8 + $0x44] sm:$0xf]
        %v936 = vld [vmem:[#allocation8 + $0x48] sm:$0xf]
        %v937 = vld [vmem:[#allocation8 + $0x4c] sm:$0xf]
        %v938 = vld [vmem:[#allocation8 + $0x50] sm:$0xf]
        %v939 = vld [vmem:[#allocation8 + $0x54] sm:$0xf]
        %v940 = vld [vmem:[#allocation8 + $0x58] sm:$0xf]
        %v941 = vld [vmem:[#allocation8 + $0x5c] sm:$0xf]
        %v942 = vld [vmem:[#allocation8 + $0x60] sm:$0xf]
        %v943 = vld [vmem:[#allocation8 + $0x64] sm:$0xf]
        %v944 = vld [vmem:[#allocation8 + $0x68] sm:$0xf]
        %v945 = vld [vmem:[#allocation8 + $0x6c] sm:$0xf]
        %v946 = vld [vmem:[#allocation8 + $0x70] sm:$0xf]
        %v947 = vld [vmem:[#allocation8 + $0x74] sm:$0xf]
        %v948 = vld [vmem:[#allocation8 + $0x78] sm:$0xf]
        %v949 = vld [vmem:[#allocation8 + $0x7c] sm:$0xf]
        %v982 = vunpack.c.l.b16 %v918
        %v983 = vunpack.c.l.b16 %v919
        %v984 = vunpack.c.l.b16 %v920
        %v985 = vunpack.c.l.b16 %v921
        %v986 = vunpack.c.l.b16 %v922
        %v987 = vunpack.c.l.b16 %v923
        %v988 = vunpack.c.l.b16 %v924
        %v989 = vunpack.c.l.b16 %v925
        %v990 = vunpack.c.l.b16 %v926
        %v991 = vunpack.c.l.b16 %v927
        %v992 = vunpack.c.l.b16 %v928
        %v993 = vunpack.c.l.b16 %v929
        %v994 = vunpack.c.l.b16 %v930
        %v995 = vunpack.c.l.b16 %v931
        %v996 = vunpack.c.l.b16 %v932
        %v997 = vunpack.c.l.b16 %v933
        %v998 = vunpack.c.l.b16 %v934
        %v999 = vunpack.c.l.b16 %v935
        %v1000 = vunpack.c.l.b16 %v936
        %v1001 = vunpack.c.l.b16 %v937
        %v1002 = vunpack.c.l.b16 %v938
        %v1003 = vunpack.c.l.b16 %v939
        %v1004 = vunpack.c.l.b16 %v940
        %v1005 = vunpack.c.l.b16 %v941
        %v1006 = vunpack.c.l.b16 %v942
        %v1007 = vunpack.c.l.b16 %v943
        %v1008 = vunpack.c.l.b16 %v944
        %v1009 = vunpack.c.l.b16 %v945
        %v1010 = vunpack.c.l.b16 %v946
        %v1011 = vunpack.c.l.b16 %v947
        %v1012 = vunpack.c.l.b16 %v948
        %v1013 = vunpack.c.l.b16 %v949
        %v1014 = vpack.c.b16 %v983, %v982
        %v1015 = vpack.c.b16 %v985, %v984
        %v1016 = vpack.c.b16 %v987, %v986
        %v1017 = vpack.c.b16 %v989, %v988
        %v1018 = vpack.c.b16 %v991, %v990
        %v1019 = vpack.c.b16 %v993, %v992
        %v1020 = vpack.c.b16 %v995, %v994
        %v1021 = vpack.c.b16 %v997, %v996
        %v1022 = vpack.c.b16 %v999, %v998
        %v1023 = vpack.c.b16 %v1001, %v1000
        %v1024 = vpack.c.b16 %v1003, %v1002
        %v1025 = vpack.c.b16 %v1005, %v1004
        %v1026 = vpack.c.b16 %v1007, %v1006
        %v1027 = vpack.c.b16 %v1009, %v1008
        %v1028 = vpack.c.b16 %v1011, %v1010
        %v1029 = vpack.c.b16 %v1013, %v1012
        %1046 = vmatprep.subr.bf16.mxu0 %v612
        %1047 = vmatpush1.bf16.msra.mxu0 %v611
        %1048 = vmatprep.subr.bf16.mxu0 %v610
        %1049 = vmatpush1.bf16.msra.mxu0 %v609
        %1050 = vmatprep.subr.bf16.mxu0 %v608
        %1051 = vmatpush1.bf16.msra.mxu0 %v607
        %1052 = vmatprep.subr.bf16.mxu0 %v606
        %1053 = vmatpush1.bf16.msra.mxu0 %v605
        %1054 = vmatprep.subr.bf16.mxu0 %v604
        %1055 = vmatpush1.bf16.msra.mxu0 %v603
        %1056 = vmatprep.subr.bf16.mxu0 %v602
        %1057 = vmatpush1.bf16.msra.mxu0 %v601
        %1058 = vmatprep.subr.bf16.mxu0 %v600
        %1059 = vmatpush1.bf16.msra.mxu0 %v599
        %1060 = vmatprep.subr.bf16.mxu0 %v598
        %1061 = vmatpush1.bf16.msra.mxu0 %v597
        %1062 = vmatprep.subr.bf16.mxu0 0
        %1063 = vmatpush2.bf16.msra.mxu0 0
        %1064 = vmatprep.subr.bf16.mxu0 0
        %1065 = vmatpush2.bf16.msra.mxu0 0
        %1066 = vmatprep.subr.bf16.mxu0 0
        %1067 = vmatpush2.bf16.msra.mxu0 0
        %1068 = vmatprep.subr.bf16.mxu0 0
        %1069 = vmatpush2.bf16.msra.mxu0 0
        %1070 = vmatprep.subr.bf16.mxu0 0
        %1071 = vmatpush2.bf16.msra.mxu0 0
        %1072 = vmatprep.subr.bf16.mxu0 0
        %1073 = vmatpush2.bf16.msra.mxu0 0
        %1074 = vmatprep.subr.bf16.mxu0 0
        %1075 = vmatpush2.bf16.msra.mxu0 0
        %1076 = vmatprep.subr.bf16.mxu0 0
        %1077 = vmatpush2.bf16.msra.mxu0 0
        %1078 = vmatprep.mubr.bf16.mxu0 0
        %1079 = vmatmul.mubr.bf16.gmra.mxu0 %v1014
        %v1080 = vpop.f32.mrf.mxu0
        %v1081 = vadd.f32 0.0, %v1080
        %v1082 = vpop.f32.mrf.mxu0
        %v1083 = vadd.f32 0.0, %v1082
        %v1084 = vpop.f32.mrf.mxu0
        %v1085 = vadd.f32 0.0, %v1084
        %v1086 = vpop.f32.mrf.mxu0
        %v1087 = vadd.f32 0.0, %v1086
        %1088 = vmatprep.mubr.bf16.mxu0 0
        %1089 = vmatmul.mubr.bf16.gmra.mxu0 %v1015
        %v1090 = vpop.f32.mrf.mxu0
        %v1091 = vadd.f32 0.0, %v1090
        %v1092 = vpop.f32.mrf.mxu0
        %v1093 = vadd.f32 0.0, %v1092
        %v1094 = vpop.f32.mrf.mxu0
        %v1095 = vadd.f32 0.0, %v1094
        %v1096 = vpop.f32.mrf.mxu0
        %v1097 = vadd.f32 0.0, %v1096
        %1098 = vmatprep.mubr.bf16.mxu0 0
        %1099 = vmatmul.mubr.bf16.gmra.mxu0 %v1016
        %v1100 = vpop.f32.mrf.mxu0
        %v1101 = vadd.f32 0.0, %v1100
        %v1102 = vpop.f32.mrf.mxu0
        %v1103 = vadd.f32 0.0, %v1102
        %v1104 = vpop.f32.mrf.mxu0
        %v1105 = vadd.f32 0.0, %v1104
        %v1106 = vpop.f32.mrf.mxu0
        %v1107 = vadd.f32 0.0, %v1106
        %1108 = vmatprep.mubr.bf16.mxu0 0
        %1109 = vmatmul.mubr.bf16.gmra.mxu0 %v1017
        %v1110 = vpop.f32.mrf.mxu0
        %v1111 = vadd.f32 0.0, %v1110
        %v1112 = vpop.f32.mrf.mxu0
        %v1113 = vadd.f32 0.0, %v1112
        %v1114 = vpop.f32.mrf.mxu0
        %v1115 = vadd.f32 0.0, %v1114
        %v1116 = vpop.f32.mrf.mxu0
        %v1117 = vadd.f32 0.0, %v1116
        %1118 = vmatprep.mubr.bf16.mxu0 0
        %1119 = vmatmul.mubr.bf16.gmra.mxu0 %v1018
        %v1120 = vpop.f32.mrf.mxu0
        %v1121 = vadd.f32 0.0, %v1120
        %v1122 = vpop.f32.mrf.mxu0
        %v1123 = vadd.f32 0.0, %v1122
        %v1124 = vpop.f32.mrf.mxu0
        %v1125 = vadd.f32 0.0, %v1124
        %v1126 = vpop.f32.mrf.mxu0
        %v1127 = vadd.f32 0.0, %v1126
        %1128 = vmatprep.mubr.bf16.mxu0 0
        %1129 = vmatmul.mubr.bf16.gmra.mxu0 %v1019
        %v1130 = vpop.f32.mrf.mxu0
        %v1131 = vadd.f32 0.0, %v1130
        %v1132 = vpop.f32.mrf.mxu0
        %v1133 = vadd.f32 0.0, %v1132
        %v1134 = vpop.f32.mrf.mxu0
        %v1135 = vadd.f32 0.0, %v1134
        %v1136 = vpop.f32.mrf.mxu0
        %v1137 = vadd.f32 0.0, %v1136
        %1138 = vmatprep.mubr.bf16.mxu0 0
        %1139 = vmatmul.mubr.bf16.gmra.mxu0 %v1020
        %v1140 = vpop.f32.mrf.mxu0
        %v1141 = vadd.f32 0.0, %v1140
        %v1142 = vpop.f32.mrf.mxu0
        %v1143 = vadd.f32 0.0, %v1142
        %v1144 = vpop.f32.mrf.mxu0
        %v1145 = vadd.f32 0.0, %v1144
        %v1146 = vpop.f32.mrf.mxu0
        %v1147 = vadd.f32 0.0, %v1146
        %1148 = vmatprep.mubr.bf16.mxu0 0
        %1149 = vmatmul.mubr.bf16.gmra.mxu0 %v1021
        %v1150 = vpop.f32.mrf.mxu0
        %v1151 = vadd.f32 0.0, %v1150
        %v1152 = vpop.f32.mrf.mxu0
        %v1153 = vadd.f32 0.0, %v1152
        %v1154 = vpop.f32.mrf.mxu0
        %v1155 = vadd.f32 0.0, %v1154
        %v1156 = vpop.f32.mrf.mxu0
        %v1157 = vadd.f32 0.0, %v1156
        %1158 = vmatprep.mubr.bf16.mxu0 0
        %1159 = vmatmul.mubr.bf16.gmra.mxu0 %v1022
        %v1160 = vpop.f32.mrf.mxu0
        %v1161 = vadd.f32 0.0, %v1160
        %v1162 = vpop.f32.mrf.mxu0
        %v1163 = vadd.f32 0.0, %v1162
        %v1164 = vpop.f32.mrf.mxu0
        %v1165 = vadd.f32 0.0, %v1164
        %v1166 = vpop.f32.mrf.mxu0
        %v1167 = vadd.f32 0.0, %v1166
        %1168 = vmatprep.mubr.bf16.mxu0 0
        %1169 = vmatmul.mubr.bf16.gmra.mxu0 %v1023
        %v1170 = vpop.f32.mrf.mxu0
        %v1171 = vadd.f32 0.0, %v1170
        %v1172 = vpop.f32.mrf.mxu0
        %v1173 = vadd.f32 0.0, %v1172
        %v1174 = vpop.f32.mrf.mxu0
        %v1175 = vadd.f32 0.0, %v1174
        %v1176 = vpop.f32.mrf.mxu0
        %v1177 = vadd.f32 0.0, %v1176
        %1178 = vmatprep.mubr.bf16.mxu0 0
        %1179 = vmatmul.mubr.bf16.gmra.mxu0 %v1024
        %v1180 = vpop.f32.mrf.mxu0
        %v1181 = vadd.f32 0.0, %v1180
        %v1182 = vpop.f32.mrf.mxu0
        %v1183 = vadd.f32 0.0, %v1182
        %v1184 = vpop.f32.mrf.mxu0
        %v1185 = vadd.f32 0.0, %v1184
        %v1186 = vpop.f32.mrf.mxu0
        %v1187 = vadd.f32 0.0, %v1186
        %1188 = vmatprep.mubr.bf16.mxu0 0
        %1189 = vmatmul.mubr.bf16.gmra.mxu0 %v1025
        %v1190 = vpop.f32.mrf.mxu0
        %v1191 = vadd.f32 0.0, %v1190
        %v1192 = vpop.f32.mrf.mxu0
        %v1193 = vadd.f32 0.0, %v1192
        %v1194 = vpop.f32.mrf.mxu0
        %v1195 = vadd.f32 0.0, %v1194
        %v1196 = vpop.f32.mrf.mxu0
        %v1197 = vadd.f32 0.0, %v1196
        %1198 = vmatprep.mubr.bf16.mxu0 0
        %1199 = vmatmul.mubr.bf16.gmra.mxu0 %v1026
        %v1200 = vpop.f32.mrf.mxu0
        %v1201 = vadd.f32 0.0, %v1200
        %v1202 = vpop.f32.mrf.mxu0
        %v1203 = vadd.f32 0.0, %v1202
        %v1204 = vpop.f32.mrf.mxu0
        %v1205 = vadd.f32 0.0, %v1204
        %v1206 = vpop.f32.mrf.mxu0
        %v1207 = vadd.f32 0.0, %v1206
        %1208 = vmatprep.mubr.bf16.mxu0 0
        %1209 = vmatmul.mubr.bf16.gmra.mxu0 %v1027
        %v1210 = vpop.f32.mrf.mxu0
        %v1211 = vadd.f32 0.0, %v1210
        %v1212 = vpop.f32.mrf.mxu0
        %v1213 = vadd.f32 0.0, %v1212
        %v1214 = vpop.f32.mrf.mxu0
        %v1215 = vadd.f32 0.0, %v1214
        %v1216 = vpop.f32.mrf.mxu0
        %v1217 = vadd.f32 0.0, %v1216
        %1218 = vmatprep.mubr.bf16.mxu0 0
        %1219 = vmatmul.mubr.bf16.gmra.mxu0 %v1028
        %v1220 = vpop.f32.mrf.mxu0
        %v1221 = vadd.f32 0.0, %v1220
        %v1222 = vpop.f32.mrf.mxu0
        %v1223 = vadd.f32 0.0, %v1222
        %v1224 = vpop.f32.mrf.mxu0
        %v1225 = vadd.f32 0.0, %v1224
        %v1226 = vpop.f32.mrf.mxu0
        %v1227 = vadd.f32 0.0, %v1226
        %1228 = vmatprep.mubr.bf16.mxu0 0
        %1229 = vmatmul.mubr.bf16.gmra.mxu0 %v1029
        %v1230 = vpop.f32.mrf.mxu0
        %v1231 = vadd.f32 0.0, %v1230
        %v1232 = vpop.f32.mrf.mxu0
        %v1233 = vadd.f32 0.0, %v1232
        %v1234 = vpop.f32.mrf.mxu0
        %v1235 = vadd.f32 0.0, %v1234
        %v1236 = vpop.f32.mrf.mxu0
        %v1237 = vadd.f32 0.0, %v1236
        %1238 = vdwg.mxu0
        %v1239 = vpack.c.bf16 %v1085, %v1081
        %v1240 = vpack.c.bf16 %v1087, %v1083
        %v1241 = vpack.c.bf16 %v1095, %v1091
        %v1242 = vpack.c.bf16 %v1097, %v1093
        %v1243 = vpack.c.bf16 %v1105, %v1101
        %v1244 = vpack.c.bf16 %v1107, %v1103
        %v1245 = vpack.c.bf16 %v1115, %v1111
        %v1246 = vpack.c.bf16 %v1117, %v1113
        %v1247 = vpack.c.bf16 %v1125, %v1121
        %v1248 = vpack.c.bf16 %v1127, %v1123
        %v1249 = vpack.c.bf16 %v1135, %v1131
        %v1250 = vpack.c.bf16 %v1137, %v1133
        %v1251 = vpack.c.bf16 %v1145, %v1141
        %v1252 = vpack.c.bf16 %v1147, %v1143
        %v1253 = vpack.c.bf16 %v1155, %v1151
        %v1254 = vpack.c.bf16 %v1157, %v1153
        %v1255 = vpack.c.bf16 %v1165, %v1161
        %v1256 = vpack.c.bf16 %v1167, %v1163
        %v1257 = vpack.c.bf16 %v1175, %v1171
        %v1258 = vpack.c.bf16 %v1177, %v1173
        %v1259 = vpack.c.bf16 %v1185, %v1181
        %v1260 = vpack.c.bf16 %v1187, %v1183
        %v1261 = vpack.c.bf16 %v1195, %v1191
        %v1262 = vpack.c.bf16 %v1197, %v1193
        %v1263 = vpack.c.bf16 %v1205, %v1201
        %v1264 = vpack.c.bf16 %v1207, %v1203
        %v1265 = vpack.c.bf16 %v1215, %v1211
        %v1266 = vpack.c.bf16 %v1217, %v1213
        %v1267 = vpack.c.bf16 %v1225, %v1221
        %v1268 = vpack.c.bf16 %v1227, %v1223
        %v1269 = vpack.c.bf16 %v1235, %v1231
        %v1270 = vpack.c.bf16 %v1237, %v1233
        %v1271 = vld [vmem:[#allocation6] sm:$0xff]
        %v1272 = vld [vmem:[#allocation6 + $0x10] sm:$0xff]
        %v1273 = vld [vmem:[#allocation6 + $0x20] sm:$0xff]
        %v1274 = vld [vmem:[#allocation6 + $0x30] sm:$0xff]
        %v1275 = vld [vmem:[#allocation6 + $0x40] sm:$0xff]
        %v1276 = vld [vmem:[#allocation6 + $0x50] sm:$0xff]
        %v1277 = vld [vmem:[#allocation6 + $0x60] sm:$0xff]
        %v1278 = vld [vmem:[#allocation6 + $0x70] sm:$0xff]
        %v1279 = vld [vmem:[#allocation6 + $0x80] sm:$0xff]
        %v1280 = vld [vmem:[#allocation6 + $0x90] sm:$0xff]
        %v1281 = vld [vmem:[#allocation6 + $0xa0] sm:$0xff]
        %v1282 = vld [vmem:[#allocation6 + $0xb0] sm:$0xff]
        %v1283 = vld [vmem:[#allocation6 + $0xc0] sm:$0xff]
        %v1284 = vld [vmem:[#allocation6 + $0xd0] sm:$0xff]
        %v1285 = vld [vmem:[#allocation6 + $0xe0] sm:$0xff]
        %v1286 = vld [vmem:[#allocation6 + $0xf0] sm:$0xff]
        %v1287 = vld [vmem:[#allocation6 + $0x100] sm:$0xff]
        %v1288 = vld [vmem:[#allocation6 + $0x110] sm:$0xff]
        %v1289 = vld [vmem:[#allocation6 + $0x120] sm:$0xff]
        %v1290 = vld [vmem:[#allocation6 + $0x130] sm:$0xff]
        %v1291 = vld [vmem:[#allocation6 + $0x140] sm:$0xff]
        %v1292 = vld [vmem:[#allocation6 + $0x150] sm:$0xff]
        %v1293 = vld [vmem:[#allocation6 + $0x160] sm:$0xff]
        %v1294 = vld [vmem:[#allocation6 + $0x170] sm:$0xff]
        %v1295 = vld [vmem:[#allocation6 + $0x180] sm:$0xff]
        %v1296 = vld [vmem:[#allocation6 + $0x190] sm:$0xff]
        %v1297 = vld [vmem:[#allocation6 + $0x1a0] sm:$0xff]
        %v1298 = vld [vmem:[#allocation6 + $0x1b0] sm:$0xff]
        %v1299 = vld [vmem:[#allocation6 + $0x1c0] sm:$0xff]
        %v1300 = vld [vmem:[#allocation6 + $0x1d0] sm:$0xff]
        %v1301 = vld [vmem:[#allocation6 + $0x1e0] sm:$0xff]
        %v1302 = vld [vmem:[#allocation6 + $0x1f0] sm:$0xff]
        %v1335 = vunpack.c.l.b16 %v1271
        %v1336 = vunpack.c.h.b16 %v1271
        %v1337 = vunpack.c.l.b16 %v1272
        %v1338 = vunpack.c.h.b16 %v1272
        %v1339 = vunpack.c.l.b16 %v1273
        %v1340 = vunpack.c.h.b16 %v1273
        %v1341 = vunpack.c.l.b16 %v1274
        %v1342 = vunpack.c.h.b16 %v1274
        %v1343 = vunpack.c.l.b16 %v1275
        %v1344 = vunpack.c.h.b16 %v1275
        %v1345 = vunpack.c.l.b16 %v1276
        %v1346 = vunpack.c.h.b16 %v1276
        %v1347 = vunpack.c.l.b16 %v1277
        %v1348 = vunpack.c.h.b16 %v1277
        %v1349 = vunpack.c.l.b16 %v1278
        %v1350 = vunpack.c.h.b16 %v1278
        %v1351 = vunpack.c.l.b16 %v1279
        %v1352 = vunpack.c.h.b16 %v1279
        %v1353 = vunpack.c.l.b16 %v1280
        %v1354 = vunpack.c.h.b16 %v1280
        %v1355 = vunpack.c.l.b16 %v1281
        %v1356 = vunpack.c.h.b16 %v1281
        %v1357 = vunpack.c.l.b16 %v1282
        %v1358 = vunpack.c.h.b16 %v1282
        %v1359 = vunpack.c.l.b16 %v1283
        %v1360 = vunpack.c.h.b16 %v1283
        %v1361 = vunpack.c.l.b16 %v1284
        %v1362 = vunpack.c.h.b16 %v1284
        %v1363 = vunpack.c.l.b16 %v1285
        %v1364 = vunpack.c.h.b16 %v1285
        %v1365 = vunpack.c.l.b16 %v1286
        %v1366 = vunpack.c.h.b16 %v1286
        %v1367 = vunpack.c.l.b16 %v1287
        %v1368 = vunpack.c.h.b16 %v1287
        %v1369 = vunpack.c.l.b16 %v1288
        %v1370 = vunpack.c.h.b16 %v1288
        %v1371 = vunpack.c.l.b16 %v1289
        %v1372 = vunpack.c.h.b16 %v1289
        %v1373 = vunpack.c.l.b16 %v1290
        %v1374 = vunpack.c.h.b16 %v1290
        %v1375 = vunpack.c.l.b16 %v1291
        %v1376 = vunpack.c.h.b16 %v1291
        %v1377 = vunpack.c.l.b16 %v1292
        %v1378 = vunpack.c.h.b16 %v1292
        %v1379 = vunpack.c.l.b16 %v1293
        %v1380 = vunpack.c.h.b16 %v1293
        %v1381 = vunpack.c.l.b16 %v1294
        %v1382 = vunpack.c.h.b16 %v1294
        %v1383 = vunpack.c.l.b16 %v1295
        %v1384 = vunpack.c.h.b16 %v1295
        %v1385 = vunpack.c.l.b16 %v1296
        %v1386 = vunpack.c.h.b16 %v1296
        %v1387 = vunpack.c.l.b16 %v1297
        %v1388 = vunpack.c.h.b16 %v1297
        %v1389 = vunpack.c.l.b16 %v1298
        %v1390 = vunpack.c.h.b16 %v1298
        %v1391 = vunpack.c.l.b16 %v1299
        %v1392 = vunpack.c.h.b16 %v1299
        %v1393 = vunpack.c.l.b16 %v1300
        %v1394 = vunpack.c.h.b16 %v1300
        %v1395 = vunpack.c.l.b16 %v1301
        %v1396 = vunpack.c.h.b16 %v1301
        %v1397 = vunpack.c.l.b16 %v1302
        %v1398 = vunpack.c.h.b16 %v1302
        %v1399 = vpack.c.b16 %v1337, %v1335
        %v1400 = vpack.c.b16 %v1338, %v1336
        %v1401 = vpack.c.b16 %v1341, %v1339
        %v1402 = vpack.c.b16 %v1342, %v1340
        %v1403 = vpack.c.b16 %v1345, %v1343
        %v1404 = vpack.c.b16 %v1346, %v1344
        %v1405 = vpack.c.b16 %v1349, %v1347
        %v1406 = vpack.c.b16 %v1350, %v1348
        %v1407 = vpack.c.b16 %v1353, %v1351
        %v1408 = vpack.c.b16 %v1354, %v1352
        %v1409 = vpack.c.b16 %v1357, %v1355
        %v1410 = vpack.c.b16 %v1358, %v1356
        %v1411 = vpack.c.b16 %v1361, %v1359
        %v1412 = vpack.c.b16 %v1362, %v1360
        %v1413 = vpack.c.b16 %v1365, %v1363
        %v1414 = vpack.c.b16 %v1366, %v1364
        %v1415 = vpack.c.b16 %v1369, %v1367
        %v1416 = vpack.c.b16 %v1370, %v1368
        %v1417 = vpack.c.b16 %v1373, %v1371
        %v1418 = vpack.c.b16 %v1374, %v1372
        %v1419 = vpack.c.b16 %v1377, %v1375
        %v1420 = vpack.c.b16 %v1378, %v1376
        %v1421 = vpack.c.b16 %v1381, %v1379
        %v1422 = vpack.c.b16 %v1382, %v1380
        %v1423 = vpack.c.b16 %v1385, %v1383
        %v1424 = vpack.c.b16 %v1386, %v1384
        %v1425 = vpack.c.b16 %v1389, %v1387
        %v1426 = vpack.c.b16 %v1390, %v1388
        %v1427 = vpack.c.b16 %v1393, %v1391
        %v1428 = vpack.c.b16 %v1394, %v1392
        %v1429 = vpack.c.b16 %v1397, %v1395
        %v1430 = vpack.c.b16 %v1398, %v1396
        %1463 = vmatprep.subr.bf16.mxu0 %v1414
        %1464 = vmatpush1.bf16.msra.mxu0 %v1413
        %1465 = vmatprep.subr.bf16.mxu0 %v1412
        %1466 = vmatpush1.bf16.msra.mxu0 %v1411
        %1467 = vmatprep.subr.bf16.mxu0 %v1410
        %1468 = vmatpush1.bf16.msra.mxu0 %v1409
        %1469 = vmatprep.subr.bf16.mxu0 %v1408
        %1470 = vmatpush1.bf16.msra.mxu0 %v1407
        %1471 = vmatprep.subr.bf16.mxu0 %v1406
        %1472 = vmatpush1.bf16.msra.mxu0 %v1405
        %1473 = vmatprep.subr.bf16.mxu0 %v1404
        %1474 = vmatpush1.bf16.msra.mxu0 %v1403
        %1475 = vmatprep.subr.bf16.mxu0 %v1402
        %1476 = vmatpush1.bf16.msra.mxu0 %v1401
        %1477 = vmatprep.subr.bf16.mxu0 %v1400
        %1478 = vmatpush1.bf16.msra.mxu0 %v1399
        %1479 = vmatprep.subr.bf16.mxu0 %v1430
        %1480 = vmatpush2.bf16.msra.mxu0 %v1429
        %1481 = vmatprep.subr.bf16.mxu0 %v1428
        %1482 = vmatpush2.bf16.msra.mxu0 %v1427
        %1483 = vmatprep.subr.bf16.mxu0 %v1426
        %1484 = vmatpush2.bf16.msra.mxu0 %v1425
        %1485 = vmatprep.subr.bf16.mxu0 %v1424
        %1486 = vmatpush2.bf16.msra.mxu0 %v1423
        %1487 = vmatprep.subr.bf16.mxu0 %v1422
        %1488 = vmatpush2.bf16.msra.mxu0 %v1421
        %1489 = vmatprep.subr.bf16.mxu0 %v1420
        %1490 = vmatpush2.bf16.msra.mxu0 %v1419
        %1491 = vmatprep.subr.bf16.mxu0 %v1418
        %1492 = vmatpush2.bf16.msra.mxu0 %v1417
        %1493 = vmatprep.subr.bf16.mxu0 %v1416
        %1494 = vmatpush2.bf16.msra.mxu0 %v1415
        %1495 = vmatprep.mubr.bf16.mxu0 %v1240
        %1496 = vmatmul.mubr.bf16.gmra.mxu0 %v1239
        %v1497 = vpop.f32.mrf.mxu0
        %v1498 = vadd.f32 0.0, %v1497
        %v1499 = vpop.f32.mrf.mxu0
        %v1500 = vadd.f32 0.0, %v1499
        %v1501 = vpop.f32.mrf.mxu0
        %v1502 = vadd.f32 0.0, %v1501
        %v1503 = vpop.f32.mrf.mxu0
        %v1504 = vadd.f32 0.0, %v1503
        %1505 = vmatprep.mubr.bf16.mxu0 %v1242
        %1506 = vmatmul.mubr.bf16.gmra.mxu0 %v1241
        %v1507 = vpop.f32.mrf.mxu0
        %v1508 = vadd.f32 0.0, %v1507
        %v1509 = vpop.f32.mrf.mxu0
        %v1510 = vadd.f32 0.0, %v1509
        %v1511 = vpop.f32.mrf.mxu0
        %v1512 = vadd.f32 0.0, %v1511
        %v1513 = vpop.f32.mrf.mxu0
        %v1514 = vadd.f32 0.0, %v1513
        %1515 = vmatprep.mubr.bf16.mxu0 %v1244
        %1516 = vmatmul.mubr.bf16.gmra.mxu0 %v1243
        %v1517 = vpop.f32.mrf.mxu0
        %v1518 = vadd.f32 0.0, %v1517
        %v1519 = vpop.f32.mrf.mxu0
        %v1520 = vadd.f32 0.0, %v1519
        %v1521 = vpop.f32.mrf.mxu0
        %v1522 = vadd.f32 0.0, %v1521
        %v1523 = vpop.f32.mrf.mxu0
        %v1524 = vadd.f32 0.0, %v1523
        %1525 = vmatprep.mubr.bf16.mxu0 %v1246
        %1526 = vmatmul.mubr.bf16.gmra.mxu0 %v1245
        %v1527 = vpop.f32.mrf.mxu0
        %v1528 = vadd.f32 0.0, %v1527
        %v1529 = vpop.f32.mrf.mxu0
        %v1530 = vadd.f32 0.0, %v1529
        %v1531 = vpop.f32.mrf.mxu0
        %v1532 = vadd.f32 0.0, %v1531
        %v1533 = vpop.f32.mrf.mxu0
        %v1534 = vadd.f32 0.0, %v1533
        %1535 = vmatprep.mubr.bf16.mxu0 %v1248
        %1536 = vmatmul.mubr.bf16.gmra.mxu0 %v1247
        %v1537 = vpop.f32.mrf.mxu0
        %v1538 = vadd.f32 0.0, %v1537
        %v1539 = vpop.f32.mrf.mxu0
        %v1540 = vadd.f32 0.0, %v1539
        %v1541 = vpop.f32.mrf.mxu0
        %v1542 = vadd.f32 0.0, %v1541
        %v1543 = vpop.f32.mrf.mxu0
        %v1544 = vadd.f32 0.0, %v1543
        %1545 = vmatprep.mubr.bf16.mxu0 %v1250
        %1546 = vmatmul.mubr.bf16.gmra.mxu0 %v1249
        %v1547 = vpop.f32.mrf.mxu0
        %v1548 = vadd.f32 0.0, %v1547
        %v1549 = vpop.f32.mrf.mxu0
        %v1550 = vadd.f32 0.0, %v1549
        %v1551 = vpop.f32.mrf.mxu0
        %v1552 = vadd.f32 0.0, %v1551
        %v1553 = vpop.f32.mrf.mxu0
        %v1554 = vadd.f32 0.0, %v1553
        %1555 = vmatprep.mubr.bf16.mxu0 %v1252
        %1556 = vmatmul.mubr.bf16.gmra.mxu0 %v1251
        %v1557 = vpop.f32.mrf.mxu0
        %v1558 = vadd.f32 0.0, %v1557
        %v1559 = vpop.f32.mrf.mxu0
        %v1560 = vadd.f32 0.0, %v1559
        %v1561 = vpop.f32.mrf.mxu0
        %v1562 = vadd.f32 0.0, %v1561
        %v1563 = vpop.f32.mrf.mxu0
        %v1564 = vadd.f32 0.0, %v1563
        %1565 = vmatprep.mubr.bf16.mxu0 %v1254
        %1566 = vmatmul.mubr.bf16.gmra.mxu0 %v1253
        %v1567 = vpop.f32.mrf.mxu0
        %v1568 = vadd.f32 0.0, %v1567
        %v1569 = vpop.f32.mrf.mxu0
        %v1570 = vadd.f32 0.0, %v1569
        %v1571 = vpop.f32.mrf.mxu0
        %v1572 = vadd.f32 0.0, %v1571
        %v1573 = vpop.f32.mrf.mxu0
        %v1574 = vadd.f32 0.0, %v1573
        %1575 = vdwg.mxu0
        %v1576 = vpack.c.bf16 %v1502, %v1498
        %v1577 = vpack.c.bf16 %v1504, %v1500
        %v1578 = vpack.c.bf16 %v1512, %v1508
        %v1579 = vpack.c.bf16 %v1514, %v1510
        %v1580 = vpack.c.bf16 %v1522, %v1518
        %v1581 = vpack.c.bf16 %v1524, %v1520
        %v1582 = vpack.c.bf16 %v1532, %v1528
        %v1583 = vpack.c.bf16 %v1534, %v1530
        %v1584 = vpack.c.bf16 %v1542, %v1538
        %v1585 = vpack.c.bf16 %v1544, %v1540
        %v1586 = vpack.c.bf16 %v1552, %v1548
        %v1587 = vpack.c.bf16 %v1554, %v1550
        %v1588 = vpack.c.bf16 %v1562, %v1558
        %v1589 = vpack.c.bf16 %v1564, %v1560
        %v1590 = vpack.c.bf16 %v1572, %v1568
        %v1591 = vpack.c.bf16 %v1574, %v1570
        %v1592 = vld [vmem:[#allocation6 + $0x8] sm:$0xff]
        %v1593 = vld [vmem:[#allocation6 + $0x18] sm:$0xff]
        %v1594 = vld [vmem:[#allocation6 + $0x28] sm:$0xff]
        %v1595 = vld [vmem:[#allocation6 + $0x38] sm:$0xff]
        %v1596 = vld [vmem:[#allocation6 + $0x48] sm:$0xff]
        %v1597 = vld [vmem:[#allocation6 + $0x58] sm:$0xff]
        %v1598 = vld [vmem:[#allocation6 + $0x68] sm:$0xff]
        %v1599 = vld [vmem:[#allocation6 + $0x78] sm:$0xff]
        %v1600 = vld [vmem:[#allocation6 + $0x88] sm:$0xff]
        %v1601 = vld [vmem:[#allocation6 + $0x98] sm:$0xff]
        %v1602 = vld [vmem:[#allocation6 + $0xa8] sm:$0xff]
        %v1603 = vld [vmem:[#allocation6 + $0xb8] sm:$0xff]
        %v1604 = vld [vmem:[#allocation6 + $0xc8] sm:$0xff]
        %v1605 = vld [vmem:[#allocation6 + $0xd8] sm:$0xff]
        %v1606 = vld [vmem:[#allocation6 + $0xe8] sm:$0xff]
        %v1607 = vld [vmem:[#allocation6 + $0xf8] sm:$0xff]
        %v1608 = vld [vmem:[#allocation6 + $0x108] sm:$0xff]
        %v1609 = vld [vmem:[#allocation6 + $0x118] sm:$0xff]
        %v1610 = vld [vmem:[#allocation6 + $0x128] sm:$0xff]
        %v1611 = vld [vmem:[#allocation6 + $0x138] sm:$0xff]
        %v1612 = vld [vmem:[#allocation6 + $0x148] sm:$0xff]
        %v1613 = vld [vmem:[#allocation6 + $0x158] sm:$0xff]
        %v1614 = vld [vmem:[#allocation6 + $0x168] sm:$0xff]
        %v1615 = vld [vmem:[#allocation6 + $0x178] sm:$0xff]
        %v1616 = vld [vmem:[#allocation6 + $0x188] sm:$0xff]
        %v1617 = vld [vmem:[#allocation6 + $0x198] sm:$0xff]
        %v1618 = vld [vmem:[#allocation6 + $0x1a8] sm:$0xff]
        %v1619 = vld [vmem:[#allocation6 + $0x1b8] sm:$0xff]
        %v1620 = vld [vmem:[#allocation6 + $0x1c8] sm:$0xff]
        %v1621 = vld [vmem:[#allocation6 + $0x1d8] sm:$0xff]
        %v1622 = vld [vmem:[#allocation6 + $0x1e8] sm:$0xff]
        %v1623 = vld [vmem:[#allocation6 + $0x1f8] sm:$0xff]
        %v1656 = vunpack.c.l.b16 %v1592
        %v1657 = vunpack.c.h.b16 %v1592
        %v1658 = vunpack.c.l.b16 %v1593
        %v1659 = vunpack.c.h.b16 %v1593
        %v1660 = vunpack.c.l.b16 %v1594
        %v1661 = vunpack.c.h.b16 %v1594
        %v1662 = vunpack.c.l.b16 %v1595
        %v1663 = vunpack.c.h.b16 %v1595
        %v1664 = vunpack.c.l.b16 %v1596
        %v1665 = vunpack.c.h.b16 %v1596
        %v1666 = vunpack.c.l.b16 %v1597
        %v1667 = vunpack.c.h.b16 %v1597
        %v1668 = vunpack.c.l.b16 %v1598
        %v1669 = vunpack.c.h.b16 %v1598
        %v1670 = vunpack.c.l.b16 %v1599
        %v1671 = vunpack.c.h.b16 %v1599
        %v1672 = vunpack.c.l.b16 %v1600
        %v1673 = vunpack.c.h.b16 %v1600
        %v1674 = vunpack.c.l.b16 %v1601
        %v1675 = vunpack.c.h.b16 %v1601
        %v1676 = vunpack.c.l.b16 %v1602
        %v1677 = vunpack.c.h.b16 %v1602
        %v1678 = vunpack.c.l.b16 %v1603
        %v1679 = vunpack.c.h.b16 %v1603
        %v1680 = vunpack.c.l.b16 %v1604
        %v1681 = vunpack.c.h.b16 %v1604
        %v1682 = vunpack.c.l.b16 %v1605
        %v1683 = vunpack.c.h.b16 %v1605
        %v1684 = vunpack.c.l.b16 %v1606
        %v1685 = vunpack.c.h.b16 %v1606
        %v1686 = vunpack.c.l.b16 %v1607
        %v1687 = vunpack.c.h.b16 %v1607
        %v1688 = vunpack.c.l.b16 %v1608
        %v1689 = vunpack.c.h.b16 %v1608
        %v1690 = vunpack.c.l.b16 %v1609
        %v1691 = vunpack.c.h.b16 %v1609
        %v1692 = vunpack.c.l.b16 %v1610
        %v1693 = vunpack.c.h.b16 %v1610
        %v1694 = vunpack.c.l.b16 %v1611
        %v1695 = vunpack.c.h.b16 %v1611
        %v1696 = vunpack.c.l.b16 %v1612
        %v1697 = vunpack.c.h.b16 %v1612
        %v1698 = vunpack.c.l.b16 %v1613
        %v1699 = vunpack.c.h.b16 %v1613
        %v1700 = vunpack.c.l.b16 %v1614
        %v1701 = vunpack.c.h.b16 %v1614
        %v1702 = vunpack.c.l.b16 %v1615
        %v1703 = vunpack.c.h.b16 %v1615
        %v1704 = vunpack.c.l.b16 %v1616
        %v1705 = vunpack.c.h.b16 %v1616
        %v1706 = vunpack.c.l.b16 %v1617
        %v1707 = vunpack.c.h.b16 %v1617
        %v1708 = vunpack.c.l.b16 %v1618
        %v1709 = vunpack.c.h.b16 %v1618
        %v1710 = vunpack.c.l.b16 %v1619
        %v1711 = vunpack.c.h.b16 %v1619
        %v1712 = vunpack.c.l.b16 %v1620
        %v1713 = vunpack.c.h.b16 %v1620
        %v1714 = vunpack.c.l.b16 %v1621
        %v1715 = vunpack.c.h.b16 %v1621
        %v1716 = vunpack.c.l.b16 %v1622
        %v1717 = vunpack.c.h.b16 %v1622
        %v1718 = vunpack.c.l.b16 %v1623
        %v1719 = vunpack.c.h.b16 %v1623
        %v1720 = vpack.c.b16 %v1658, %v1656
        %v1721 = vpack.c.b16 %v1659, %v1657
        %v1722 = vpack.c.b16 %v1662, %v1660
        %v1723 = vpack.c.b16 %v1663, %v1661
        %v1724 = vpack.c.b16 %v1666, %v1664
        %v1725 = vpack.c.b16 %v1667, %v1665
        %v1726 = vpack.c.b16 %v1670, %v1668
        %v1727 = vpack.c.b16 %v1671, %v1669
        %v1728 = vpack.c.b16 %v1674, %v1672
        %v1729 = vpack.c.b16 %v1675, %v1673
        %v1730 = vpack.c.b16 %v1678, %v1676
        %v1731 = vpack.c.b16 %v1679, %v1677
        %v1732 = vpack.c.b16 %v1682, %v1680
        %v1733 = vpack.c.b16 %v1683, %v1681
        %v1734 = vpack.c.b16 %v1686, %v1684
        %v1735 = vpack.c.b16 %v1687, %v1685
        %v1736 = vpack.c.b16 %v1690, %v1688
        %v1737 = vpack.c.b16 %v1691, %v1689
        %v1738 = vpack.c.b16 %v1694, %v1692
        %v1739 = vpack.c.b16 %v1695, %v1693
        %v1740 = vpack.c.b16 %v1698, %v1696
        %v1741 = vpack.c.b16 %v1699, %v1697
        %v1742 = vpack.c.b16 %v1702, %v1700
        %v1743 = vpack.c.b16 %v1703, %v1701
        %v1744 = vpack.c.b16 %v1706, %v1704
        %v1745 = vpack.c.b16 %v1707, %v1705
        %v1746 = vpack.c.b16 %v1710, %v1708
        %v1747 = vpack.c.b16 %v1711, %v1709
        %v1748 = vpack.c.b16 %v1714, %v1712
        %v1749 = vpack.c.b16 %v1715, %v1713
        %v1750 = vpack.c.b16 %v1718, %v1716
        %v1751 = vpack.c.b16 %v1719, %v1717
        %1784 = vmatprep.subr.bf16.mxu0 %v1735
        %1785 = vmatpush1.bf16.msra.mxu0 %v1734
        %1786 = vmatprep.subr.bf16.mxu0 %v1733
        %1787 = vmatpush1.bf16.msra.mxu0 %v1732
        %1788 = vmatprep.subr.bf16.mxu0 %v1731
        %1789 = vmatpush1.bf16.msra.mxu0 %v1730
        %1790 = vmatprep.subr.bf16.mxu0 %v1729
        %1791 = vmatpush1.bf16.msra.mxu0 %v1728
        %1792 = vmatprep.subr.bf16.mxu0 %v1727
        %1793 = vmatpush1.bf16.msra.mxu0 %v1726
        %1794 = vmatprep.subr.bf16.mxu0 %v1725
        %1795 = vmatpush1.bf16.msra.mxu0 %v1724
        %1796 = vmatprep.subr.bf16.mxu0 %v1723
        %1797 = vmatpush1.bf16.msra.mxu0 %v1722
        %1798 = vmatprep.subr.bf16.mxu0 %v1721
        %1799 = vmatpush1.bf16.msra.mxu0 %v1720
        %1800 = vmatprep.subr.bf16.mxu0 %v1751
        %1801 = vmatpush2.bf16.msra.mxu0 %v1750
        %1802 = vmatprep.subr.bf16.mxu0 %v1749
        %1803 = vmatpush2.bf16.msra.mxu0 %v1748
        %1804 = vmatprep.subr.bf16.mxu0 %v1747
        %1805 = vmatpush2.bf16.msra.mxu0 %v1746
        %1806 = vmatprep.subr.bf16.mxu0 %v1745
        %1807 = vmatpush2.bf16.msra.mxu0 %v1744
        %1808 = vmatprep.subr.bf16.mxu0 %v1743
        %1809 = vmatpush2.bf16.msra.mxu0 %v1742
        %1810 = vmatprep.subr.bf16.mxu0 %v1741
        %1811 = vmatpush2.bf16.msra.mxu0 %v1740
        %1812 = vmatprep.subr.bf16.mxu0 %v1739
        %1813 = vmatpush2.bf16.msra.mxu0 %v1738
        %1814 = vmatprep.subr.bf16.mxu0 %v1737
        %1815 = vmatpush2.bf16.msra.mxu0 %v1736
        %1816 = vmatprep.mubr.bf16.mxu0 %v1256
        %1817 = vmatmul.mubr.bf16.gmra.mxu0 %v1255
        %v1818 = vpop.f32.mrf.mxu0
        %v1819 = vadd.f32 0.0, %v1818
        %v1820 = vpop.f32.mrf.mxu0
        %v1821 = vadd.f32 0.0, %v1820
        %v1822 = vpop.f32.mrf.mxu0
        %v1823 = vadd.f32 0.0, %v1822
        %v1824 = vpop.f32.mrf.mxu0
        %v1825 = vadd.f32 0.0, %v1824
        %1826 = vmatprep.mubr.bf16.mxu0 %v1258
        %1827 = vmatmul.mubr.bf16.gmra.mxu0 %v1257
        %v1828 = vpop.f32.mrf.mxu0
        %v1829 = vadd.f32 0.0, %v1828
        %v1830 = vpop.f32.mrf.mxu0
        %v1831 = vadd.f32 0.0, %v1830
        %v1832 = vpop.f32.mrf.mxu0
        %v1833 = vadd.f32 0.0, %v1832
        %v1834 = vpop.f32.mrf.mxu0
        %v1835 = vadd.f32 0.0, %v1834
        %1836 = vmatprep.mubr.bf16.mxu0 %v1260
        %1837 = vmatmul.mubr.bf16.gmra.mxu0 %v1259
        %v1838 = vpop.f32.mrf.mxu0
        %v1839 = vadd.f32 0.0, %v1838
        %v1840 = vpop.f32.mrf.mxu0
        %v1841 = vadd.f32 0.0, %v1840
        %v1842 = vpop.f32.mrf.mxu0
        %v1843 = vadd.f32 0.0, %v1842
        %v1844 = vpop.f32.mrf.mxu0
        %v1845 = vadd.f32 0.0, %v1844
        %1846 = vmatprep.mubr.bf16.mxu0 %v1262
        %1847 = vmatmul.mubr.bf16.gmra.mxu0 %v1261
        %v1848 = vpop.f32.mrf.mxu0
        %v1849 = vadd.f32 0.0, %v1848
        %v1850 = vpop.f32.mrf.mxu0
        %v1851 = vadd.f32 0.0, %v1850
        %v1852 = vpop.f32.mrf.mxu0
        %v1853 = vadd.f32 0.0, %v1852
        %v1854 = vpop.f32.mrf.mxu0
        %v1855 = vadd.f32 0.0, %v1854
        %1856 = vmatprep.mubr.bf16.mxu0 %v1264
        %1857 = vmatmul.mubr.bf16.gmra.mxu0 %v1263
        %v1858 = vpop.f32.mrf.mxu0
        %v1859 = vadd.f32 0.0, %v1858
        %v1860 = vpop.f32.mrf.mxu0
        %v1861 = vadd.f32 0.0, %v1860
        %v1862 = vpop.f32.mrf.mxu0
        %v1863 = vadd.f32 0.0, %v1862
        %v1864 = vpop.f32.mrf.mxu0
        %v1865 = vadd.f32 0.0, %v1864
        %1866 = vmatprep.mubr.bf16.mxu0 %v1266
        %1867 = vmatmul.mubr.bf16.gmra.mxu0 %v1265
        %v1868 = vpop.f32.mrf.mxu0
        %v1869 = vadd.f32 0.0, %v1868
        %v1870 = vpop.f32.mrf.mxu0
        %v1871 = vadd.f32 0.0, %v1870
        %v1872 = vpop.f32.mrf.mxu0
        %v1873 = vadd.f32 0.0, %v1872
        %v1874 = vpop.f32.mrf.mxu0
        %v1875 = vadd.f32 0.0, %v1874
        %1876 = vmatprep.mubr.bf16.mxu0 %v1268
        %1877 = vmatmul.mubr.bf16.gmra.mxu0 %v1267
        %v1878 = vpop.f32.mrf.mxu0
        %v1879 = vadd.f32 0.0, %v1878
        %v1880 = vpop.f32.mrf.mxu0
        %v1881 = vadd.f32 0.0, %v1880
        %v1882 = vpop.f32.mrf.mxu0
        %v1883 = vadd.f32 0.0, %v1882
        %v1884 = vpop.f32.mrf.mxu0
        %v1885 = vadd.f32 0.0, %v1884
        %1886 = vmatprep.mubr.bf16.mxu0 %v1270
        %1887 = vmatmul.mubr.bf16.gmra.mxu0 %v1269
        %v1888 = vpop.f32.mrf.mxu0
        %v1889 = vadd.f32 0.0, %v1888
        %v1890 = vpop.f32.mrf.mxu0
        %v1891 = vadd.f32 0.0, %v1890
        %v1892 = vpop.f32.mrf.mxu0
        %v1893 = vadd.f32 0.0, %v1892
        %v1894 = vpop.f32.mrf.mxu0
        %v1895 = vadd.f32 0.0, %v1894
        %1896 = vdwg.mxu0
        %v1897 = vpack.c.bf16 %v1823, %v1819
        %v1898 = vpack.c.bf16 %v1825, %v1821
        %v1899 = vpack.c.bf16 %v1833, %v1829
        %v1900 = vpack.c.bf16 %v1835, %v1831
        %v1901 = vpack.c.bf16 %v1843, %v1839
        %v1902 = vpack.c.bf16 %v1845, %v1841
        %v1903 = vpack.c.bf16 %v1853, %v1849
        %v1904 = vpack.c.bf16 %v1855, %v1851
        %v1905 = vpack.c.bf16 %v1863, %v1859
        %v1906 = vpack.c.bf16 %v1865, %v1861
        %v1907 = vpack.c.bf16 %v1873, %v1869
        %v1908 = vpack.c.bf16 %v1875, %v1871
        %v1909 = vpack.c.bf16 %v1883, %v1879
        %v1910 = vpack.c.bf16 %v1885, %v1881
        %v1911 = vpack.c.bf16 %v1893, %v1889
        %v1912 = vpack.c.bf16 %v1895, %v1891
        %1913 = vmatprep.subr.bf16.mxu0 0
        %1914 = vmatpush1.bf16.xpose.msra.mxu0 %v1590
        %1915 = vmatprep.subr.bf16.mxu0 0
        %1916 = vmatpush1.bf16.xpose.msra.mxu0 %v1588
        %1917 = vmatprep.subr.bf16.mxu0 0
        %1918 = vmatpush1.bf16.xpose.msra.mxu0 %v1586
        %1919 = vmatprep.subr.bf16.mxu0 0
        %1920 = vmatpush1.bf16.xpose.msra.mxu0 %v1584
        %1921 = vmatprep.subr.bf16.mxu0 0
        %1922 = vmatpush1.bf16.xpose.msra.mxu0 %v1582
        %1923 = vmatprep.subr.bf16.mxu0 0
        %1924 = vmatpush1.bf16.xpose.msra.mxu0 %v1580
        %1925 = vmatprep.subr.bf16.mxu0 0
        %1926 = vmatpush1.bf16.xpose.msra.mxu0 %v1578
        %1927 = vmatprep.subr.bf16.mxu0 0
        %1928 = vmatpush1.bf16.xpose.msra.mxu0 %v1576
        %1929 = vmatprep.subr.bf16.mxu0 0
        %1930 = vmatpush2.bf16.xpose.msra.mxu0 0
        %1931 = vmatprep.subr.bf16.mxu0 0
        %1932 = vmatpush2.bf16.xpose.msra.mxu0 0
        %1933 = vmatprep.subr.bf16.mxu0 0
        %1934 = vmatpush2.bf16.xpose.msra.mxu0 0
        %1935 = vmatprep.subr.bf16.mxu0 0
        %1936 = vmatpush2.bf16.xpose.msra.mxu0 0
        %1937 = vmatprep.subr.bf16.mxu0 0
        %1938 = vmatpush2.bf16.xpose.msra.mxu0 0
        %1939 = vmatprep.subr.bf16.mxu0 0
        %1940 = vmatpush2.bf16.xpose.msra.mxu0 0
        %1941 = vmatprep.subr.bf16.mxu0 0
        %1942 = vmatpush2.bf16.xpose.msra.mxu0 0
        %1943 = vmatprep.subr.bf16.mxu0 0
        %1944 = vmatpush2.bf16.xpose.msra.mxu0 0
        %1945 = vmatprep.mubr.bf16.mxu0 0
        %1946 = vmatmul.mubr.bf16.gmra.mxu0 %v902
        %v1947 = vpop.f32.mrf.mxu0
        %v1948 = vadd.f32 0.0, %v1947
        %v1949 = vpop.f32.mrf.mxu0
        %v1950 = vpop.f32.mrf.mxu0
        %v1951 = vadd.f32 0.0, %v1950
        %v1952 = vpop.f32.mrf.mxu0
        %1953 = vmatprep.mubr.bf16.mxu0 0
        %1954 = vmatmul.mubr.bf16.gmra.mxu0 %v904
        %v1955 = vpop.f32.mrf.mxu0
        %v1956 = vadd.f32 0.0, %v1955
        %v1957 = vpop.f32.mrf.mxu0
        %v1958 = vpop.f32.mrf.mxu0
        %v1959 = vadd.f32 0.0, %v1958
        %v1960 = vpop.f32.mrf.mxu0
        %1961 = vmatprep.mubr.bf16.mxu0 0
        %1962 = vmatmul.mubr.bf16.gmra.mxu0 %v906
        %v1963 = vpop.f32.mrf.mxu0
        %v1964 = vadd.f32 0.0, %v1963
        %v1965 = vpop.f32.mrf.mxu0
        %v1966 = vpop.f32.mrf.mxu0
        %v1967 = vadd.f32 0.0, %v1966
        %v1968 = vpop.f32.mrf.mxu0
        %1969 = vmatprep.mubr.bf16.mxu0 0
        %1970 = vmatmul.mubr.bf16.gmra.mxu0 %v908
        %v1971 = vpop.f32.mrf.mxu0
        %v1972 = vadd.f32 0.0, %v1971
        %v1973 = vpop.f32.mrf.mxu0
        %v1974 = vpop.f32.mrf.mxu0
        %v1975 = vadd.f32 0.0, %v1974
        %v1976 = vpop.f32.mrf.mxu0
        %1977 = vmatprep.mubr.bf16.mxu0 0
        %1978 = vmatmul.mubr.bf16.gmra.mxu0 %v910
        %v1979 = vpop.f32.mrf.mxu0
        %v1980 = vadd.f32 0.0, %v1979
        %v1981 = vpop.f32.mrf.mxu0
        %v1982 = vpop.f32.mrf.mxu0
        %v1983 = vadd.f32 0.0, %v1982
        %v1984 = vpop.f32.mrf.mxu0
        %1985 = vmatprep.mubr.bf16.mxu0 0
        %1986 = vmatmul.mubr.bf16.gmra.mxu0 %v912
        %v1987 = vpop.f32.mrf.mxu0
        %v1988 = vadd.f32 0.0, %v1987
        %v1989 = vpop.f32.mrf.mxu0
        %v1990 = vpop.f32.mrf.mxu0
        %v1991 = vadd.f32 0.0, %v1990
        %v1992 = vpop.f32.mrf.mxu0
        %1993 = vmatprep.mubr.bf16.mxu0 0
        %1994 = vmatmul.mubr.bf16.gmra.mxu0 %v914
        %v1995 = vpop.f32.mrf.mxu0
        %v1996 = vadd.f32 0.0, %v1995
        %v1997 = vpop.f32.mrf.mxu0
        %v1998 = vpop.f32.mrf.mxu0
        %v1999 = vadd.f32 0.0, %v1998
        %v2000 = vpop.f32.mrf.mxu0
        %2001 = vmatprep.mubr.bf16.mxu0 0
        %2002 = vmatmul.mubr.bf16.gmra.mxu0 %v916
        %v2003 = vpop.f32.mrf.mxu0
        %v2004 = vadd.f32 0.0, %v2003
        %v2005 = vpop.f32.mrf.mxu0
        %v2006 = vpop.f32.mrf.mxu0
        %v2007 = vadd.f32 0.0, %v2006
        %v2008 = vpop.f32.mrf.mxu0
        %2009 = vdwg.mxu0
        %2010 = vmax.xlane.f32.xlu0 %v1948
        %v2011 = vpop.xlane.xlu0 %2010
        %2012 = vmax.xlane.f32.xlu0 %v1951
        %v2013 = vpop.xlane.xlu0 %2012
        %2014 = vmax.xlane.f32.xlu0 %v1956
        %v2015 = vpop.xlane.xlu0 %2014
        %2016 = vmax.xlane.f32.xlu0 %v1959
        %v2017 = vpop.xlane.xlu0 %2016
        %2018 = vmax.xlane.f32.xlu0 %v1964
        %v2019 = vpop.xlane.xlu0 %2018
        %2020 = vmax.xlane.f32.xlu0 %v1967
        %v2021 = vpop.xlane.xlu0 %2020
        %2022 = vmax.xlane.f32.xlu0 %v1972
        %v2023 = vpop.xlane.xlu0 %2022
        %2024 = vmax.xlane.f32.xlu0 %v1975
        %v2025 = vpop.xlane.xlu0 %2024
        %2026 = vmax.xlane.f32.xlu0 %v1980
        %v2027 = vpop.xlane.xlu0 %2026
        %2028 = vmax.xlane.f32.xlu0 %v1983
        %v2029 = vpop.xlane.xlu0 %2028
        %2030 = vmax.xlane.f32.xlu0 %v1988
        %v2031 = vpop.xlane.xlu0 %2030
        %2032 = vmax.xlane.f32.xlu0 %v1991
        %v2033 = vpop.xlane.xlu0 %2032
        %2034 = vmax.xlane.f32.xlu0 %v1996
        %v2035 = vpop.xlane.xlu0 %2034
        %2036 = vmax.xlane.f32.xlu0 %v1999
        %v2037 = vpop.xlane.xlu0 %2036
        %2038 = vmax.xlane.f32.xlu0 %v2004
        %v2039 = vpop.xlane.xlu0 %2038
        %2040 = vmax.xlane.f32.xlu0 %v2007
        %v2041 = vpop.xlane.xlu0 %2040
        %v2042 = vsub.f32 %v1948, %v2011
        %v2043 = vsub.f32 %v1951, %v2013
        %v2044 = vsub.f32 %v1956, %v2015
        %v2045 = vsub.f32 %v1959, %v2017
        %v2046 = vsub.f32 %v1964, %v2019
        %v2047 = vsub.f32 %v1967, %v2021
        %v2048 = vsub.f32 %v1972, %v2023
        %v2049 = vsub.f32 %v1975, %v2025
        %v2050 = vsub.f32 %v1980, %v2027
        %v2051 = vsub.f32 %v1983, %v2029
        %v2052 = vsub.f32 %v1988, %v2031
        %v2053 = vsub.f32 %v1991, %v2033
        %v2054 = vsub.f32 %v1996, %v2035
        %v2055 = vsub.f32 %v1999, %v2037
        %v2056 = vsub.f32 %v2004, %v2039
        %v2057 = vsub.f32 %v2007, %v2041
        %v2058 = vmul.f32 %v2042, 1.442695
        %v2059 = vpow.pop %v2058
        %v2060 = vmul.f32 %v2043, 1.442695
        %v2061 = vpow.pop %v2060
        %v2062 = vmul.f32 %v2044, 1.442695
        %v2063 = vpow.pop %v2062
        %v2064 = vmul.f32 %v2045, 1.442695
        %v2065 = vpow.pop %v2064
        %v2066 = vmul.f32 %v2046, 1.442695
        %v2067 = vpow.pop %v2066
        %v2068 = vmul.f32 %v2047, 1.442695
        %v2069 = vpow.pop %v2068
        %v2070 = vmul.f32 %v2048, 1.442695
        %v2071 = vpow.pop %v2070
        %v2072 = vmul.f32 %v2049, 1.442695
        %v2073 = vpow.pop %v2072
        %v2074 = vmul.f32 %v2050, 1.442695
        %v2075 = vpow.pop %v2074
        %v2076 = vmul.f32 %v2051, 1.442695
        %v2077 = vpow.pop %v2076
        %v2078 = vmul.f32 %v2052, 1.442695
        %v2079 = vpow.pop %v2078
        %v2080 = vmul.f32 %v2053, 1.442695
        %v2081 = vpow.pop %v2080
        %v2082 = vmul.f32 %v2054, 1.442695
        %v2083 = vpow.pop %v2082
        %v2084 = vmul.f32 %v2055, 1.442695
        %v2085 = vpow.pop %v2084
        %v2086 = vmul.f32 %v2056, 1.442695
        %v2087 = vpow.pop %v2086
        %v2088 = vmul.f32 %v2057, 1.442695
        %v2089 = vpow.pop %v2088
        %2090 = vadd.xlane.f32.xlu0 %v2059
        %v2091 = vpop.xlane.xlu0 %2090
        %2092 = vadd.xlane.f32.xlu0 %v2061
        %v2093 = vpop.xlane.xlu0 %2092
        %2094 = vadd.xlane.f32.xlu0 %v2063
        %v2095 = vpop.xlane.xlu0 %2094
        %2096 = vadd.xlane.f32.xlu0 %v2065
        %v2097 = vpop.xlane.xlu0 %2096
        %2098 = vadd.xlane.f32.xlu0 %v2067
        %v2099 = vpop.xlane.xlu0 %2098
        %2100 = vadd.xlane.f32.xlu0 %v2069
        %v2101 = vpop.xlane.xlu0 %2100
        %2102 = vadd.xlane.f32.xlu0 %v2071
        %v2103 = vpop.xlane.xlu0 %2102
        %2104 = vadd.xlane.f32.xlu0 %v2073
        %v2105 = vpop.xlane.xlu0 %2104
        %2106 = vadd.xlane.f32.xlu0 %v2075
        %v2107 = vpop.xlane.xlu0 %2106
        %2108 = vadd.xlane.f32.xlu0 %v2077
        %v2109 = vpop.xlane.xlu0 %2108
        %2110 = vadd.xlane.f32.xlu0 %v2079
        %v2111 = vpop.xlane.xlu0 %2110
        %2112 = vadd.xlane.f32.xlu0 %v2081
        %v2113 = vpop.xlane.xlu0 %2112
        %2114 = vadd.xlane.f32.xlu0 %v2083
        %v2115 = vpop.xlane.xlu0 %2114
        %2116 = vadd.xlane.f32.xlu0 %v2085
        %v2117 = vpop.xlane.xlu0 %2116
        %2118 = vadd.xlane.f32.xlu0 %v2087
        %v2119 = vpop.xlane.xlu0 %2118
        %2120 = vadd.xlane.f32.xlu0 %v2089
        %v2121 = vpop.xlane.xlu0 %2120
        %v2122 = vrcp.pop %v2091
        %v2123 = vrcp.pop %v2093
        %v2124 = vrcp.pop %v2095
        %v2125 = vrcp.pop %v2097
        %v2126 = vrcp.pop %v2099
        %v2127 = vrcp.pop %v2101
        %v2128 = vrcp.pop %v2103
        %v2129 = vrcp.pop %v2105
        %v2130 = vrcp.pop %v2107
        %v2131 = vrcp.pop %v2109
        %v2132 = vrcp.pop %v2111
        %v2133 = vrcp.pop %v2113
        %v2134 = vrcp.pop %v2115
        %v2135 = vrcp.pop %v2117
        %v2136 = vrcp.pop %v2119
        %v2137 = vrcp.pop %v2121
        %v2138 = vpack.c.bf16 %v2061, %v2059
        %v2139 = vpack.c.bf16 %v2065, %v2063
        %v2140 = vpack.c.bf16 %v2069, %v2067
        %v2141 = vpack.c.bf16 %v2073, %v2071
        %v2142 = vpack.c.bf16 %v2077, %v2075
        %v2143 = vpack.c.bf16 %v2081, %v2079
        %v2144 = vpack.c.bf16 %v2085, %v2083
        %v2145 = vpack.c.bf16 %v2089, %v2087
        %2146 = vmatprep.subr.bf16.mxu0 0
        %2147 = vmatpush1.bf16.msra.mxu0 %v1911
        %2148 = vmatprep.subr.bf16.mxu0 0
        %2149 = vmatpush1.bf16.msra.mxu0 %v1909
        %2150 = vmatprep.subr.bf16.mxu0 0
        %2151 = vmatpush1.bf16.msra.mxu0 %v1907
        %2152 = vmatprep.subr.bf16.mxu0 0
        %2153 = vmatpush1.bf16.msra.mxu0 %v1905
        %2154 = vmatprep.subr.bf16.mxu0 0
        %2155 = vmatpush1.bf16.msra.mxu0 %v1903
        %2156 = vmatprep.subr.bf16.mxu0 0
        %2157 = vmatpush1.bf16.msra.mxu0 %v1901
        %2158 = vmatprep.subr.bf16.mxu0 0
        %2159 = vmatpush1.bf16.msra.mxu0 %v1899
        %2160 = vmatprep.subr.bf16.mxu0 0
        %2161 = vmatpush1.bf16.msra.mxu0 %v1897
        %2162 = vmatprep.subr.bf16.mxu0 0
        %2163 = vmatpush2.bf16.msra.mxu0 0
        %2164 = vmatprep.subr.bf16.mxu0 0
        %2165 = vmatpush2.bf16.msra.mxu0 0
        %2166 = vmatprep.subr.bf16.mxu0 0
        %2167 = vmatpush2.bf16.msra.mxu0 0
        %2168 = vmatprep.subr.bf16.mxu0 0
        %2169 = vmatpush2.bf16.msra.mxu0 0
        %2170 = vmatprep.subr.bf16.mxu0 0
        %2171 = vmatpush2.bf16.msra.mxu0 0
        %2172 = vmatprep.subr.bf16.mxu0 0
        %2173 = vmatpush2.bf16.msra.mxu0 0
        %2174 = vmatprep.subr.bf16.mxu0 0
        %2175 = vmatpush2.bf16.msra.mxu0 0
        %2176 = vmatprep.subr.bf16.mxu0 0
        %2177 = vmatpush2.bf16.msra.mxu0 0
        %2178 = vmatprep.mubr.bf16.mxu0 0
        %2179 = vmatmul.mubr.bf16.gmra.mxu0 %v2138
        %v2180 = vpop.f32.mrf.mxu0
        %v2181 = vadd.f32 0.0, %v2180
        %v2182 = vpop.f32.mrf.mxu0
        %v2183 = vpop.f32.mrf.mxu0
        %v2184 = vadd.f32 0.0, %v2183
        %v2185 = vpop.f32.mrf.mxu0
        %2186 = vmatprep.mubr.bf16.mxu0 0
        %2187 = vmatmul.mubr.bf16.gmra.mxu0 %v2139
        %v2188 = vpop.f32.mrf.mxu0
        %v2189 = vadd.f32 0.0, %v2188
        %v2190 = vpop.f32.mrf.mxu0
        %v2191 = vpop.f32.mrf.mxu0
        %v2192 = vadd.f32 0.0, %v2191
        %v2193 = vpop.f32.mrf.mxu0
        %2194 = vmatprep.mubr.bf16.mxu0 0
        %2195 = vmatmul.mubr.bf16.gmra.mxu0 %v2140
        %v2196 = vpop.f32.mrf.mxu0
        %v2197 = vadd.f32 0.0, %v2196
        %v2198 = vpop.f32.mrf.mxu0
        %v2199 = vpop.f32.mrf.mxu0
        %v2200 = vadd.f32 0.0, %v2199
        %v2201 = vpop.f32.mrf.mxu0
        %2202 = vmatprep.mubr.bf16.mxu0 0
        %2203 = vmatmul.mubr.bf16.gmra.mxu0 %v2141
        %v2204 = vpop.f32.mrf.mxu0
        %v2205 = vadd.f32 0.0, %v2204
        %v2206 = vpop.f32.mrf.mxu0
        %v2207 = vpop.f32.mrf.mxu0
        %v2208 = vadd.f32 0.0, %v2207
        %v2209 = vpop.f32.mrf.mxu0
        %2210 = vmatprep.mubr.bf16.mxu0 0
        %2211 = vmatmul.mubr.bf16.gmra.mxu0 %v2142
        %v2212 = vpop.f32.mrf.mxu0
        %v2213 = vadd.f32 0.0, %v2212
        %v2214 = vpop.f32.mrf.mxu0
        %v2215 = vpop.f32.mrf.mxu0
        %v2216 = vadd.f32 0.0, %v2215
        %v2217 = vpop.f32.mrf.mxu0
        %2218 = vmatprep.mubr.bf16.mxu0 0
        %2219 = vmatmul.mubr.bf16.gmra.mxu0 %v2143
        %v2220 = vpop.f32.mrf.mxu0
        %v2221 = vadd.f32 0.0, %v2220
        %v2222 = vpop.f32.mrf.mxu0
        %v2223 = vpop.f32.mrf.mxu0
        %v2224 = vadd.f32 0.0, %v2223
        %v2225 = vpop.f32.mrf.mxu0
        %2226 = vmatprep.mubr.bf16.mxu0 0
        %2227 = vmatmul.mubr.bf16.gmra.mxu0 %v2144
        %v2228 = vpop.f32.mrf.mxu0
        %v2229 = vadd.f32 0.0, %v2228
        %v2230 = vpop.f32.mrf.mxu0
        %v2231 = vpop.f32.mrf.mxu0
        %v2232 = vadd.f32 0.0, %v2231
        %v2233 = vpop.f32.mrf.mxu0
        %2234 = vmatprep.mubr.bf16.mxu0 0
        %2235 = vmatmul.mubr.bf16.gmra.mxu0 %v2145
        %v2236 = vpop.f32.mrf.mxu0
        %v2237 = vadd.f32 0.0, %v2236
        %v2238 = vpop.f32.mrf.mxu0
        %v2239 = vpop.f32.mrf.mxu0
        %v2240 = vadd.f32 0.0, %v2239
        %v2241 = vpop.f32.mrf.mxu0
        %2242 = vdwg.mxu0
        %v2243 = vmul.f32 %v2181, %v2122
        %v2244 = vmul.f32 %v2184, %v2123
        %v2245 = vmul.f32 %v2189, %v2124
        %v2246 = vmul.f32 %v2192, %v2125
        %v2247 = vmul.f32 %v2197, %v2126
        %v2248 = vmul.f32 %v2200, %v2127
        %v2249 = vmul.f32 %v2205, %v2128
        %v2250 = vmul.f32 %v2208, %v2129
        %v2251 = vmul.f32 %v2213, %v2130
        %v2252 = vmul.f32 %v2216, %v2131
        %v2253 = vmul.f32 %v2221, %v2132
        %v2254 = vmul.f32 %v2224, %v2133
        %v2255 = vmul.f32 %v2229, %v2134
        %v2256 = vmul.f32 %v2232, %v2135
        %v2257 = vmul.f32 %v2237, %v2136
        %v2258 = vmul.f32 %v2240, %v2137
        %v2259 = vpack.c.bf16 %v2244, %v2243
        %v2260 = vpack.c.bf16 %v2246, %v2245
        %v2261 = vpack.c.bf16 %v2248, %v2247
        %v2262 = vpack.c.bf16 %v2250, %v2249
        %v2263 = vpack.c.bf16 %v2252, %v2251
        %v2264 = vpack.c.bf16 %v2254, %v2253
        %v2265 = vpack.c.bf16 %v2256, %v2255
        %v2266 = vpack.c.bf16 %v2258, %v2257
        %v2275 = vunpack.c.l.b16 %v2259
        %v2276 = vunpack.c.h.b16 %v2259
        %v2277 = vunpack.c.l.b16 %v2260
        %v2278 = vunpack.c.h.b16 %v2260
        %v2279 = vunpack.c.l.b16 %v2261
        %v2280 = vunpack.c.h.b16 %v2261
        %v2281 = vunpack.c.l.b16 %v2262
        %v2282 = vunpack.c.h.b16 %v2262
        %v2283 = vunpack.c.l.b16 %v2263
        %v2284 = vunpack.c.h.b16 %v2263
        %v2285 = vunpack.c.l.b16 %v2264
        %v2286 = vunpack.c.h.b16 %v2264
        %v2287 = vunpack.c.l.b16 %v2265
        %v2288 = vunpack.c.h.b16 %v2265
        %v2289 = vunpack.c.l.b16 %v2266
        %v2290 = vunpack.c.h.b16 %v2266
        %v2291 = vpack.c.b16 %v2275, %v2275
        %v2292 = vpack.c.b16 %v2276, %v2276
        %v2293 = vpack.c.b16 %v2277, %v2277
        %v2294 = vpack.c.b16 %v2278, %v2278
        %v2295 = vpack.c.b16 %v2279, %v2279
        %v2296 = vpack.c.b16 %v2280, %v2280
        %v2297 = vpack.c.b16 %v2281, %v2281
        %v2298 = vpack.c.b16 %v2282, %v2282
        %v2299 = vpack.c.b16 %v2283, %v2283
        %v2300 = vpack.c.b16 %v2284, %v2284
        %v2301 = vpack.c.b16 %v2285, %v2285
        %v2302 = vpack.c.b16 %v2286, %v2286
        %v2303 = vpack.c.b16 %v2287, %v2287
        %v2304 = vpack.c.b16 %v2288, %v2288
        %v2305 = vpack.c.b16 %v2289, %v2289
        %v2306 = vpack.c.b16 %v2290, %v2290
        %2323 = vst [vmem:[#allocation2] sm:$0xf] %v2291
        %2324 = vst [vmem:[#allocation2 + $0x8] sm:$0xf] %v2292
        %2325 = vst [vmem:[#allocation2 + $0x10] sm:$0xf] %v2293
        %2326 = vst [vmem:[#allocation2 + $0x18] sm:$0xf] %v2294
        %2327 = vst [vmem:[#allocation2 + $0x20] sm:$0xf] %v2295
        %2328 = vst [vmem:[#allocation2 + $0x28] sm:$0xf] %v2296
        %2329 = vst [vmem:[#allocation2 + $0x30] sm:$0xf] %v2297
        %2330 = vst [vmem:[#allocation2 + $0x38] sm:$0xf] %v2298
        %2331 = vst [vmem:[#allocation2 + $0x40] sm:$0xf] %v2299
        %2332 = vst [vmem:[#allocation2 + $0x48] sm:$0xf] %v2300
        %2333 = vst [vmem:[#allocation2 + $0x50] sm:$0xf] %v2301
        %2334 = vst [vmem:[#allocation2 + $0x58] sm:$0xf] %v2302
        %2335 = vst [vmem:[#allocation2 + $0x60] sm:$0xf] %v2303
        %2336 = vst [vmem:[#allocation2 + $0x68] sm:$0xf] %v2304
        %2337 = vst [vmem:[#allocation2 + $0x70] sm:$0xf] %v2305
        %2338 = vst [vmem:[#allocation2 + $0x78] sm:$0xf] %v2306
        %2339 = vmatprep.subr.bf16.mxu0 0
        %2340 = vmatpush1.bf16.xpose.msra.mxu0 %v1591
        %2341 = vmatprep.subr.bf16.mxu0 0
        %2342 = vmatpush1.bf16.xpose.msra.mxu0 %v1589
        %2343 = vmatprep.subr.bf16.mxu0 0
        %2344 = vmatpush1.bf16.xpose.msra.mxu0 %v1587
        %2345 = vmatprep.subr.bf16.mxu0 0
        %2346 = vmatpush1.bf16.xpose.msra.mxu0 %v1585
        %2347 = vmatprep.subr.bf16.mxu0 0
        %2348 = vmatpush1.bf16.xpose.msra.mxu0 %v1583
        %2349 = vmatprep.subr.bf16.mxu0 0
        %2350 = vmatpush1.bf16.xpose.msra.mxu0 %v1581
        %2351 = vmatprep.subr.bf16.mxu0 0
        %2352 = vmatpush1.bf16.xpose.msra.mxu0 %v1579
        %2353 = vmatprep.subr.bf16.mxu0 0
        %2354 = vmatpush1.bf16.xpose.msra.mxu0 %v1577
        %2355 = vmatprep.subr.bf16.mxu0 0
        %2356 = vmatpush2.bf16.xpose.msra.mxu0 0
        %2357 = vmatprep.subr.bf16.mxu0 0
        %2358 = vmatpush2.bf16.xpose.msra.mxu0 0
        %2359 = vmatprep.subr.bf16.mxu0 0
        %2360 = vmatpush2.bf16.xpose.msra.mxu0 0
        %2361 = vmatprep.subr.bf16.mxu0 0
        %2362 = vmatpush2.bf16.xpose.msra.mxu0 0
        %2363 = vmatprep.subr.bf16.mxu0 0
        %2364 = vmatpush2.bf16.xpose.msra.mxu0 0
        %2365 = vmatprep.subr.bf16.mxu0 0
        %2366 = vmatpush2.bf16.xpose.msra.mxu0 0
        %2367 = vmatprep.subr.bf16.mxu0 0
        %2368 = vmatpush2.bf16.xpose.msra.mxu0 0
        %2369 = vmatprep.subr.bf16.mxu0 0
        %2370 = vmatpush2.bf16.xpose.msra.mxu0 0
        %2371 = vmatprep.mubr.bf16.mxu0 0
        %2372 = vmatmul.mubr.bf16.gmra.mxu0 %v903
        %v2373 = vpop.f32.mrf.mxu0
        %v2374 = vadd.f32 0.0, %v2373
        %v2375 = vpop.f32.mrf.mxu0
        %v2376 = vpop.f32.mrf.mxu0
        %v2377 = vadd.f32 0.0, %v2376
        %v2378 = vpop.f32.mrf.mxu0
        %2379 = vmatprep.mubr.bf16.mxu0 0
        %2380 = vmatmul.mubr.bf16.gmra.mxu0 %v905
        %v2381 = vpop.f32.mrf.mxu0
        %v2382 = vadd.f32 0.0, %v2381
        %v2383 = vpop.f32.mrf.mxu0
        %v2384 = vpop.f32.mrf.mxu0
        %v2385 = vadd.f32 0.0, %v2384
        %v2386 = vpop.f32.mrf.mxu0
        %2387 = vmatprep.mubr.bf16.mxu0 0
        %2388 = vmatmul.mubr.bf16.gmra.mxu0 %v907
        %v2389 = vpop.f32.mrf.mxu0
        %v2390 = vadd.f32 0.0, %v2389
        %v2391 = vpop.f32.mrf.mxu0
        %v2392 = vpop.f32.mrf.mxu0
        %v2393 = vadd.f32 0.0, %v2392
        %v2394 = vpop.f32.mrf.mxu0
        %2395 = vmatprep.mubr.bf16.mxu0 0
        %2396 = vmatmul.mubr.bf16.gmra.mxu0 %v909
        %v2397 = vpop.f32.mrf.mxu0
        %v2398 = vadd.f32 0.0, %v2397
        %v2399 = vpop.f32.mrf.mxu0
        %v2400 = vpop.f32.mrf.mxu0
        %v2401 = vadd.f32 0.0, %v2400
        %v2402 = vpop.f32.mrf.mxu0
        %2403 = vmatprep.mubr.bf16.mxu0 0
        %2404 = vmatmul.mubr.bf16.gmra.mxu0 %v911
        %v2405 = vpop.f32.mrf.mxu0
        %v2406 = vadd.f32 0.0, %v2405
        %v2407 = vpop.f32.mrf.mxu0
        %v2408 = vpop.f32.mrf.mxu0
        %v2409 = vadd.f32 0.0, %v2408
        %v2410 = vpop.f32.mrf.mxu0
        %2411 = vmatprep.mubr.bf16.mxu0 0
        %2412 = vmatmul.mubr.bf16.gmra.mxu0 %v913
        %v2413 = vpop.f32.mrf.mxu0
        %v2414 = vadd.f32 0.0, %v2413
        %v2415 = vpop.f32.mrf.mxu0
        %v2416 = vpop.f32.mrf.mxu0
        %v2417 = vadd.f32 0.0, %v2416
        %v2418 = vpop.f32.mrf.mxu0
        %2419 = vmatprep.mubr.bf16.mxu0 0
        %2420 = vmatmul.mubr.bf16.gmra.mxu0 %v915
        %v2421 = vpop.f32.mrf.mxu0
        %v2422 = vadd.f32 0.0, %v2421
        %v2423 = vpop.f32.mrf.mxu0
        %v2424 = vpop.f32.mrf.mxu0
        %v2425 = vadd.f32 0.0, %v2424
        %v2426 = vpop.f32.mrf.mxu0
        %2427 = vmatprep.mubr.bf16.mxu0 0
        %2428 = vmatmul.mubr.bf16.gmra.mxu0 %v917
        %v2429 = vpop.f32.mrf.mxu0
        %v2430 = vadd.f32 0.0, %v2429
        %v2431 = vpop.f32.mrf.mxu0
        %v2432 = vpop.f32.mrf.mxu0
        %v2433 = vadd.f32 0.0, %v2432
        %v2434 = vpop.f32.mrf.mxu0
        %2435 = vdwg.mxu0
        %2436 = vmax.xlane.f32.xlu0 %v2374
        %v2437 = vpop.xlane.xlu0 %2436
        %2438 = vmax.xlane.f32.xlu0 %v2377
        %v2439 = vpop.xlane.xlu0 %2438
        %2440 = vmax.xlane.f32.xlu0 %v2382
        %v2441 = vpop.xlane.xlu0 %2440
        %2442 = vmax.xlane.f32.xlu0 %v2385
        %v2443 = vpop.xlane.xlu0 %2442
        %2444 = vmax.xlane.f32.xlu0 %v2390
        %v2445 = vpop.xlane.xlu0 %2444
        %2446 = vmax.xlane.f32.xlu0 %v2393
        %v2447 = vpop.xlane.xlu0 %2446
        %2448 = vmax.xlane.f32.xlu0 %v2398
        %v2449 = vpop.xlane.xlu0 %2448
        %2450 = vmax.xlane.f32.xlu0 %v2401
        %v2451 = vpop.xlane.xlu0 %2450
        %2452 = vmax.xlane.f32.xlu0 %v2406
        %v2453 = vpop.xlane.xlu0 %2452
        %2454 = vmax.xlane.f32.xlu0 %v2409
        %v2455 = vpop.xlane.xlu0 %2454
        %2456 = vmax.xlane.f32.xlu0 %v2414
        %v2457 = vpop.xlane.xlu0 %2456
        %2458 = vmax.xlane.f32.xlu0 %v2417
        %v2459 = vpop.xlane.xlu0 %2458
        %2460 = vmax.xlane.f32.xlu0 %v2422
        %v2461 = vpop.xlane.xlu0 %2460
        %2462 = vmax.xlane.f32.xlu0 %v2425
        %v2463 = vpop.xlane.xlu0 %2462
        %2464 = vmax.xlane.f32.xlu0 %v2430
        %v2465 = vpop.xlane.xlu0 %2464
        %2466 = vmax.xlane.f32.xlu0 %v2433
        %v2467 = vpop.xlane.xlu0 %2466
        %v2468 = vsub.f32 %v2374, %v2437
        %v2469 = vsub.f32 %v2377, %v2439
        %v2470 = vsub.f32 %v2382, %v2441
        %v2471 = vsub.f32 %v2385, %v2443
        %v2472 = vsub.f32 %v2390, %v2445
        %v2473 = vsub.f32 %v2393, %v2447
        %v2474 = vsub.f32 %v2398, %v2449
        %v2475 = vsub.f32 %v2401, %v2451
        %v2476 = vsub.f32 %v2406, %v2453
        %v2477 = vsub.f32 %v2409, %v2455
        %v2478 = vsub.f32 %v2414, %v2457
        %v2479 = vsub.f32 %v2417, %v2459
        %v2480 = vsub.f32 %v2422, %v2461
        %v2481 = vsub.f32 %v2425, %v2463
        %v2482 = vsub.f32 %v2430, %v2465
        %v2483 = vsub.f32 %v2433, %v2467
        %v2484 = vmul.f32 %v2468, 1.442695
        %v2485 = vpow.pop %v2484
        %v2486 = vmul.f32 %v2469, 1.442695
        %v2487 = vpow.pop %v2486
        %v2488 = vmul.f32 %v2470, 1.442695
        %v2489 = vpow.pop %v2488
        %v2490 = vmul.f32 %v2471, 1.442695
        %v2491 = vpow.pop %v2490
        %v2492 = vmul.f32 %v2472, 1.442695
        %v2493 = vpow.pop %v2492
        %v2494 = vmul.f32 %v2473, 1.442695
        %v2495 = vpow.pop %v2494
        %v2496 = vmul.f32 %v2474, 1.442695
        %v2497 = vpow.pop %v2496
        %v2498 = vmul.f32 %v2475, 1.442695
        %v2499 = vpow.pop %v2498
        %v2500 = vmul.f32 %v2476, 1.442695
        %v2501 = vpow.pop %v2500
        %v2502 = vmul.f32 %v2477, 1.442695
        %v2503 = vpow.pop %v2502
        %v2504 = vmul.f32 %v2478, 1.442695
        %v2505 = vpow.pop %v2504
        %v2506 = vmul.f32 %v2479, 1.442695
        %v2507 = vpow.pop %v2506
        %v2508 = vmul.f32 %v2480, 1.442695
        %v2509 = vpow.pop %v2508
        %v2510 = vmul.f32 %v2481, 1.442695
        %v2511 = vpow.pop %v2510
        %v2512 = vmul.f32 %v2482, 1.442695
        %v2513 = vpow.pop %v2512
        %v2514 = vmul.f32 %v2483, 1.442695
        %v2515 = vpow.pop %v2514
        %2516 = vadd.xlane.f32.xlu0 %v2485
        %v2517 = vpop.xlane.xlu0 %2516
        %2518 = vadd.xlane.f32.xlu0 %v2487
        %v2519 = vpop.xlane.xlu0 %2518
        %2520 = vadd.xlane.f32.xlu0 %v2489
        %v2521 = vpop.xlane.xlu0 %2520
        %2522 = vadd.xlane.f32.xlu0 %v2491
        %v2523 = vpop.xlane.xlu0 %2522
        %2524 = vadd.xlane.f32.xlu0 %v2493
        %v2525 = vpop.xlane.xlu0 %2524
        %2526 = vadd.xlane.f32.xlu0 %v2495
        %v2527 = vpop.xlane.xlu0 %2526
        %2528 = vadd.xlane.f32.xlu0 %v2497
        %v2529 = vpop.xlane.xlu0 %2528
        %2530 = vadd.xlane.f32.xlu0 %v2499
        %v2531 = vpop.xlane.xlu0 %2530
        %2532 = vadd.xlane.f32.xlu0 %v2501
        %v2533 = vpop.xlane.xlu0 %2532
        %2534 = vadd.xlane.f32.xlu0 %v2503
        %v2535 = vpop.xlane.xlu0 %2534
        %2536 = vadd.xlane.f32.xlu0 %v2505
        %v2537 = vpop.xlane.xlu0 %2536
        %2538 = vadd.xlane.f32.xlu0 %v2507
        %v2539 = vpop.xlane.xlu0 %2538
        %2540 = vadd.xlane.f32.xlu0 %v2509
        %v2541 = vpop.xlane.xlu0 %2540
        %2542 = vadd.xlane.f32.xlu0 %v2511
        %v2543 = vpop.xlane.xlu0 %2542
        %2544 = vadd.xlane.f32.xlu0 %v2513
        %v2545 = vpop.xlane.xlu0 %2544
        %2546 = vadd.xlane.f32.xlu0 %v2515
        %v2547 = vpop.xlane.xlu0 %2546
        %v2548 = vrcp.pop %v2517
        %v2549 = vrcp.pop %v2519
        %v2550 = vrcp.pop %v2521
        %v2551 = vrcp.pop %v2523
        %v2552 = vrcp.pop %v2525
        %v2553 = vrcp.pop %v2527
        %v2554 = vrcp.pop %v2529
        %v2555 = vrcp.pop %v2531
        %v2556 = vrcp.pop %v2533
        %v2557 = vrcp.pop %v2535
        %v2558 = vrcp.pop %v2537
        %v2559 = vrcp.pop %v2539
        %v2560 = vrcp.pop %v2541
        %v2561 = vrcp.pop %v2543
        %v2562 = vrcp.pop %v2545
        %v2563 = vrcp.pop %v2547
        %v2564 = vpack.c.bf16 %v2487, %v2485
        %v2565 = vpack.c.bf16 %v2491, %v2489
        %v2566 = vpack.c.bf16 %v2495, %v2493
        %v2567 = vpack.c.bf16 %v2499, %v2497
        %v2568 = vpack.c.bf16 %v2503, %v2501
        %v2569 = vpack.c.bf16 %v2507, %v2505
        %v2570 = vpack.c.bf16 %v2511, %v2509
        %v2571 = vpack.c.bf16 %v2515, %v2513
        %2572 = vmatprep.subr.bf16.mxu0 0
        %2573 = vmatpush1.bf16.msra.mxu0 %v1912
        %2574 = vmatprep.subr.bf16.mxu0 0
        %2575 = vmatpush1.bf16.msra.mxu0 %v1910
        %2576 = vmatprep.subr.bf16.mxu0 0
        %2577 = vmatpush1.bf16.msra.mxu0 %v1908
        %2578 = vmatprep.subr.bf16.mxu0 0
        %2579 = vmatpush1.bf16.msra.mxu0 %v1906
        %2580 = vmatprep.subr.bf16.mxu0 0
        %2581 = vmatpush1.bf16.msra.mxu0 %v1904
        %2582 = vmatprep.subr.bf16.mxu0 0
        %2583 = vmatpush1.bf16.msra.mxu0 %v1902
        %2584 = vmatprep.subr.bf16.mxu0 0
        %2585 = vmatpush1.bf16.msra.mxu0 %v1900
        %2586 = vmatprep.subr.bf16.mxu0 0
        %2587 = vmatpush1.bf16.msra.mxu0 %v1898
        %2588 = vmatprep.subr.bf16.mxu0 0
        %2589 = vmatpush2.bf16.msra.mxu0 0
        %2590 = vmatprep.subr.bf16.mxu0 0
        %2591 = vmatpush2.bf16.msra.mxu0 0
        %2592 = vmatprep.subr.bf16.mxu0 0
        %2593 = vmatpush2.bf16.msra.mxu0 0
        %2594 = vmatprep.subr.bf16.mxu0 0
        %2595 = vmatpush2.bf16.msra.mxu0 0
        %2596 = vmatprep.subr.bf16.mxu0 0
        %2597 = vmatpush2.bf16.msra.mxu0 0
        %2598 = vmatprep.subr.bf16.mxu0 0
        %2599 = vmatpush2.bf16.msra.mxu0 0
        %2600 = vmatprep.subr.bf16.mxu0 0
        %2601 = vmatpush2.bf16.msra.mxu0 0
        %2602 = vmatprep.subr.bf16.mxu0 0
        %2603 = vmatpush2.bf16.msra.mxu0 0
        %2604 = vmatprep.mubr.bf16.mxu0 0
        %2605 = vmatmul.mubr.bf16.gmra.mxu0 %v2564
        %v2606 = vpop.f32.mrf.mxu0
        %v2607 = vadd.f32 0.0, %v2606
        %v2608 = vpop.f32.mrf.mxu0
        %v2609 = vpop.f32.mrf.mxu0
        %v2610 = vadd.f32 0.0, %v2609
        %v2611 = vpop.f32.mrf.mxu0
        %2612 = vmatprep.mubr.bf16.mxu0 0
        %2613 = vmatmul.mubr.bf16.gmra.mxu0 %v2565
        %v2614 = vpop.f32.mrf.mxu0
        %v2615 = vadd.f32 0.0, %v2614
        %v2616 = vpop.f32.mrf.mxu0
        %v2617 = vpop.f32.mrf.mxu0
        %v2618 = vadd.f32 0.0, %v2617
        %v2619 = vpop.f32.mrf.mxu0
        %2620 = vmatprep.mubr.bf16.mxu0 0
        %2621 = vmatmul.mubr.bf16.gmra.mxu0 %v2566
        %v2622 = vpop.f32.mrf.mxu0
        %v2623 = vadd.f32 0.0, %v2622
        %v2624 = vpop.f32.mrf.mxu0
        %v2625 = vpop.f32.mrf.mxu0
        %v2626 = vadd.f32 0.0, %v2625
        %v2627 = vpop.f32.mrf.mxu0
        %2628 = vmatprep.mubr.bf16.mxu0 0
        %2629 = vmatmul.mubr.bf16.gmra.mxu0 %v2567
        %v2630 = vpop.f32.mrf.mxu0
        %v2631 = vadd.f32 0.0, %v2630
        %v2632 = vpop.f32.mrf.mxu0
        %v2633 = vpop.f32.mrf.mxu0
        %v2634 = vadd.f32 0.0, %v2633
        %v2635 = vpop.f32.mrf.mxu0
        %2636 = vmatprep.mubr.bf16.mxu0 0
        %2637 = vmatmul.mubr.bf16.gmra.mxu0 %v2568
        %v2638 = vpop.f32.mrf.mxu0
        %v2639 = vadd.f32 0.0, %v2638
        %v2640 = vpop.f32.mrf.mxu0
        %v2641 = vpop.f32.mrf.mxu0
        %v2642 = vadd.f32 0.0, %v2641
        %v2643 = vpop.f32.mrf.mxu0
        %2644 = vmatprep.mubr.bf16.mxu0 0
        %2645 = vmatmul.mubr.bf16.gmra.mxu0 %v2569
        %v2646 = vpop.f32.mrf.mxu0
        %v2647 = vadd.f32 0.0, %v2646
        %v2648 = vpop.f32.mrf.mxu0
        %v2649 = vpop.f32.mrf.mxu0
        %v2650 = vadd.f32 0.0, %v2649
        %v2651 = vpop.f32.mrf.mxu0
        %2652 = vmatprep.mubr.bf16.mxu0 0
        %2653 = vmatmul.mubr.bf16.gmra.mxu0 %v2570
        %v2654 = vpop.f32.mrf.mxu0
        %v2655 = vadd.f32 0.0, %v2654
        %v2656 = vpop.f32.mrf.mxu0
        %v2657 = vpop.f32.mrf.mxu0
        %v2658 = vadd.f32 0.0, %v2657
        %v2659 = vpop.f32.mrf.mxu0
        %2660 = vmatprep.mubr.bf16.mxu0 0
        %2661 = vmatmul.mubr.bf16.gmra.mxu0 %v2571
        %v2662 = vpop.f32.mrf.mxu0
        %v2663 = vadd.f32 0.0, %v2662
        %v2664 = vpop.f32.mrf.mxu0
        %v2665 = vpop.f32.mrf.mxu0
        %v2666 = vadd.f32 0.0, %v2665
        %v2667 = vpop.f32.mrf.mxu0
        %2668 = vdwg.mxu0
        %v2669 = vmul.f32 %v2607, %v2548
        %v2670 = vmul.f32 %v2610, %v2549
        %v2671 = vmul.f32 %v2615, %v2550
        %v2672 = vmul.f32 %v2618, %v2551
        %v2673 = vmul.f32 %v2623, %v2552
        %v2674 = vmul.f32 %v2626, %v2553
        %v2675 = vmul.f32 %v2631, %v2554
        %v2676 = vmul.f32 %v2634, %v2555
        %v2677 = vmul.f32 %v2639, %v2556
        %v2678 = vmul.f32 %v2642, %v2557
        %v2679 = vmul.f32 %v2647, %v2558
        %v2680 = vmul.f32 %v2650, %v2559
        %v2681 = vmul.f32 %v2655, %v2560
        %v2682 = vmul.f32 %v2658, %v2561
        %v2683 = vmul.f32 %v2663, %v2562
        %v2684 = vmul.f32 %v2666, %v2563
        %v2685 = vpack.c.bf16 %v2670, %v2669
        %v2686 = vpack.c.bf16 %v2672, %v2671
        %v2687 = vpack.c.bf16 %v2674, %v2673
        %v2688 = vpack.c.bf16 %v2676, %v2675
        %v2689 = vpack.c.bf16 %v2678, %v2677
        %v2690 = vpack.c.bf16 %v2680, %v2679
        %v2691 = vpack.c.bf16 %v2682, %v2681
        %v2692 = vpack.c.bf16 %v2684, %v2683
        %v2701 = vunpack.c.l.b16 %v2685
        %v2702 = vunpack.c.h.b16 %v2685
        %v2703 = vunpack.c.l.b16 %v2686
        %v2704 = vunpack.c.h.b16 %v2686
        %v2705 = vunpack.c.l.b16 %v2687
        %v2706 = vunpack.c.h.b16 %v2687
        %v2707 = vunpack.c.l.b16 %v2688
        %v2708 = vunpack.c.h.b16 %v2688
        %v2709 = vunpack.c.l.b16 %v2689
        %v2710 = vunpack.c.h.b16 %v2689
        %v2711 = vunpack.c.l.b16 %v2690
        %v2712 = vunpack.c.h.b16 %v2690
        %v2713 = vunpack.c.l.b16 %v2691
        %v2714 = vunpack.c.h.b16 %v2691
        %v2715 = vunpack.c.l.b16 %v2692
        %v2716 = vunpack.c.h.b16 %v2692
        %v2717 = vpack.c.b16 %v2701, %v2701
        %v2718 = vpack.c.b16 %v2702, %v2702
        %v2719 = vpack.c.b16 %v2703, %v2703
        %v2720 = vpack.c.b16 %v2704, %v2704
        %v2721 = vpack.c.b16 %v2705, %v2705
        %v2722 = vpack.c.b16 %v2706, %v2706
        %v2723 = vpack.c.b16 %v2707, %v2707
        %v2724 = vpack.c.b16 %v2708, %v2708
        %v2725 = vpack.c.b16 %v2709, %v2709
        %v2726 = vpack.c.b16 %v2710, %v2710
        %v2727 = vpack.c.b16 %v2711, %v2711
        %v2728 = vpack.c.b16 %v2712, %v2712
        %v2729 = vpack.c.b16 %v2713, %v2713
        %v2730 = vpack.c.b16 %v2714, %v2714
        %v2731 = vpack.c.b16 %v2715, %v2715
        %v2732 = vpack.c.b16 %v2716, %v2716
        %2749 = vst [vmem:[#allocation2 + $0x4] sm:$0xf] %v2717
        %2750 = vst [vmem:[#allocation2 + $0xc] sm:$0xf] %v2718
        %2751 = vst [vmem:[#allocation2 + $0x14] sm:$0xf] %v2719
        %2752 = vst [vmem:[#allocation2 + $0x1c] sm:$0xf] %v2720
        %2753 = vst [vmem:[#allocation2 + $0x24] sm:$0xf] %v2721
        %2754 = vst [vmem:[#allocation2 + $0x2c] sm:$0xf] %v2722
        %2755 = vst [vmem:[#allocation2 + $0x34] sm:$0xf] %v2723
        %2756 = vst [vmem:[#allocation2 + $0x3c] sm:$0xf] %v2724
        %2757 = vst [vmem:[#allocation2 + $0x44] sm:$0xf] %v2725
        %2758 = vst [vmem:[#allocation2 + $0x4c] sm:$0xf] %v2726
        %2759 = vst [vmem:[#allocation2 + $0x54] sm:$0xf] %v2727
        %2760 = vst [vmem:[#allocation2 + $0x5c] sm:$0xf] %v2728
        %2761 = vst [vmem:[#allocation2 + $0x64] sm:$0xf] %v2729
        %2762 = vst [vmem:[#allocation2 + $0x6c] sm:$0xf] %v2730
        %2763 = vst [vmem:[#allocation2 + $0x74] sm:$0xf] %v2731
        %2764 = vst [vmem:[#allocation2 + $0x7c] sm:$0xf] %v2732
        %v2765 = vld [vmem:[#allocation2] sm:$0xff]
        %v2766 = vld [vmem:[#allocation2 + $0x8] sm:$0xff]
        %v2767 = vld [vmem:[#allocation2 + $0x10] sm:$0xff]
        %v2768 = vld [vmem:[#allocation2 + $0x18] sm:$0xff]
        %v2769 = vld [vmem:[#allocation2 + $0x20] sm:$0xff]
        %v2770 = vld [vmem:[#allocation2 + $0x28] sm:$0xff]
        %v2771 = vld [vmem:[#allocation2 + $0x30] sm:$0xff]
        %v2772 = vld [vmem:[#allocation2 + $0x38] sm:$0xff]
        %v2773 = vld [vmem:[#allocation2 + $0x40] sm:$0xff]
        %v2774 = vld [vmem:[#allocation2 + $0x48] sm:$0xff]
        %v2775 = vld [vmem:[#allocation2 + $0x50] sm:$0xff]
        %v2776 = vld [vmem:[#allocation2 + $0x58] sm:$0xff]
        %v2777 = vld [vmem:[#allocation2 + $0x60] sm:$0xff]
        %v2778 = vld [vmem:[#allocation2 + $0x68] sm:$0xff]
        %v2779 = vld [vmem:[#allocation2 + $0x70] sm:$0xff]
        %v2780 = vld [vmem:[#allocation2 + $0x78] sm:$0xff]
        %v2781 = vld [vmem:[#allocation9] sm:$0xff]
        %v2782 = vld [vmem:[#allocation9 + $0x8] sm:$0xff]
        %v2783 = vld [vmem:[#allocation9 + $0x10] sm:$0xff]
        %v2784 = vld [vmem:[#allocation9 + $0x18] sm:$0xff]
        %v2785 = vld [vmem:[#allocation9 + $0x20] sm:$0xff]
        %v2786 = vld [vmem:[#allocation9 + $0x28] sm:$0xff]
        %v2787 = vld [vmem:[#allocation9 + $0x30] sm:$0xff]
        %v2788 = vld [vmem:[#allocation9 + $0x38] sm:$0xff]
        %v2789 = vld [vmem:[#allocation9 + $0x40] sm:$0xff]
        %v2790 = vld [vmem:[#allocation9 + $0x48] sm:$0xff]
        %v2791 = vld [vmem:[#allocation9 + $0x50] sm:$0xff]
        %v2792 = vld [vmem:[#allocation9 + $0x58] sm:$0xff]
        %v2793 = vld [vmem:[#allocation9 + $0x60] sm:$0xff]
        %v2794 = vld [vmem:[#allocation9 + $0x68] sm:$0xff]
        %v2795 = vld [vmem:[#allocation9 + $0x70] sm:$0xff]
        %v2796 = vld [vmem:[#allocation9 + $0x78] sm:$0xff]
        %v2797 = vld [vmem:[#allocation9 + $0x80] sm:$0xff]
        %v2798 = vld [vmem:[#allocation9 + $0x88] sm:$0xff]
        %v2799 = vld [vmem:[#allocation9 + $0x90] sm:$0xff]
        %v2800 = vld [vmem:[#allocation9 + $0x98] sm:$0xff]
        %v2801 = vld [vmem:[#allocation9 + $0xa0] sm:$0xff]
        %v2802 = vld [vmem:[#allocation9 + $0xa8] sm:$0xff]
        %v2803 = vld [vmem:[#allocation9 + $0xb0] sm:$0xff]
        %v2804 = vld [vmem:[#allocation9 + $0xb8] sm:$0xff]
        %v2805 = vld [vmem:[#allocation9 + $0xc0] sm:$0xff]
        %v2806 = vld [vmem:[#allocation9 + $0xc8] sm:$0xff]
        %v2807 = vld [vmem:[#allocation9 + $0xd0] sm:$0xff]
        %v2808 = vld [vmem:[#allocation9 + $0xd8] sm:$0xff]
        %v2809 = vld [vmem:[#allocation9 + $0xe0] sm:$0xff]
        %v2810 = vld [vmem:[#allocation9 + $0xe8] sm:$0xff]
        %v2811 = vld [vmem:[#allocation9 + $0xf0] sm:$0xff]
        %v2812 = vld [vmem:[#allocation9 + $0xf8] sm:$0xff]
        %v2813 = vld [vmem:[%s6] sm:$0x3]
        %v2815 = vlaneseq
        %v2816 = vshrl.u32 %v2815, 7
        %v2817 = vsub.s32 0, %v2816
        %v2818 = vrot.slane %v2813, %v2817
        %v2819 = vlaneseq
        %v2820 = vshrl.u32 %v2819, 7
        %v2821 = vsub.s32 1, %v2820
        %v2822 = vrot.slane %v2813, %v2821
        %v2841 = vunpack.c.l.b16 %v2765
        %v2842 = vunpack.c.h.b16 %v2765
        %v2843 = vunpack.c.l.b16 %v2766
        %v2844 = vunpack.c.h.b16 %v2766
        %v2845 = vunpack.c.l.b16 %v2767
        %v2846 = vunpack.c.h.b16 %v2767
        %v2847 = vunpack.c.l.b16 %v2768
        %v2848 = vunpack.c.h.b16 %v2768
        %v2849 = vunpack.c.l.b16 %v2769
        %v2850 = vunpack.c.h.b16 %v2769
        %v2851 = vunpack.c.l.b16 %v2770
        %v2852 = vunpack.c.h.b16 %v2770
        %v2853 = vunpack.c.l.b16 %v2771
        %v2854 = vunpack.c.h.b16 %v2771
        %v2855 = vunpack.c.l.b16 %v2772
        %v2856 = vunpack.c.h.b16 %v2772
        %v2857 = vunpack.c.l.b16 %v2773
        %v2858 = vunpack.c.h.b16 %v2773
        %v2859 = vunpack.c.l.b16 %v2774
        %v2860 = vunpack.c.h.b16 %v2774
        %v2861 = vunpack.c.l.b16 %v2775
        %v2862 = vunpack.c.h.b16 %v2775
        %v2863 = vunpack.c.l.b16 %v2776
        %v2864 = vunpack.c.h.b16 %v2776
        %v2865 = vunpack.c.l.b16 %v2777
        %v2866 = vunpack.c.h.b16 %v2777
        %v2867 = vunpack.c.l.b16 %v2778
        %v2868 = vunpack.c.h.b16 %v2778
        %v2869 = vunpack.c.l.b16 %v2779
        %v2870 = vunpack.c.h.b16 %v2779
        %v2871 = vunpack.c.l.b16 %v2780
        %v2872 = vunpack.c.h.b16 %v2780
        %v2873 = vpack.c.b16 %v2843, %v2841
        %v2874 = vpack.c.b16 %v2844, %v2842
        %v2875 = vpack.c.b16 %v2847, %v2845
        %v2876 = vpack.c.b16 %v2848, %v2846
        %v2877 = vpack.c.b16 %v2851, %v2849
        %v2878 = vpack.c.b16 %v2852, %v2850
        %v2879 = vpack.c.b16 %v2855, %v2853
        %v2880 = vpack.c.b16 %v2856, %v2854
        %v2881 = vpack.c.b16 %v2859, %v2857
        %v2882 = vpack.c.b16 %v2860, %v2858
        %v2883 = vpack.c.b16 %v2863, %v2861
        %v2884 = vpack.c.b16 %v2864, %v2862
        %v2885 = vpack.c.b16 %v2867, %v2865
        %v2886 = vpack.c.b16 %v2868, %v2866
        %v2887 = vpack.c.b16 %v2871, %v2869
        %v2888 = vpack.c.b16 %v2872, %v2870
        %v2937 = vunpack.c.l.b16 %v2781
        %v2938 = vunpack.c.h.b16 %v2781
        %v2939 = vunpack.c.l.b16 %v2782
        %v2940 = vunpack.c.h.b16 %v2782
        %v2941 = vunpack.c.l.b16 %v2783
        %v2942 = vunpack.c.h.b16 %v2783
        %v2943 = vunpack.c.l.b16 %v2784
        %v2944 = vunpack.c.h.b16 %v2784
        %v2945 = vunpack.c.l.b16 %v2785
        %v2946 = vunpack.c.h.b16 %v2785
        %v2947 = vunpack.c.l.b16 %v2786
        %v2948 = vunpack.c.h.b16 %v2786
        %v2949 = vunpack.c.l.b16 %v2787
        %v2950 = vunpack.c.h.b16 %v2787
        %v2951 = vunpack.c.l.b16 %v2788
        %v2952 = vunpack.c.h.b16 %v2788
        %v2953 = vunpack.c.l.b16 %v2789
        %v2954 = vunpack.c.h.b16 %v2789
        %v2955 = vunpack.c.l.b16 %v2790
        %v2956 = vunpack.c.h.b16 %v2790
        %v2957 = vunpack.c.l.b16 %v2791
        %v2958 = vunpack.c.h.b16 %v2791
        %v2959 = vunpack.c.l.b16 %v2792
        %v2960 = vunpack.c.h.b16 %v2792
        %v2961 = vunpack.c.l.b16 %v2793
        %v2962 = vunpack.c.h.b16 %v2793
        %v2963 = vunpack.c.l.b16 %v2794
        %v2964 = vunpack.c.h.b16 %v2794
        %v2965 = vunpack.c.l.b16 %v2795
        %v2966 = vunpack.c.h.b16 %v2795
        %v2967 = vunpack.c.l.b16 %v2796
        %v2968 = vunpack.c.h.b16 %v2796
        %v2969 = vunpack.c.l.b16 %v2797
        %v2970 = vunpack.c.h.b16 %v2797
        %v2971 = vunpack.c.l.b16 %v2798
        %v2972 = vunpack.c.h.b16 %v2798
        %v2973 = vunpack.c.l.b16 %v2799
        %v2974 = vunpack.c.h.b16 %v2799
        %v2975 = vunpack.c.l.b16 %v2800
        %v2976 = vunpack.c.h.b16 %v2800
        %v2977 = vunpack.c.l.b16 %v2801
        %v2978 = vunpack.c.h.b16 %v2801
        %v2979 = vunpack.c.l.b16 %v2802
        %v2980 = vunpack.c.h.b16 %v2802
        %v2981 = vunpack.c.l.b16 %v2803
        %v2982 = vunpack.c.h.b16 %v2803
        %v2983 = vunpack.c.l.b16 %v2804
        %v2984 = vunpack.c.h.b16 %v2804
        %v2985 = vunpack.c.l.b16 %v2805
        %v2986 = vunpack.c.h.b16 %v2805
        %v2987 = vunpack.c.l.b16 %v2806
        %v2988 = vunpack.c.h.b16 %v2806
        %v2989 = vunpack.c.l.b16 %v2807
        %v2990 = vunpack.c.h.b16 %v2807
        %v2991 = vunpack.c.l.b16 %v2808
        %v2992 = vunpack.c.h.b16 %v2808
        %v2993 = vunpack.c.l.b16 %v2809
        %v2994 = vunpack.c.h.b16 %v2809
        %v2995 = vunpack.c.l.b16 %v2810
        %v2996 = vunpack.c.h.b16 %v2810
        %v2997 = vunpack.c.l.b16 %v2811
        %v2998 = vunpack.c.h.b16 %v2811
        %v2999 = vunpack.c.l.b16 %v2812
        %v3000 = vunpack.c.h.b16 %v2812
        %v3001 = vpack.c.b16 %v2939, %v2937
        %v3002 = vpack.c.b16 %v2940, %v2938
        %v3003 = vpack.c.b16 %v2943, %v2941
        %v3004 = vpack.c.b16 %v2944, %v2942
        %v3005 = vpack.c.b16 %v2947, %v2945
        %v3006 = vpack.c.b16 %v2948, %v2946
        %v3007 = vpack.c.b16 %v2951, %v2949
        %v3008 = vpack.c.b16 %v2952, %v2950
        %v3009 = vpack.c.b16 %v2955, %v2953
        %v3010 = vpack.c.b16 %v2956, %v2954
        %v3011 = vpack.c.b16 %v2959, %v2957
        %v3012 = vpack.c.b16 %v2960, %v2958
        %v3013 = vpack.c.b16 %v2963, %v2961
        %v3014 = vpack.c.b16 %v2964, %v2962
        %v3015 = vpack.c.b16 %v2967, %v2965
        %v3016 = vpack.c.b16 %v2968, %v2966
        %v3017 = vpack.c.b16 %v2971, %v2969
        %v3018 = vpack.c.b16 %v2972, %v2970
        %v3019 = vpack.c.b16 %v2975, %v2973
        %v3020 = vpack.c.b16 %v2976, %v2974
        %v3021 = vpack.c.b16 %v2979, %v2977
        %v3022 = vpack.c.b16 %v2980, %v2978
        %v3023 = vpack.c.b16 %v2983, %v2981
        %v3024 = vpack.c.b16 %v2984, %v2982
        %v3025 = vpack.c.b16 %v2987, %v2985
        %v3026 = vpack.c.b16 %v2988, %v2986
        %v3027 = vpack.c.b16 %v2991, %v2989
        %v3028 = vpack.c.b16 %v2992, %v2990
        %v3029 = vpack.c.b16 %v2995, %v2993
        %v3030 = vpack.c.b16 %v2996, %v2994
        %v3031 = vpack.c.b16 %v2999, %v2997
        %v3032 = vpack.c.b16 %v3000, %v2998
        %3065 = vmatprep.subr.bf16.mxu0 %v3016
        %3066 = vmatpush1.bf16.msra.mxu0 %v3015
        %3067 = vmatprep.subr.bf16.mxu0 %v3014
        %3068 = vmatpush1.bf16.msra.mxu0 %v3013
        %3069 = vmatprep.subr.bf16.mxu0 %v3012
        %3070 = vmatpush1.bf16.msra.mxu0 %v3011
        %3071 = vmatprep.subr.bf16.mxu0 %v3010
        %3072 = vmatpush1.bf16.msra.mxu0 %v3009
        %3073 = vmatprep.subr.bf16.mxu0 %v3008
        %3074 = vmatpush1.bf16.msra.mxu0 %v3007
        %3075 = vmatprep.subr.bf16.mxu0 %v3006
        %3076 = vmatpush1.bf16.msra.mxu0 %v3005
        %3077 = vmatprep.subr.bf16.mxu0 %v3004
        %3078 = vmatpush1.bf16.msra.mxu0 %v3003
        %3079 = vmatprep.subr.bf16.mxu0 %v3002
        %3080 = vmatpush1.bf16.msra.mxu0 %v3001
        %3081 = vmatprep.subr.bf16.mxu0 %v3032
        %3082 = vmatpush2.bf16.msra.mxu0 %v3031
        %3083 = vmatprep.subr.bf16.mxu0 %v3030
        %3084 = vmatpush2.bf16.msra.mxu0 %v3029
        %3085 = vmatprep.subr.bf16.mxu0 %v3028
        %3086 = vmatpush2.bf16.msra.mxu0 %v3027
        %3087 = vmatprep.subr.bf16.mxu0 %v3026
        %3088 = vmatpush2.bf16.msra.mxu0 %v3025
        %3089 = vmatprep.subr.bf16.mxu0 %v3024
        %3090 = vmatpush2.bf16.msra.mxu0 %v3023
        %3091 = vmatprep.subr.bf16.mxu0 %v3022
        %3092 = vmatpush2.bf16.msra.mxu0 %v3021
        %3093 = vmatprep.subr.bf16.mxu0 %v3020
        %3094 = vmatpush2.bf16.msra.mxu0 %v3019
        %3095 = vmatprep.subr.bf16.mxu0 %v3018
        %3096 = vmatpush2.bf16.msra.mxu0 %v3017
        %3097 = vmatprep.mubr.bf16.mxu0 %v2874
        %3098 = vmatmul.mubr.bf16.gmra.mxu0 %v2873
        %v3099 = vpop.f32.mrf.mxu0
        %v3100 = vadd.f32 %v2818, %v3099
        %v3101 = vpop.f32.mrf.mxu0
        %v3102 = vadd.f32 %v2822, %v3101
        %v3103 = vpop.f32.mrf.mxu0
        %v3104 = vadd.f32 %v2818, %v3103
        %v3105 = vpop.f32.mrf.mxu0
        %v3106 = vadd.f32 %v2822, %v3105
        %3107 = vmatprep.mubr.bf16.mxu0 %v2876
        %3108 = vmatmul.mubr.bf16.gmra.mxu0 %v2875
        %v3109 = vpop.f32.mrf.mxu0
        %v3110 = vadd.f32 %v2818, %v3109
        %v3111 = vpop.f32.mrf.mxu0
        %v3112 = vadd.f32 %v2822, %v3111
        %v3113 = vpop.f32.mrf.mxu0
        %v3114 = vadd.f32 %v2818, %v3113
        %v3115 = vpop.f32.mrf.mxu0
        %v3116 = vadd.f32 %v2822, %v3115
        %3117 = vmatprep.mubr.bf16.mxu0 %v2878
        %3118 = vmatmul.mubr.bf16.gmra.mxu0 %v2877
        %v3119 = vpop.f32.mrf.mxu0
        %v3120 = vadd.f32 %v2818, %v3119
        %v3121 = vpop.f32.mrf.mxu0
        %v3122 = vadd.f32 %v2822, %v3121
        %v3123 = vpop.f32.mrf.mxu0
        %v3124 = vadd.f32 %v2818, %v3123
        %v3125 = vpop.f32.mrf.mxu0
        %v3126 = vadd.f32 %v2822, %v3125
        %3127 = vmatprep.mubr.bf16.mxu0 %v2880
        %3128 = vmatmul.mubr.bf16.gmra.mxu0 %v2879
        %v3129 = vpop.f32.mrf.mxu0
        %v3130 = vadd.f32 %v2818, %v3129
        %v3131 = vpop.f32.mrf.mxu0
        %v3132 = vadd.f32 %v2822, %v3131
        %v3133 = vpop.f32.mrf.mxu0
        %v3134 = vadd.f32 %v2818, %v3133
        %v3135 = vpop.f32.mrf.mxu0
        %v3136 = vadd.f32 %v2822, %v3135
        %3137 = vmatprep.mubr.bf16.mxu0 %v2882
        %3138 = vmatmul.mubr.bf16.gmra.mxu0 %v2881
        %v3139 = vpop.f32.mrf.mxu0
        %v3140 = vadd.f32 %v2818, %v3139
        %v3141 = vpop.f32.mrf.mxu0
        %v3142 = vadd.f32 %v2822, %v3141
        %v3143 = vpop.f32.mrf.mxu0
        %v3144 = vadd.f32 %v2818, %v3143
        %v3145 = vpop.f32.mrf.mxu0
        %v3146 = vadd.f32 %v2822, %v3145
        %3147 = vmatprep.mubr.bf16.mxu0 %v2884
        %3148 = vmatmul.mubr.bf16.gmra.mxu0 %v2883
        %v3149 = vpop.f32.mrf.mxu0
        %v3150 = vadd.f32 %v2818, %v3149
        %v3151 = vpop.f32.mrf.mxu0
        %v3152 = vadd.f32 %v2822, %v3151
        %v3153 = vpop.f32.mrf.mxu0
        %v3154 = vadd.f32 %v2818, %v3153
        %v3155 = vpop.f32.mrf.mxu0
        %v3156 = vadd.f32 %v2822, %v3155
        %3157 = vmatprep.mubr.bf16.mxu0 %v2886
        %3158 = vmatmul.mubr.bf16.gmra.mxu0 %v2885
        %v3159 = vpop.f32.mrf.mxu0
        %v3160 = vadd.f32 %v2818, %v3159
        %v3161 = vpop.f32.mrf.mxu0
        %v3162 = vadd.f32 %v2822, %v3161
        %v3163 = vpop.f32.mrf.mxu0
        %v3164 = vadd.f32 %v2818, %v3163
        %v3165 = vpop.f32.mrf.mxu0
        %v3166 = vadd.f32 %v2822, %v3165
        %3167 = vmatprep.mubr.bf16.mxu0 %v2888
        %3168 = vmatmul.mubr.bf16.gmra.mxu0 %v2887
        %v3169 = vpop.f32.mrf.mxu0
        %v3170 = vadd.f32 %v2818, %v3169
        %v3171 = vpop.f32.mrf.mxu0
        %v3172 = vadd.f32 %v2822, %v3171
        %v3173 = vpop.f32.mrf.mxu0
        %v3174 = vadd.f32 %v2818, %v3173
        %v3175 = vpop.f32.mrf.mxu0
        %v3176 = vadd.f32 %v2822, %v3175
        %3177 = vdwg.mxu0
        %3178 = vst [vmem:[%s345] sm:$0xff] %v3100
        %3179 = vst [vmem:[%s345 + $0x8] sm:$0xff] %v3102
        %3180 = vst [vmem:[%s345 + $0x10] sm:$0xff] %v3104
        %3181 = vst [vmem:[%s345 + $0x18] sm:$0xff] %v3106
        %3182 = vst [vmem:[%s345 + $0x20] sm:$0xff] %v3110
        %3183 = vst [vmem:[%s345 + $0x28] sm:$0xff] %v3112
        %3184 = vst [vmem:[%s345 + $0x30] sm:$0xff] %v3114
        %3185 = vst [vmem:[%s345 + $0x38] sm:$0xff] %v3116
        %3186 = vst [vmem:[%s345 + $0x40] sm:$0xff] %v3120
        %3187 = vst [vmem:[%s345 + $0x48] sm:$0xff] %v3122
        %3188 = vst [vmem:[%s345 + $0x50] sm:$0xff] %v3124
        %3189 = vst [vmem:[%s345 + $0x58] sm:$0xff] %v3126
        %3190 = vst [vmem:[%s345 + $0x60] sm:$0xff] %v3130
        %3191 = vst [vmem:[%s345 + $0x68] sm:$0xff] %v3132
        %3192 = vst [vmem:[%s345 + $0x70] sm:$0xff] %v3134
        %3193 = vst [vmem:[%s345 + $0x78] sm:$0xff] %v3136
        %3194 = vst [vmem:[%s345 + $0x80] sm:$0xff] %v3140
        %3195 = vst [vmem:[%s345 + $0x88] sm:$0xff] %v3142
        %3196 = vst [vmem:[%s345 + $0x90] sm:$0xff] %v3144
        %3197 = vst [vmem:[%s345 + $0x98] sm:$0xff] %v3146
        %3198 = vst [vmem:[%s345 + $0xa0] sm:$0xff] %v3150
        %3199 = vst [vmem:[%s345 + $0xa8] sm:$0xff] %v3152
        %3200 = vst [vmem:[%s345 + $0xb0] sm:$0xff] %v3154
        %3201 = vst [vmem:[%s345 + $0xb8] sm:$0xff] %v3156
        %3202 = vst [vmem:[%s345 + $0xc0] sm:$0xff] %v3160
        %3203 = vst [vmem:[%s345 + $0xc8] sm:$0xff] %v3162
        %3204 = vst [vmem:[%s345 + $0xd0] sm:$0xff] %v3164
        %3205 = vst [vmem:[%s345 + $0xd8] sm:$0xff] %v3166
        %3206 = vst [vmem:[%s345 + $0xe0] sm:$0xff] %v3170
        %3207 = vst [vmem:[%s345 + $0xe8] sm:$0xff] %v3172
        %3208 = vst [vmem:[%s345 + $0xf0] sm:$0xff] %v3174
        %3209 = vst [vmem:[%s345 + $0xf8] sm:$0xff] %v3176
        %s3210 = sand.u32 %s189, 1
        %s3211 = scalar_lea.sflag [#allocation5], %s3210
        %s3212 = sand.u32 %s189, 1
        %s3213 = smul.addr %s3212, 256
        %s3214 = scalar_lea.vmem [#allocation11], %s3213
        // Predicated region
        $region65: #{tpu_custom_call.1} parent=47 // pred_check
          %p3215 = pneg %p199
        $region66: #{tpu_custom_call.1} parent=47 // pred_check_branch
          %3217 = sbr.rel (%p3215) target = $region68
        $region67: #{tpu_custom_call.1} parent=47 // pred_region
          %s3219 = ssub.s32 4096, 4096
          %3220 = vsyncadd %s3211, %s3219
          %s3221 = smul.addr %s24, 32
          %s3222 = smul.addr %s3221, 128
          %s3223 = scalar_lea.hbm %s7, %s3222
          %s3224 = sshll.u32 %s3214, 4
          %s3225 = int_to_ptr.vmem [resolvable:$true] %s3224
          %3230 = dma.vmem_to_hbm [thread:$0]  %s3225, 4096, %s3223, %s3211, 256, 256, 16
        $region68: #{tpu_custom_call.1} parent=47 // pred_fallthru
          _
      $region48: #{tpu_custom_call.1} parent=5 // pred_fallthru
        _
      %p3231 = scmp.le.s32.totalorder 2, %s19
      // Predicated region
      $region69: #{tpu_custom_call.1} parent=5 // pred_check
        %p3232 = pneg %p3231
      $region70: #{tpu_custom_call.1} parent=5 // pred_check_branch
        %3234 = sbr.rel (%p3232) target = $region72
      $region71: #{tpu_custom_call.1} parent=5 // pred_region
        %s3235 = ssub.s32 %s19, 2
        // Predicated region
        $region73: #{tpu_custom_call.1} parent=71 // pred_check
          %p3236 = pneg %p205
        $region74: #{tpu_custom_call.1} parent=71 // pred_check_branch
          %3238 = sbr.rel (%p3236) target = $region76
        $region75: #{tpu_custom_call.1} parent=71 // pred_region
          %s3239 = sand.u32 %s190, 1
          %s3240 = scalar_lea.sflag [#allocation5], %s3239
          %s3241 = sand.u32 %s190, 1
          %s3242 = smul.addr %s3241, 256
          %s3243 = scalar_lea.vmem [#allocation11], %s3242
          %3244 = dma.done %s3240, 4096
        $region76: #{tpu_custom_call.1} parent=71 // pred_fallthru
          _
      $region72: #{tpu_custom_call.1} parent=5 // pred_fallthru
        _
    $region6: #{tpu_custom_call.1} parent=1 // loop_footer
      %s23 = sadd.s32 1, %s19
    $region7: #{tpu_custom_call.1} parent=1 // loop_footer_branch
      %18 = sbr.rel target = $region3
    $region8: #{tpu_custom_call.1} parent=1 // loop_exit
      _
    %3245 = vsyncpa [#allocation4], 1
    %s3246 = scalar_lea.sflag [#allocation4], 1
    %3247 = vsyncpa %s3246, 1
    %3248 = vsyncpa [#allocation7], 1
    %3249 = vsyncpa [#allocation10], 1
    %3250 = vsyncpa [#allocation5], 1
    %s3251 = scalar_lea.sflag [#allocation5], 1
    %3252 = vsyncpa %s3251, 1

</llo_original>
